<compile_context>
chip_gen: v7x
topology: tpu7x:2x2x1
jax: 0.10.0
libtpu: 0.0.40
codegen_flags: <defaults>
</compile_context>

<pallas_src>
import functools
import math

import jax
import jax.numpy as jnp
from jax.experimental import pallas as pl
from jax.experimental.pallas import tpu as pltpu


# ----------------------------------------------------------------------------
# Pallas kernel: fused  Y = act(X @ W + b)  [optionally + Bernoulli sampling]
# grid = (N // tn  [parallel],  K // tk  [arbitrary reduction])
# ----------------------------------------------------------------------------
def _linear_kernel(*refs, act, sample_bernoulli):
    if sample_bernoulli:
        x_ref, w_ref, b_ref, u_ref, o_ref, acc_ref = refs
    else:
        x_ref, w_ref, b_ref, o_ref, acc_ref = refs
        u_ref = None

    k = pl.program_id(1)

    @pl.when(k == 0)
    def _():
        acc_ref[...] = jnp.zeros_like(acc_ref)

    # bf16 x bf16 -> f32 accumulate on the MXU
    acc_ref[...] += jnp.dot(
        x_ref[...], w_ref[...], preferred_element_type=jnp.float32
    )

    @pl.when(k == pl.num_programs(1) - 1)
    def _():
        y = acc_ref[...] + b_ref[...]          # bias kept in f32
        if act == "relu":
            y = jnp.maximum(y, 0.0)
        elif act == "tanh":
            y = jnp.tanh(y)
        if sample_bernoulli:
            # Bernoulli.sample (beta-tcvae lib/dist.py):
            #   STHeaviside(logits + logistic noise), noise = log(u) - log(1-u)
            u = u_ref[...]
            z = y + jnp.log(u) - jnp.log1p(-u)
            o_ref[...] = (z >= 0.0).astype(o_ref.dtype)
        else:
            o_ref[...] = y.astype(o_ref.dtype)


def _pick_tile(dim, cap):
    """Largest multiple-of-128 divisor of `dim` that is <= cap (or dim itself)."""
    if dim <= cap:
        return dim
    best = 128
    t = 128
    while t <= cap:
        if dim % t == 0:
            best = t
        t += 128
    return best


def pallas_linear(x, w, b, act="none", u=None, out_dtype=jnp.bfloat16):
    """x: (B, K) bf16, w: (K, N) bf16, b: (1, N) f32, optional u: (B, N) f32.

    K, N are padded to multiples of 128; B is a multiple of 8.
    """
    B, K = x.shape
    K2, N = w.shape
    assert K == K2

    tk = _pick_tile(K, 2048)                 # reduction tile
    tn = _pick_tile(N, max(128, N // 2))     # >=2 output blocks when possible (v7x megacore)
    grid = (N // tn, K // tk)

    in_specs = [
        pl.BlockSpec((B, tk), lambda j, k: (0, k)),
        pl.BlockSpec((tk, tn), lambda j, k: (k, j)),
        pl.BlockSpec((1, tn), lambda j, k: (0, j)),
    ]
    args = [x, w, b]
    sample_bernoulli = u is not None
    if sample_bernoulli:
        in_specs.append(pl.BlockSpec((B, tn), lambda j, k: (0, j)))
        args.append(u)

    out_bytes = B * N * jnp.dtype(out_dtype).itemsize
    cost = pl.CostEstimate(
        flops=2 * B * K * N,
        transcendentals=(B * N if act == "tanh" else 0)
        + (2 * B * N if sample_bernoulli else 0),
        bytes_accessed=B * K * 2 + K * N * 2 + N * 4 + out_bytes
        + (B * N * 4 if sample_bernoulli else 0),
    )

    return pl.pallas_call(
        functools.partial(
            _linear_kernel, act=act, sample_bernoulli=sample_bernoulli
        ),
        out_shape=jax.ShapeDtypeStruct((B, N), out_dtype),
        grid_spec=pltpu.PrefetchScalarGridSpec(
            num_scalar_prefetch=0,
            grid=grid,
            in_specs=in_specs,
            out_specs=pl.BlockSpec((B, tn), lambda j, k: (0, j)),
            scratch_shapes=[pltpu.VMEM((B, tn), jnp.float32)],
        ),
        compiler_params=pltpu.CompilerParams(
            dimension_semantics=("parallel", "arbitrary"),
            vmem_limit_bytes=32 * 1024 * 1024,
        ),
        cost_estimate=cost,
    )(*args)


# ----------------------------------------------------------------------------
# Parameter construction (deterministic, PyTorch nn.Linear-style bounds)
# ----------------------------------------------------------------------------
def _pad_to(a, rows, cols):
    r, c = a.shape
    return jnp.pad(a, ((0, rows - r), (0, cols - c)))


def make_linear_params(key, fan_in, fan_out, pad_in, pad_out, deinterleave_pairs=False):
    """Weight stored as (in, out) so the kernel computes x @ W + b.

    Weights stored in bf16 (streamed through the MXU); bias kept in f32.
    If deinterleave_pairs: columns [m0,s0,m1,s1,...] -> [m0..m_{n-1} | s0..s_{n-1}]
    so that mu / logsigma become contiguous lane-dense slices.
    """
    kw, kb = jax.random.split(key)
    bound = 1.0 / math.sqrt(fan_in)
    w = jax.random.uniform(kw, (fan_in, fan_out), jnp.float32, -bound, bound)
    b = jax.random.uniform(kb, (1, fan_out), jnp.float32, -bound, bound)
    if deinterleave_pairs:
        w = jnp.concatenate([w[:, 0::2], w[:, 1::2]], axis=1)
        b = jnp.concatenate([b[:, 0::2], b[:, 1::2]], axis=1)
    w = _pad_to(w, pad_in, pad_out).astype(jnp.bfloat16)
    b = _pad_to(b, 1, pad_out).astype(jnp.float32)
    return w, b


def init_vae_params(key, z_dim):
    H, HP = 1200, 1280           # logical / padded hidden
    Z2, Z2P = 2 * z_dim, 128     # encoder output (mu | logsigma after de-interleave)
    ZP = 128                     # padded latent
    keys = jax.random.split(key, 7)
    return {
        # MLPEncoder
        "enc_fc1": make_linear_params(keys[0], 4096, H, 4096, HP),
        "enc_fc2": make_linear_params(keys[1], H, H, HP, HP),
        "enc_fc3": make_linear_params(keys[2], H, Z2, HP, Z2P, deinterleave_pairs=True),
        # MLPDecoder
        "dec_fc1": make_linear_params(keys[3], z_dim, H, ZP, HP),
        "dec_fc2": make_linear_params(keys[4], H, H, HP, HP),
        "dec_fc3": make_linear_params(keys[5], H, H, HP, HP),
        "dec_fc4": make_linear_params(keys[6], H, 4096, HP, 4096),
    }


# ----------------------------------------------------------------------------
# VAE forward = reconstruct_img(x) -> xs
# ----------------------------------------------------------------------------
def vae_forward(params, x, z_dim, rng_key):
    B = x.shape[0]
    assert x.shape == (B, 1, 64, 64), "Wrong input data dimensions"
    k_eps, k_u = jax.random.split(rng_key)

    # Pad batch to a multiple of 8 sublanes (free: workload is weight-stream bound).
    Bp = max(8, ((B + 7) // 8) * 8)

    # ---- encode ----
    h = x.reshape(B, 4096)                                   # x.view(-1, 64*64)
    if Bp != B:
        h = jnp.pad(h, ((0, Bp - B), (0, 0)))
    h = h.astype(jnp.bfloat16)

    h = pallas_linear(h, *params["enc_fc1"], act="relu")
    h = pallas_linear(h, *params["enc_fc2"], act="relu")
    zp = pallas_linear(h, *params["enc_fc3"], act="none", out_dtype=jnp.float32)

    mu = zp[:, :z_dim]                                       # contiguous after de-interleave
    logsig = zp[:, z_dim:2 * z_dim]
    eps = jax.random.normal(k_eps, (Bp, z_dim), jnp.float32)
    zs = mu + jnp.exp(logsig) * eps                          # q_dist (Normal) reparam sample

    # ---- decode ----
    zs_pad = jnp.pad(zs, ((0, 0), (0, 128 - z_dim))).astype(jnp.bfloat16)
    h = pallas_linear(zs_pad, *params["dec_fc1"], act="tanh")
    h = pallas_linear(h, *params["dec_fc2"], act="tanh")
    h = pallas_linear(h, *params["dec_fc3"], act="tanh")

    # Final linear + Bernoulli sampling fused into the matmul epilogue.
    u = jax.random.uniform(
        k_u, (Bp, 4096), jnp.float32, minval=1e-6, maxval=1.0 - 1e-6
    )
    xs = pallas_linear(h, *params["dec_fc4"], act="none", u=u, out_dtype=jnp.float32)

    return xs[:B].reshape(B, 1, 64, 64)


# ----------------------------------------------------------------------------
if __name__ == "__main__":
    z_dim = 10
    B = 2

    root = jax.random.PRNGKey(0)
    k_param, k_x, k_noise = jax.random.split(root, 3)

    params = init_vae_params(k_param, z_dim)
    # binary-ish image input in [0, 1], NCHW like the PyTorch module expects
    x = (jax.random.uniform(k_x, (B, 1, 64, 64), jnp.float32) > 0.5).astype(
        jnp.float32
    )

    xs = vae_forward(params, x, z_dim, k_noise)
    xs = jax.block_until_ready(xs)

    assert xs.shape == (B, 1, 64, 64)
    assert xs.dtype == jnp.float32
    # Bernoulli samples must be 0/1
    assert bool(jnp.all((xs == 0.0) | (xs == 1.0)))
    print("KERNEL_OK")
</pallas_src>

<mosaic_0001>
module attributes {stable_mosaic.version = 11 : i64} {
  func.func @_linear_kernel(%arg0: i32, %arg1: i32, %arg2: memref<8x2048xbf16, #tpu.memory_space<vmem>>, %arg3: memref<2048x640xbf16, #tpu.memory_space<vmem>>, %arg4: memref<1x640xf32, #tpu.memory_space<vmem>>, %arg5: memref<8x640xbf16, #tpu.memory_space<vmem>>, %arg6: memref<8x640xf32, #tpu.memory_space<vmem>>) attributes {dimension_semantics = [#tpu.dimension_semantics<parallel>, #tpu.dimension_semantics<arbitrary>], iteration_bounds = array<i64: 2, 2>, scalar_prefetch = 0 : i64, scratch_operands = 1 : i64, tpu.core_type = #tpu.core_type<tc>, window_params = [{transform_indices = @transform_0, window_bounds = array<i64: 8, 2048>}, {transform_indices = @transform_1, window_bounds = array<i64: 2048, 640>}, {transform_indices = @transform_2, window_bounds = array<i64: 1, 640>}, {transform_indices = @transform_3, window_bounds = array<i64: 8, 640>}]} {
    %c0_i32 = arith.constant 0 : i32
    %0 = arith.cmpi eq, %arg1, %c0_i32 : i32
    %1 = arith.extui %0 : i1 to i32
    %c0_i32_0 = arith.constant 0 : i32
    %2 = arith.cmpi ne, %1, %c0_i32_0 : i32
    scf.if %2 {
      %cst_9 = arith.constant 0.000000e+00 : f32
      %12 = vector.broadcast %cst_9 : f32 to vector<8x640xf32>
      %c0_10 = arith.constant 0 : index
      %c0_11 = arith.constant 0 : index
      %13 = vector.load %arg6[%c0_10, %c0_11] : memref<8x640xf32, #tpu.memory_space<vmem>>, vector<8x640xf32>
      tpu.vector_store %arg6[%c0_10, %c0_11], %12 {strides = array<i32>} : memref<8x640xf32, #tpu.memory_space<vmem>>, vector<8x640xf32>,
    } else {
    }
    %c0 = arith.constant 0 : index
    %c0_1 = arith.constant 0 : index
    %3 = vector.load %arg6[%c0, %c0_1] : memref<8x640xf32, #tpu.memory_space<vmem>>, vector<8x640xf32>
    %c0_2 = arith.constant 0 : index
    %c0_3 = arith.constant 0 : index
    %4 = vector.load %arg2[%c0_2, %c0_3] : memref<8x2048xbf16, #tpu.memory_space<vmem>>, vector<8x2048xbf16>
    %c0_4 = arith.constant 0 : index
    %c0_5 = arith.constant 0 : index
    %5 = vector.load %arg3[%c0_4, %c0_5] : memref<2048x640xbf16, #tpu.memory_space<vmem>>, vector<2048x640xbf16>
    %cst = arith.constant dense<0.000000e+00> : vector<8x640xf32>
    %6 = tpu.matmul %4, %5, %cst {dimension_numbers = #tpu.dot_dimension_numbers<[1], [0], [0], [1], [0, 0, 1, 1], [], []>} : vector<8x2048xbf16>, vector<2048x640xbf16>, vector<8x640xf32> -> vector<8x640xf32>
    %7 = arith.addf %3, %6 : vector<8x640xf32>
    %c0_6 = arith.constant 0 : index
    %c0_7 = arith.constant 0 : index
    %8 = vector.load %arg6[%c0_6, %c0_7] : memref<8x640xf32, #tpu.memory_space<vmem>>, vector<8x640xf32>
    tpu.vector_store %arg6[%c0_6, %c0_7], %7 {strides = array<i32>} : memref<8x640xf32, #tpu.memory_space<vmem>>, vector<8x640xf32>,
    %c1_i32 = arith.constant 1 : i32
    %9 = arith.cmpi eq, %arg1, %c1_i32 : i32
    %10 = arith.extui %9 : i1 to i32
    %c0_i32_8 = arith.constant 0 : i32
    %11 = arith.cmpi ne, %10, %c0_i32_8 : i32
    scf.if %11 {
      %c0_9 = arith.constant 0 : index
      %c0_10 = arith.constant 0 : index
      %12 = vector.load %arg6[%c0_9, %c0_10] : memref<8x640xf32, #tpu.memory_space<vmem>>, vector<8x640xf32>
      %c0_11 = arith.constant 0 : index
      %c0_12 = arith.constant 0 : index
      %13 = vector.load %arg4[%c0_11, %c0_12] : memref<1x640xf32, #tpu.memory_space<vmem>>, vector<1x640xf32>
      %14 = vector.broadcast %13 : vector<1x640xf32> to vector<8x640xf32>
      %15 = arith.addf %12, %14 : vector<8x640xf32>
      %cst_13 = arith.constant 0.000000e+00 : f32
      %16 = vector.broadcast %cst_13 : f32 to vector<8x640xf32>
      %17 = arith.maximumf %15, %16 : vector<8x640xf32>
      %18 = arith.truncf %17 : vector<8x640xf32> to vector<8x640xbf16>
      %c0_14 = arith.constant 0 : index
      %c0_15 = arith.constant 0 : index
      %19 = vector.load %arg5[%c0_14, %c0_15] : memref<8x640xbf16, #tpu.memory_space<vmem>>, vector<8x640xbf16>
      tpu.vector_store %arg5[%c0_14, %c0_15], %18 {strides = array<i32>} : memref<8x640xbf16, #tpu.memory_space<vmem>>, vector<8x640xbf16>,
    } else {
    }
    return
  }
  func.func @transform_0(%arg0: i32, %arg1: i32) -> (i32, i32) {
    %c0_i32 = arith.constant 0 : i32
    %c0_i32_0 = arith.constant 0 : i32
    return %c0_i32, %arg1 : i32, i32
  }
  func.func @transform_1(%arg0: i32, %arg1: i32) -> (i32, i32) {
    %c0_i32 = arith.constant 0 : i32
    return %arg1, %arg0 : i32, i32
  }
  func.func @transform_2(%arg0: i32, %arg1: i32) -> (i32, i32) {
    %c0_i32 = arith.constant 0 : i32
    %c0_i32_0 = arith.constant 0 : i32
    return %c0_i32, %arg0 : i32, i32
  }
  func.func @transform_3(%arg0: i32, %arg1: i32) -> (i32, i32) {
    %c0_i32 = arith.constant 0 : i32
    %c0_i32_0 = arith.constant 0 : i32
    return %c0_i32, %arg0 : i32, i32
  }
}

</mosaic_0001>

<llo_original>
// kernel: tpu_custom_call.1
$region0: #{tpu_custom_call.1}
  #allocation0 [shape = 'u32[]', space=smem, size = 0x4, offset = 0x4, fixed_abs, tag = 'smem constant byte address 0x4 - core index']
  #allocation1 [shape = 'u32[144,128]{1,0:T(1,128)}', space=vmem, size = 0x12000, scoped, tag = 'internal scratch']
  #allocation2 [shape = 'f32[8,640]{1,0:T(8,128)}', space=vmem, size = 0x5000, scoped, tag = 'scratch operand']
  %s0 = inlined_call_operand.hbm [shape: bf16[8,4096], index: 0, kind: input, shape index: {}]
  %s1 = inlined_call_operand.hbm [shape: bf16[4096,1280], index: 1, kind: input, shape index: {}]
  %s2 = inlined_call_operand.hbm [shape: f32[1,1280], index: 2, kind: input, shape index: {}]
  %s3 = inlined_call_operand.hbm [shape: bf16[8,1280], index: 3, kind: output, shape index: {}]
  %s4 = sld [smem:[#allocation0]]
  $region65: #{tpu_custom_call.1} parent=0
    _
  %s6 = ssub.s32 1, %s4
  %s7 = scalar_select 0, %s6, %s4
  $region1: #{tpu_custom_call.1} parent=0
    #allocation3 [shape = 'u8[65536]{0}', space=vmem, size = 0x10000, scoped, tag = 'input window, operand 0']
    #allocation4 [shape = 's32[2]{0}', space=sflag, size = 0x8, scoped, tag = 'scoped memory for tpu_custom_call.1']
    #allocation5 [shape = 's32[2]{0}', space=sflag, size = 0x8, scoped, tag = 'scoped memory for tpu_custom_call.1']
    #allocation6 [shape = 'u8[5242880]{0}', space=vmem, size = 0x500000, scoped, tag = 'input window, operand 1']
    #allocation7 [shape = 's32[2]{0}', space=sflag, size = 0x8, scoped, tag = 'scoped memory for tpu_custom_call.1']
    #allocation8 [shape = 'u8[5120]{0}', space=vmem, size = 0x1400, scoped, tag = 'input window, operand 2']
    #allocation9 [shape = 'u8[20480]{0}', space=vmem, size = 0x5000, scoped, tag = 'output window, operand 0']
    %8 = vsyncpa [#allocation4], 0
    %s9 = scalar_lea.sflag [#allocation4], 1
    %10 = vsyncpa %s9, 0
    %11 = vsyncpa [#allocation7], 0
    %s12 = scalar_lea.sflag [#allocation7], 1
    %13 = vsyncpa %s12, 0
    %14 = vsyncpa [#allocation5], 0
    %s15 = scalar_lea.sflag [#allocation5], 1
    %16 = vsyncpa %s15, 0
    loop: start=0, step=1, limit=6
    $region2: #{tpu_custom_call.1} parent=1 // loop_pre_header
      _
    $region3: #{tpu_custom_call.1} parent=1 // loop_header
      %s18 = sphi 0, %s22
      %p19 = scmp.ge.s32.totalorder %s18, 6
      %s25 = sphi 0, %s37
      %s26 = sphi 0, %s33
      %s27 = sphi 0, %s25
      %s28 = sphi 0, %s26
      %s29 = sphi 0, %s27
      %s30 = sphi 0, %s28
      %s40 = sphi 0, %s42
      %s43 = sphi 0, %s40
      %s44 = sphi 0, %s43
      %s60 = sphi 0, %s44
      %s68 = sphi 0, %s70
      %s71 = sphi 0, %s68
      %s72 = sphi 0, %s71
      %s88 = sphi 0, %s72
      %s94 = sphi 0, %s96
      %s97 = sphi 0, %s94
      %s98 = sphi 0, %s97
      %s114 = sphi 0, %s98
      %s120 = sphi 0, %s122
      %s123 = sphi 0, %s120
      %s124 = sphi 0, %s123
      %s140 = sphi 0, %s124
    $region4: #{tpu_custom_call.1} parent=1 // loop_header_branch
      %21 = sbr.rel (%p19) target = $region8
    $region5: #{tpu_custom_call.1} parent=1 // loop_body
      %s23 = ssub.s32 %s18, 1
      %s24 = ssub.s32 %s18, 2
      %s31 = sadd.s32 1, %s26
      %p32 = scmp.ge.s32.totalorder %s31, 2
      %s33 = scalar_select %p32, 0, %s31
      %s34 = sadd.s32 1, %s25
      %s35 = scalar_select %p32, %s34, %s25
      %p36 = scmp.ge.s32.totalorder %s35, 2
      %s37 = scalar_select %p36, 0, %s35
      %s38 = ssub.s32 %s26, %s33
      %p39 = scmp.eq.s32.totalorder %s38, 0
      %s41 = sadd.s32 %s40, 1
      %s42 = scalar_select %p39, %s40, %s41
      %p45 = pneg %p39
      %p46 = scmp.eq.s32.totalorder %s18, 3
      %p47 = por %p45, %p46
      %p48 = scmp.ne.s32.totalorder %s40, %s43
      %p49 = scmp.eq.s32.totalorder %s18, 0
      %p50 = por %p48, %p49
      %p51 = scmp.ne.s32.totalorder %s40, %s43
      %p52 = scmp.eq.s32.totalorder %s23, 3
      %p53 = por %p51, %p52
      %p54 = scmp.ne.s32.totalorder %s43, %s44
      %p55 = scmp.eq.s32.totalorder %s23, 0
      %p56 = por %p54, %p55
      %p57 = scmp.ne.s32.totalorder %s43, %s44
      %p58 = scmp.eq.s32.totalorder %s24, 3
      %p59 = por %p57, %p58
      %p61 = scmp.ne.s32.totalorder %s44, %s60
      %p62 = scmp.eq.s32.totalorder %s24, 0
      %p63 = por %p61, %p62
      %s64 = ssub.s32 %s26, %s33
      %s65 = ssub.s32 %s25, %s37
      %s66 = sor.u32 %s64, %s65
      %p67 = scmp.eq.s32.totalorder %s66, 0
      %s69 = sadd.s32 %s68, 1
      %s70 = scalar_select %p67, %s68, %s69
      %p73 = pneg %p67
      %p74 = scmp.eq.s32.totalorder %s18, 3
      %p75 = por %p73, %p74
      %p76 = scmp.ne.s32.totalorder %s68, %s71
      %p77 = scmp.eq.s32.totalorder %s18, 0
      %p78 = por %p76, %p77
      %p79 = scmp.ne.s32.totalorder %s68, %s71
      %p80 = scmp.eq.s32.totalorder %s23, 3
      %p81 = por %p79, %p80
      %p82 = scmp.ne.s32.totalorder %s71, %s72
      %p83 = scmp.eq.s32.totalorder %s23, 0
      %p84 = por %p82, %p83
      %p85 = scmp.ne.s32.totalorder %s71, %s72
      %p86 = scmp.eq.s32.totalorder %s24, 3
      %p87 = por %p85, %p86
      %p89 = scmp.ne.s32.totalorder %s72, %s88
      %p90 = scmp.eq.s32.totalorder %s24, 0
      %p91 = por %p89, %p90
      %s92 = ssub.s32 %s25, %s37
      %p93 = scmp.eq.s32.totalorder %s92, 0
      %s95 = sadd.s32 %s94, 1
      %s96 = scalar_select %p93, %s94, %s95
      %p99 = pneg %p93
      %p100 = scmp.eq.s32.totalorder %s18, 3
      %p101 = por %p99, %p100
      %p102 = scmp.ne.s32.totalorder %s94, %s97
      %p103 = scmp.eq.s32.totalorder %s18, 0
      %p104 = por %p102, %p103
      %p105 = scmp.ne.s32.totalorder %s94, %s97
      %p106 = scmp.eq.s32.totalorder %s23, 3
      %p107 = por %p105, %p106
      %p108 = scmp.ne.s32.totalorder %s97, %s98
      %p109 = scmp.eq.s32.totalorder %s23, 0
      %p110 = por %p108, %p109
      %p111 = scmp.ne.s32.totalorder %s97, %s98
      %p112 = scmp.eq.s32.totalorder %s24, 3
      %p113 = por %p111, %p112
      %p115 = scmp.ne.s32.totalorder %s98, %s114
      %p116 = scmp.eq.s32.totalorder %s24, 0
      %p117 = por %p115, %p116
      %s118 = ssub.s32 %s25, %s37
      %p119 = scmp.eq.s32.totalorder %s118, 0
      %s121 = sadd.s32 %s120, 1
      %s122 = scalar_select %p119, %s120, %s121
      %p125 = pneg %p119
      %p126 = scmp.eq.s32.totalorder %s18, 3
      %p127 = por %p125, %p126
      %p128 = scmp.ne.s32.totalorder %s120, %s123
      %p129 = scmp.eq.s32.totalorder %s18, 0
      %p130 = por %p128, %p129
      %p131 = scmp.ne.s32.totalorder %s120, %s123
      %p132 = scmp.eq.s32.totalorder %s23, 3
      %p133 = por %p131, %p132
      %p134 = scmp.ne.s32.totalorder %s123, %s124
      %p135 = scmp.eq.s32.totalorder %s23, 0
      %p136 = por %p134, %p135
      %p137 = scmp.ne.s32.totalorder %s123, %s124
      %p138 = scmp.eq.s32.totalorder %s24, 3
      %p139 = por %p137, %p138
      %p141 = scmp.ne.s32.totalorder %s124, %s140
      %p142 = scmp.eq.s32.totalorder %s24, 0
      %p143 = por %p141, %p142
      %p144 = scmp.le.s32.totalorder 1, %s18
      %p145 = scmp.lt.s32.totalorder %s18, 5
      %p146 = pnand %p144, %p145
      %p147 = pneg %p146
      // Predicated region
      $region9: #{tpu_custom_call.1} parent=5 // pred_check
        _
      $region10: #{tpu_custom_call.1} parent=5 // pred_check_branch
        %149 = sbr.rel (%p146) target = $region12
      $region11: #{tpu_custom_call.1} parent=5 // pred_region
        %s150 = ssub.s32 %s18, 1
      $region12: #{tpu_custom_call.1} parent=5 // pred_fallthru
        _
      %p151 = scmp.lt.s32.totalorder %s18, 4
      // Predicated region
      $region13: #{tpu_custom_call.1} parent=5 // pred_check
        %p152 = pneg %p151
      $region14: #{tpu_custom_call.1} parent=5 // pred_check_branch
        %154 = sbr.rel (%p152) target = $region16
      $region15: #{tpu_custom_call.1} parent=5 // pred_region
        // Predicated region
        $region17: #{tpu_custom_call.1} parent=15 // pred_check
          %p155 = pneg %p50
        $region18: #{tpu_custom_call.1} parent=15 // pred_check_branch
          %157 = sbr.rel (%p155) target = $region20
        $region19: #{tpu_custom_call.1} parent=15 // pred_region
          %s158 = sand.u32 %s40, 1
          %s159 = scalar_lea.sflag [#allocation4], %s158
          %s160 = sand.u32 %s40, 1
          %s161 = smul.addr %s160, 64
          %s162 = scalar_lea.vmem [#allocation3], %s161
          %s163 = smul.u32 16, %s26
          %s165 = ssub.s32 1024, 1024
          %166 = vsyncadd %s159, %s165
          %s167 = smul.addr %s163, 64
          %s168 = scalar_lea.hbm %s0, %s167
          %s170 = sshll.u32 %s162, 4
          %s171 = int_to_ptr.vmem [resolvable:$true] %s170
          %173 = dma.hbm_to_vmem [thread:$0]  %s168, 1024, %s171, %s159
        $region20: #{tpu_custom_call.1} parent=15 // pred_fallthru
          _
        // Predicated region
        $region21: #{tpu_custom_call.1} parent=15 // pred_check
          %p174 = pneg %p78
        $region22: #{tpu_custom_call.1} parent=15 // pred_check_branch
          %176 = sbr.rel (%p174) target = $region24
        $region23: #{tpu_custom_call.1} parent=15 // pred_region
          %s177 = sand.u32 %s18, 1
          %s178 = scalar_lea.sflag [#allocation7], %s177
          %s179 = sand.u32 %s68, 1
          %s180 = smul.addr %s179, 5120
          %s181 = scalar_lea.vmem [#allocation6], %s180
          %s182 = smul.u32 256, %s26
          %s183 = smul.u32 5, %s25
          %s185 = ssub.s32 81920, 81920
          %186 = vsyncadd %s178, %s185
          %s187 = smul.addr %s182, 10
          %s188 = sadd.s32 %s183, %s187
          %s189 = smul.addr %s188, 64
          %s190 = scalar_lea.hbm %s1, %s189
          %s191 = sshll.u32 %s181, 4
          %s192 = int_to_ptr.vmem [resolvable:$true] %s191
          %197 = dma.hbm_to_vmem [thread:$0]  %s190, 81920, %s192, %s178, 640, 320, 20
        $region24: #{tpu_custom_call.1} parent=15 // pred_fallthru
          _
        // Predicated region
        $region25: #{tpu_custom_call.1} parent=15 // pred_check
          %p198 = pneg %p104
        $region26: #{tpu_custom_call.1} parent=15 // pred_check_branch
          %200 = sbr.rel (%p198) target = $region28
        $region27: #{tpu_custom_call.1} parent=15 // pred_region
          %s201 = sand.u32 %s18, 1
          %s202 = scalar_lea.sflag [#allocation7], %s201
          %s203 = sand.u32 %s94, 1
          %s204 = smul.addr %s203, 5
          %s205 = scalar_lea.vmem [#allocation8], %s204
          %s206 = smul.u32 5, %s25
          %s208 = ssub.s32 80, 80
          %209 = vsyncadd %s202, %s208
          %s210 = smul.addr %s206, 16
          %s211 = scalar_lea.hbm %s2, %s210
          %s213 = sshll.u32 %s205, 4
          %s214 = int_to_ptr.vmem [resolvable:$true] %s213
          %216 = dma.hbm_to_vmem [thread:$0]  %s211, 80, %s214, %s202
        $region28: #{tpu_custom_call.1} parent=15 // pred_fallthru
          _
      $region16: #{tpu_custom_call.1} parent=5 // pred_fallthru
        _
      %p217 = scmp.le.s32.totalorder 1, %s18
      %p218 = scmp.lt.s32.totalorder %s18, 5
      %p219 = pnand %p217, %p218
      %p220 = pneg %p219
      // Predicated region
      $region29: #{tpu_custom_call.1} parent=5 // pred_check
        _
      $region30: #{tpu_custom_call.1} parent=5 // pred_check_branch
        %222 = sbr.rel (%p219) target = $region32
      $region31: #{tpu_custom_call.1} parent=5 // pred_region
        %s223 = ssub.s32 %s18, 1
        %s224 = sand.u32 %s43, 1
        %s225 = scalar_lea.sflag [#allocation4], %s224
        %s226 = sand.u32 %s43, 1
        %s227 = smul.addr %s226, 64
        %s228 = scalar_lea.vmem [#allocation3], %s227
        // Predicated region
        $region33: #{tpu_custom_call.1} parent=31 // pred_check
          %p229 = pneg %p56
        $region34: #{tpu_custom_call.1} parent=31 // pred_check_branch
          %231 = sbr.rel (%p229) target = $region36
        $region35: #{tpu_custom_call.1} parent=31 // pred_region
          %232 = dma.done %s225, 1024
        $region36: #{tpu_custom_call.1} parent=31 // pred_fallthru
          _
        %s233 = sand.u32 %s23, 1
        %s234 = scalar_lea.sflag [#allocation7], %s233
        %s235 = sand.u32 %s71, 1
        %s236 = smul.addr %s235, 5120
        %s237 = scalar_lea.vmem [#allocation6], %s236
        // Predicated region
        $region37: #{tpu_custom_call.1} parent=31 // pred_check
          %p238 = pneg %p84
        $region38: #{tpu_custom_call.1} parent=31 // pred_check_branch
          %240 = sbr.rel (%p238) target = $region40
        $region39: #{tpu_custom_call.1} parent=31 // pred_region
          %241 = dma.done %s234, 81920
        $region40: #{tpu_custom_call.1} parent=31 // pred_fallthru
          _
        %s242 = sand.u32 %s23, 1
        %s243 = scalar_lea.sflag [#allocation7], %s242
        %s244 = sand.u32 %s97, 1
        %s245 = smul.addr %s244, 5
        %s246 = scalar_lea.vmem [#allocation8], %s245
        // Predicated region
        $region41: #{tpu_custom_call.1} parent=31 // pred_check
          %p247 = pneg %p110
        $region42: #{tpu_custom_call.1} parent=31 // pred_check_branch
          %249 = sbr.rel (%p247) target = $region44
        $region43: #{tpu_custom_call.1} parent=31 // pred_region
          %250 = dma.done %s243, 80
        $region44: #{tpu_custom_call.1} parent=31 // pred_fallthru
          _
        %s251 = sand.u32 %s43, 1
        %s252 = scalar_lea.sflag [#allocation4], %s251
        %s253 = sand.u32 %s43, 1
        %s254 = smul.addr %s253, 64
        %s255 = scalar_lea.vmem [#allocation3], %s254
        %p256 = pneg %p56
        %p257 = pneg %p53
        %s258 = sand.u32 %s23, 1
        %s259 = scalar_lea.sflag [#allocation7], %s258
        %s260 = sand.u32 %s71, 1
        %s261 = smul.addr %s260, 5120
        %s262 = scalar_lea.vmem [#allocation6], %s261
        %p263 = pneg %p84
        %p264 = pneg %p81
        %s265 = sand.u32 %s23, 1
        %s266 = scalar_lea.sflag [#allocation7], %s265
        %s267 = sand.u32 %s97, 1
        %s268 = smul.addr %s267, 5
        %s269 = scalar_lea.vmem [#allocation8], %s268
        %p270 = pneg %p110
        %p271 = pneg %p107
        %p272 = pneg %p136
        %p273 = pneg %p133
        %s274 = sand.u32 %s123, 1
        %s275 = scalar_lea.sflag [#allocation5], %s274
        %s276 = sand.u32 %s123, 1
        %s277 = smul.addr %s276, 20
        %s278 = scalar_lea.vmem [#allocation9], %s277
        %s279 = smul.u32 16, %s28
        %s280 = smul.u32 256, %s28
        %s281 = smul.u32 5, %s27
        %s282 = smul.u32 5, %s27
        %s283 = smul.u32 5, %s27
        %p285 = scmp.eq.s32.totalorder %s28, 0
        // Predicated region
        $region45: #{tpu_custom_call.1} parent=31 // pred_check
          %p286 = pneg %p285
        $region46: #{tpu_custom_call.1} parent=31 // pred_check_branch
          %288 = sbr.rel (%p286) target = $region48
        $region47: #{tpu_custom_call.1} parent=31 // pred_region
          %289 = vst [vmem:[#allocation2] sm:$0xff] 0.0
          %290 = vst [vmem:[#allocation2 + $0x8] sm:$0xff] 0.0
          %291 = vst [vmem:[#allocation2 + $0x10] sm:$0xff] 0.0
          %292 = vst [vmem:[#allocation2 + $0x18] sm:$0xff] 0.0
          %293 = vst [vmem:[#allocation2 + $0x20] sm:$0xff] 0.0
        $region48: #{tpu_custom_call.1} parent=31 // pred_fallthru
          _
        %v294 = vld [vmem:[#allocation2] sm:$0xff]
        %v295 = vld [vmem:[#allocation2 + $0x8] sm:$0xff]
        %v296 = vld [vmem:[#allocation2 + $0x10] sm:$0xff]
        %v297 = vld [vmem:[#allocation2 + $0x18] sm:$0xff]
        %v298 = vld [vmem:[#allocation2 + $0x20] sm:$0xff]
        %v299 = vld [vmem:[%s228] sm:$0xff]
        %v300 = vld [vmem:[%s228 + $0x8] sm:$0xff]
        %v301 = vld [vmem:[%s228 + $0x10] sm:$0xff]
        %v302 = vld [vmem:[%s228 + $0x18] sm:$0xff]
        %v303 = vld [vmem:[%s228 + $0x20] sm:$0xff]
        %v304 = vld [vmem:[%s228 + $0x28] sm:$0xff]
        %v305 = vld [vmem:[%s228 + $0x30] sm:$0xff]
        %v306 = vld [vmem:[%s228 + $0x38] sm:$0xff]
        %v307 = vld [vmem:[%s237] sm:$0xff]
        %v308 = vld [vmem:[%s237 + $0x8] sm:$0xff]
        %v309 = vld [vmem:[%s237 + $0x10] sm:$0xf]
        %v310 = vld [vmem:[%s237 + $0x14] sm:$0xff]
        %v311 = vld [vmem:[%s237 + $0x1c] sm:$0xff]
        %v312 = vld [vmem:[%s237 + $0x24] sm:$0xf]
        %v313 = vld [vmem:[%s237 + $0x28] sm:$0xff]
        %v314 = vld [vmem:[%s237 + $0x30] sm:$0xff]
        %v315 = vld [vmem:[%s237 + $0x38] sm:$0xf]
        %v316 = vld [vmem:[%s237 + $0x3c] sm:$0xff]
        %v317 = vld [vmem:[%s237 + $0x44] sm:$0xff]
        %v318 = vld [vmem:[%s237 + $0x4c] sm:$0xf]
        %v319 = vld [vmem:[%s237 + $0x50] sm:$0xff]
        %v320 = vld [vmem:[%s237 + $0x58] sm:$0xff]
        %v321 = vld [vmem:[%s237 + $0x60] sm:$0xf]
        %v322 = vld [vmem:[%s237 + $0x64] sm:$0xff]
        %v323 = vld [vmem:[%s237 + $0x6c] sm:$0xff]
        %v324 = vld [vmem:[%s237 + $0x74] sm:$0xf]
        %v325 = vld [vmem:[%s237 + $0x78] sm:$0xff]
        %v326 = vld [vmem:[%s237 + $0x80] sm:$0xff]
        %v327 = vld [vmem:[%s237 + $0x88] sm:$0xf]
        %v328 = vld [vmem:[%s237 + $0x8c] sm:$0xff]
        %v329 = vld [vmem:[%s237 + $0x94] sm:$0xff]
        %v330 = vld [vmem:[%s237 + $0x9c] sm:$0xf]
        %v331 = vld [vmem:[%s237 + $0xa0] sm:$0xff]
        %v332 = vld [vmem:[%s237 + $0xa8] sm:$0xff]
        %v333 = vld [vmem:[%s237 + $0xb0] sm:$0xf]
        %v334 = vld [vmem:[%s237 + $0xb4] sm:$0xff]
        %v335 = vld [vmem:[%s237 + $0xbc] sm:$0xff]
        %v336 = vld [vmem:[%s237 + $0xc4] sm:$0xf]
        %v337 = vld [vmem:[%s237 + $0xc8] sm:$0xff]
        %v338 = vld [vmem:[%s237 + $0xd0] sm:$0xff]
        %v339 = vld [vmem:[%s237 + $0xd8] sm:$0xf]
        %v340 = vld [vmem:[%s237 + $0xdc] sm:$0xff]
        %v341 = vld [vmem:[%s237 + $0xe4] sm:$0xff]
        %v342 = vld [vmem:[%s237 + $0xec] sm:$0xf]
        %v343 = vld [vmem:[%s237 + $0xf0] sm:$0xff]
        %v344 = vld [vmem:[%s237 + $0xf8] sm:$0xff]
        %v345 = vld [vmem:[%s237 + $0x100] sm:$0xf]
        %v346 = vld [vmem:[%s237 + $0x104] sm:$0xff]
        %v347 = vld [vmem:[%s237 + $0x10c] sm:$0xff]
        %v348 = vld [vmem:[%s237 + $0x114] sm:$0xf]
        %v349 = vld [vmem:[%s237 + $0x118] sm:$0xff]
        %v350 = vld [vmem:[%s237 + $0x120] sm:$0xff]
        %v351 = vld [vmem:[%s237 + $0x128] sm:$0xf]
        %v352 = vld [vmem:[%s237 + $0x12c] sm:$0xff]
        %v353 = vld [vmem:[%s237 + $0x134] sm:$0xff]
        %v354 = vld [vmem:[%s237 + $0x13c] sm:$0xf]
        %v355 = vld [vmem:[%s237 + $0x140] sm:$0xff]
        %v356 = vld [vmem:[%s237 + $0x148] sm:$0xff]
        %v357 = vld [vmem:[%s237 + $0x150] sm:$0xf]
        %v358 = vld [vmem:[%s237 + $0x154] sm:$0xff]
        %v359 = vld [vmem:[%s237 + $0x15c] sm:$0xff]
        %v360 = vld [vmem:[%s237 + $0x164] sm:$0xf]
        %v361 = vld [vmem:[%s237 + $0x168] sm:$0xff]
        %v362 = vld [vmem:[%s237 + $0x170] sm:$0xff]
        %v363 = vld [vmem:[%s237 + $0x178] sm:$0xf]
        %v364 = vld [vmem:[%s237 + $0x17c] sm:$0xff]
        %v365 = vld [vmem:[%s237 + $0x184] sm:$0xff]
        %v366 = vld [vmem:[%s237 + $0x18c] sm:$0xf]
        %v367 = vld [vmem:[%s237 + $0x190] sm:$0xff]
        %v368 = vld [vmem:[%s237 + $0x198] sm:$0xff]
        %v369 = vld [vmem:[%s237 + $0x1a0] sm:$0xf]
        %v370 = vld [vmem:[%s237 + $0x1a4] sm:$0xff]
        %v371 = vld [vmem:[%s237 + $0x1ac] sm:$0xff]
        %v372 = vld [vmem:[%s237 + $0x1b4] sm:$0xf]
        %v373 = vld [vmem:[%s237 + $0x1b8] sm:$0xff]
        %v374 = vld [vmem:[%s237 + $0x1c0] sm:$0xff]
        %v375 = vld [vmem:[%s237 + $0x1c8] sm:$0xf]
        %v376 = vld [vmem:[%s237 + $0x1cc] sm:$0xff]
        %v377 = vld [vmem:[%s237 + $0x1d4] sm:$0xff]
        %v378 = vld [vmem:[%s237 + $0x1dc] sm:$0xf]
        %v379 = vld [vmem:[%s237 + $0x1e0] sm:$0xff]
        %v380 = vld [vmem:[%s237 + $0x1e8] sm:$0xff]
        %v381 = vld [vmem:[%s237 + $0x1f0] sm:$0xf]
        %v382 = vld [vmem:[%s237 + $0x1f4] sm:$0xff]
        %v383 = vld [vmem:[%s237 + $0x1fc] sm:$0xff]
        %v384 = vld [vmem:[%s237 + $0x204] sm:$0xf]
        %v385 = vld [vmem:[%s237 + $0x208] sm:$0xff]
        %v386 = vld [vmem:[%s237 + $0x210] sm:$0xff]
        %v387 = vld [vmem:[%s237 + $0x218] sm:$0xf]
        %v388 = vld [vmem:[%s237 + $0x21c] sm:$0xff]
        %v389 = vld [vmem:[%s237 + $0x224] sm:$0xff]
        %v390 = vld [vmem:[%s237 + $0x22c] sm:$0xf]
        %v391 = vld [vmem:[%s237 + $0x230] sm:$0xff]
        %v392 = vld [vmem:[%s237 + $0x238] sm:$0xff]
        %v393 = vld [vmem:[%s237 + $0x240] sm:$0xf]
        %v394 = vld [vmem:[%s237 + $0x244] sm:$0xff]
        %v395 = vld [vmem:[%s237 + $0x24c] sm:$0xff]
        %v396 = vld [vmem:[%s237 + $0x254] sm:$0xf]
        %v397 = vld [vmem:[%s237 + $0x258] sm:$0xff]
        %v398 = vld [vmem:[%s237 + $0x260] sm:$0xff]
        %v399 = vld [vmem:[%s237 + $0x268] sm:$0xf]
        %v400 = vld [vmem:[%s237 + $0x26c] sm:$0xff]
        %v401 = vld [vmem:[%s237 + $0x274] sm:$0xff]
        %v402 = vld [vmem:[%s237 + $0x27c] sm:$0xf]
        %v403 = vld [vmem:[%s237 + $0x280] sm:$0xff]
        %v404 = vld [vmem:[%s237 + $0x288] sm:$0xff]
        %v405 = vld [vmem:[%s237 + $0x290] sm:$0xf]
        %v406 = vld [vmem:[%s237 + $0x294] sm:$0xff]
        %v407 = vld [vmem:[%s237 + $0x29c] sm:$0xff]
        %v408 = vld [vmem:[%s237 + $0x2a4] sm:$0xf]
        %v409 = vld [vmem:[%s237 + $0x2a8] sm:$0xff]
        %v410 = vld [vmem:[%s237 + $0x2b0] sm:$0xff]
        %v411 = vld [vmem:[%s237 + $0x2b8] sm:$0xf]
        %v412 = vld [vmem:[%s237 + $0x2bc] sm:$0xff]
        %v413 = vld [vmem:[%s237 + $0x2c4] sm:$0xff]
        %v414 = vld [vmem:[%s237 + $0x2cc] sm:$0xf]
        %v415 = vld [vmem:[%s237 + $0x2d0] sm:$0xff]
        %v416 = vld [vmem:[%s237 + $0x2d8] sm:$0xff]
        %v417 = vld [vmem:[%s237 + $0x2e0] sm:$0xf]
        %v418 = vld [vmem:[%s237 + $0x2e4] sm:$0xff]
        %v419 = vld [vmem:[%s237 + $0x2ec] sm:$0xff]
        %v420 = vld [vmem:[%s237 + $0x2f4] sm:$0xf]
        %v421 = vld [vmem:[%s237 + $0x2f8] sm:$0xff]
        %v422 = vld [vmem:[%s237 + $0x300] sm:$0xff]
        %v423 = vld [vmem:[%s237 + $0x308] sm:$0xf]
        %v424 = vld [vmem:[%s237 + $0x30c] sm:$0xff]
        %v425 = vld [vmem:[%s237 + $0x314] sm:$0xff]
        %v426 = vld [vmem:[%s237 + $0x31c] sm:$0xf]
        %v427 = vld [vmem:[%s237 + $0x320] sm:$0xff]
        %v428 = vld [vmem:[%s237 + $0x328] sm:$0xff]
        %v429 = vld [vmem:[%s237 + $0x330] sm:$0xf]
        %v430 = vld [vmem:[%s237 + $0x334] sm:$0xff]
        %v431 = vld [vmem:[%s237 + $0x33c] sm:$0xff]
        %v432 = vld [vmem:[%s237 + $0x344] sm:$0xf]
        %v433 = vld [vmem:[%s237 + $0x348] sm:$0xff]
        %v434 = vld [vmem:[%s237 + $0x350] sm:$0xff]
        %v435 = vld [vmem:[%s237 + $0x358] sm:$0xf]
        %v436 = vld [vmem:[%s237 + $0x35c] sm:$0xff]
        %v437 = vld [vmem:[%s237 + $0x364] sm:$0xff]
        %v438 = vld [vmem:[%s237 + $0x36c] sm:$0xf]
        %v439 = vld [vmem:[%s237 + $0x370] sm:$0xff]
        %v440 = vld [vmem:[%s237 + $0x378] sm:$0xff]
        %v441 = vld [vmem:[%s237 + $0x380] sm:$0xf]
        %v442 = vld [vmem:[%s237 + $0x384] sm:$0xff]
        %v443 = vld [vmem:[%s237 + $0x38c] sm:$0xff]
        %v444 = vld [vmem:[%s237 + $0x394] sm:$0xf]
        %v445 = vld [vmem:[%s237 + $0x398] sm:$0xff]
        %v446 = vld [vmem:[%s237 + $0x3a0] sm:$0xff]
        %v447 = vld [vmem:[%s237 + $0x3a8] sm:$0xf]
        %v448 = vld [vmem:[%s237 + $0x3ac] sm:$0xff]
        %v449 = vld [vmem:[%s237 + $0x3b4] sm:$0xff]
        %v450 = vld [vmem:[%s237 + $0x3bc] sm:$0xf]
        %v451 = vld [vmem:[%s237 + $0x3c0] sm:$0xff]
        %v452 = vld [vmem:[%s237 + $0x3c8] sm:$0xff]
        %v453 = vld [vmem:[%s237 + $0x3d0] sm:$0xf]
        %v454 = vld [vmem:[%s237 + $0x3d4] sm:$0xff]
        %v455 = vld [vmem:[%s237 + $0x3dc] sm:$0xff]
        %v456 = vld [vmem:[%s237 + $0x3e4] sm:$0xf]
        %v457 = vld [vmem:[%s237 + $0x3e8] sm:$0xff]
        %v458 = vld [vmem:[%s237 + $0x3f0] sm:$0xff]
        %v459 = vld [vmem:[%s237 + $0x3f8] sm:$0xf]
        %v460 = vld [vmem:[%s237 + $0x3fc] sm:$0xff]
        %v461 = vld [vmem:[%s237 + $0x404] sm:$0xff]
        %v462 = vld [vmem:[%s237 + $0x40c] sm:$0xf]
        %v463 = vld [vmem:[%s237 + $0x410] sm:$0xff]
        %v464 = vld [vmem:[%s237 + $0x418] sm:$0xff]
        %v465 = vld [vmem:[%s237 + $0x420] sm:$0xf]
        %v466 = vld [vmem:[%s237 + $0x424] sm:$0xff]
        %v467 = vld [vmem:[%s237 + $0x42c] sm:$0xff]
        %v468 = vld [vmem:[%s237 + $0x434] sm:$0xf]
        %v469 = vld [vmem:[%s237 + $0x438] sm:$0xff]
        %v470 = vld [vmem:[%s237 + $0x440] sm:$0xff]
        %v471 = vld [vmem:[%s237 + $0x448] sm:$0xf]
        %v472 = vld [vmem:[%s237 + $0x44c] sm:$0xff]
        %v473 = vld [vmem:[%s237 + $0x454] sm:$0xff]
        %v474 = vld [vmem:[%s237 + $0x45c] sm:$0xf]
        %v475 = vld [vmem:[%s237 + $0x460] sm:$0xff]
        %v476 = vld [vmem:[%s237 + $0x468] sm:$0xff]
        %v477 = vld [vmem:[%s237 + $0x470] sm:$0xf]
        %v478 = vld [vmem:[%s237 + $0x474] sm:$0xff]
        %v479 = vld [vmem:[%s237 + $0x47c] sm:$0xff]
        %v480 = vld [vmem:[%s237 + $0x484] sm:$0xf]
        %v481 = vld [vmem:[%s237 + $0x488] sm:$0xff]
        %v482 = vld [vmem:[%s237 + $0x490] sm:$0xff]
        %v483 = vld [vmem:[%s237 + $0x498] sm:$0xf]
        %v484 = vld [vmem:[%s237 + $0x49c] sm:$0xff]
        %v485 = vld [vmem:[%s237 + $0x4a4] sm:$0xff]
        %v486 = vld [vmem:[%s237 + $0x4ac] sm:$0xf]
        %v487 = vld [vmem:[%s237 + $0x4b0] sm:$0xff]
        %v488 = vld [vmem:[%s237 + $0x4b8] sm:$0xff]
        %v489 = vld [vmem:[%s237 + $0x4c0] sm:$0xf]
        %v490 = vld [vmem:[%s237 + $0x4c4] sm:$0xff]
        %v491 = vld [vmem:[%s237 + $0x4cc] sm:$0xff]
        %v492 = vld [vmem:[%s237 + $0x4d4] sm:$0xf]
        %v493 = vld [vmem:[%s237 + $0x4d8] sm:$0xff]
        %v494 = vld [vmem:[%s237 + $0x4e0] sm:$0xff]
        %v495 = vld [vmem:[%s237 + $0x4e8] sm:$0xf]
        %v496 = vld [vmem:[%s237 + $0x4ec] sm:$0xff]
        %v497 = vld [vmem:[%s237 + $0x4f4] sm:$0xff]
        %v498 = vld [vmem:[%s237 + $0x4fc] sm:$0xf]
        %v499 = vld [vmem:[%s237 + $0x500] sm:$0xff]
        %v500 = vld [vmem:[%s237 + $0x508] sm:$0xff]
        %v501 = vld [vmem:[%s237 + $0x510] sm:$0xf]
        %v502 = vld [vmem:[%s237 + $0x514] sm:$0xff]
        %v503 = vld [vmem:[%s237 + $0x51c] sm:$0xff]
        %v504 = vld [vmem:[%s237 + $0x524] sm:$0xf]
        %v505 = vld [vmem:[%s237 + $0x528] sm:$0xff]
        %v506 = vld [vmem:[%s237 + $0x530] sm:$0xff]
        %v507 = vld [vmem:[%s237 + $0x538] sm:$0xf]
        %v508 = vld [vmem:[%s237 + $0x53c] sm:$0xff]
        %v509 = vld [vmem:[%s237 + $0x544] sm:$0xff]
        %v510 = vld [vmem:[%s237 + $0x54c] sm:$0xf]
        %v511 = vld [vmem:[%s237 + $0x550] sm:$0xff]
        %v512 = vld [vmem:[%s237 + $0x558] sm:$0xff]
        %v513 = vld [vmem:[%s237 + $0x560] sm:$0xf]
        %v514 = vld [vmem:[%s237 + $0x564] sm:$0xff]
        %v515 = vld [vmem:[%s237 + $0x56c] sm:$0xff]
        %v516 = vld [vmem:[%s237 + $0x574] sm:$0xf]
        %v517 = vld [vmem:[%s237 + $0x578] sm:$0xff]
        %v518 = vld [vmem:[%s237 + $0x580] sm:$0xff]
        %v519 = vld [vmem:[%s237 + $0x588] sm:$0xf]
        %v520 = vld [vmem:[%s237 + $0x58c] sm:$0xff]
        %v521 = vld [vmem:[%s237 + $0x594] sm:$0xff]
        %v522 = vld [vmem:[%s237 + $0x59c] sm:$0xf]
        %v523 = vld [vmem:[%s237 + $0x5a0] sm:$0xff]
        %v524 = vld [vmem:[%s237 + $0x5a8] sm:$0xff]
        %v525 = vld [vmem:[%s237 + $0x5b0] sm:$0xf]
        %v526 = vld [vmem:[%s237 + $0x5b4] sm:$0xff]
        %v527 = vld [vmem:[%s237 + $0x5bc] sm:$0xff]
        %v528 = vld [vmem:[%s237 + $0x5c4] sm:$0xf]
        %v529 = vld [vmem:[%s237 + $0x5c8] sm:$0xff]
        %v530 = vld [vmem:[%s237 + $0x5d0] sm:$0xff]
        %v531 = vld [vmem:[%s237 + $0x5d8] sm:$0xf]
        %v532 = vld [vmem:[%s237 + $0x5dc] sm:$0xff]
        %v533 = vld [vmem:[%s237 + $0x5e4] sm:$0xff]
        %v534 = vld [vmem:[%s237 + $0x5ec] sm:$0xf]
        %v535 = vld [vmem:[%s237 + $0x5f0] sm:$0xff]
        %v536 = vld [vmem:[%s237 + $0x5f8] sm:$0xff]
        %v537 = vld [vmem:[%s237 + $0x600] sm:$0xf]
        %v538 = vld [vmem:[%s237 + $0x604] sm:$0xff]
        %v539 = vld [vmem:[%s237 + $0x60c] sm:$0xff]
        %v540 = vld [vmem:[%s237 + $0x614] sm:$0xf]
        %v541 = vld [vmem:[%s237 + $0x618] sm:$0xff]
        %v542 = vld [vmem:[%s237 + $0x620] sm:$0xff]
        %v543 = vld [vmem:[%s237 + $0x628] sm:$0xf]
        %v544 = vld [vmem:[%s237 + $0x62c] sm:$0xff]
        %v545 = vld [vmem:[%s237 + $0x634] sm:$0xff]
        %v546 = vld [vmem:[%s237 + $0x63c] sm:$0xf]
        %v547 = vld [vmem:[%s237 + $0x640] sm:$0xff]
        %v548 = vld [vmem:[%s237 + $0x648] sm:$0xff]
        %v549 = vld [vmem:[%s237 + $0x650] sm:$0xf]
        %v550 = vld [vmem:[%s237 + $0x654] sm:$0xff]
        %v551 = vld [vmem:[%s237 + $0x65c] sm:$0xff]
        %v552 = vld [vmem:[%s237 + $0x664] sm:$0xf]
        %v553 = vld [vmem:[%s237 + $0x668] sm:$0xff]
        %v554 = vld [vmem:[%s237 + $0x670] sm:$0xff]
        %v555 = vld [vmem:[%s237 + $0x678] sm:$0xf]
        %v556 = vld [vmem:[%s237 + $0x67c] sm:$0xff]
        %v557 = vld [vmem:[%s237 + $0x684] sm:$0xff]
        %v558 = vld [vmem:[%s237 + $0x68c] sm:$0xf]
        %v559 = vld [vmem:[%s237 + $0x690] sm:$0xff]
        %v560 = vld [vmem:[%s237 + $0x698] sm:$0xff]
        %v561 = vld [vmem:[%s237 + $0x6a0] sm:$0xf]
        %v562 = vld [vmem:[%s237 + $0x6a4] sm:$0xff]
        %v563 = vld [vmem:[%s237 + $0x6ac] sm:$0xff]
        %v564 = vld [vmem:[%s237 + $0x6b4] sm:$0xf]
        %v565 = vld [vmem:[%s237 + $0x6b8] sm:$0xff]
        %v566 = vld [vmem:[%s237 + $0x6c0] sm:$0xff]
        %v567 = vld [vmem:[%s237 + $0x6c8] sm:$0xf]
        %v568 = vld [vmem:[%s237 + $0x6cc] sm:$0xff]
        %v569 = vld [vmem:[%s237 + $0x6d4] sm:$0xff]
        %v570 = vld [vmem:[%s237 + $0x6dc] sm:$0xf]
        %v571 = vld [vmem:[%s237 + $0x6e0] sm:$0xff]
        %v572 = vld [vmem:[%s237 + $0x6e8] sm:$0xff]
        %v573 = vld [vmem:[%s237 + $0x6f0] sm:$0xf]
        %v574 = vld [vmem:[%s237 + $0x6f4] sm:$0xff]
        %v575 = vld [vmem:[%s237 + $0x6fc] sm:$0xff]
        %v576 = vld [vmem:[%s237 + $0x704] sm:$0xf]
        %v577 = vld [vmem:[%s237 + $0x708] sm:$0xff]
        %v578 = vld [vmem:[%s237 + $0x710] sm:$0xff]
        %v579 = vld [vmem:[%s237 + $0x718] sm:$0xf]
        %v580 = vld [vmem:[%s237 + $0x71c] sm:$0xff]
        %v581 = vld [vmem:[%s237 + $0x724] sm:$0xff]
        %v582 = vld [vmem:[%s237 + $0x72c] sm:$0xf]
        %v583 = vld [vmem:[%s237 + $0x730] sm:$0xff]
        %v584 = vld [vmem:[%s237 + $0x738] sm:$0xff]
        %v585 = vld [vmem:[%s237 + $0x740] sm:$0xf]
        %v586 = vld [vmem:[%s237 + $0x744] sm:$0xff]
        %v587 = vld [vmem:[%s237 + $0x74c] sm:$0xff]
        %v588 = vld [vmem:[%s237 + $0x754] sm:$0xf]
        %v589 = vld [vmem:[%s237 + $0x758] sm:$0xff]
        %v590 = vld [vmem:[%s237 + $0x760] sm:$0xff]
        %v591 = vld [vmem:[%s237 + $0x768] sm:$0xf]
        %v592 = vld [vmem:[%s237 + $0x76c] sm:$0xff]
        %v593 = vld [vmem:[%s237 + $0x774] sm:$0xff]
        %v594 = vld [vmem:[%s237 + $0x77c] sm:$0xf]
        %v595 = vld [vmem:[%s237 + $0x780] sm:$0xff]
        %v596 = vld [vmem:[%s237 + $0x788] sm:$0xff]
        %v597 = vld [vmem:[%s237 + $0x790] sm:$0xf]
        %v598 = vld [vmem:[%s237 + $0x794] sm:$0xff]
        %v599 = vld [vmem:[%s237 + $0x79c] sm:$0xff]
        %v600 = vld [vmem:[%s237 + $0x7a4] sm:$0xf]
        %v601 = vld [vmem:[%s237 + $0x7a8] sm:$0xff]
        %v602 = vld [vmem:[%s237 + $0x7b0] sm:$0xff]
        %v603 = vld [vmem:[%s237 + $0x7b8] sm:$0xf]
        %v604 = vld [vmem:[%s237 + $0x7bc] sm:$0xff]
        %v605 = vld [vmem:[%s237 + $0x7c4] sm:$0xff]
        %v606 = vld [vmem:[%s237 + $0x7cc] sm:$0xf]
        %v607 = vld [vmem:[%s237 + $0x7d0] sm:$0xff]
        %v608 = vld [vmem:[%s237 + $0x7d8] sm:$0xff]
        %v609 = vld [vmem:[%s237 + $0x7e0] sm:$0xf]
        %v610 = vld [vmem:[%s237 + $0x7e4] sm:$0xff]
        %v611 = vld [vmem:[%s237 + $0x7ec] sm:$0xff]
        %v612 = vld [vmem:[%s237 + $0x7f4] sm:$0xf]
        %v613 = vld [vmem:[%s237 + $0x7f8] sm:$0xff]
        %v614 = vld [vmem:[%s237 + $0x800] sm:$0xff]
        %v615 = vld [vmem:[%s237 + $0x808] sm:$0xf]
        %v616 = vld [vmem:[%s237 + $0x80c] sm:$0xff]
        %v617 = vld [vmem:[%s237 + $0x814] sm:$0xff]
        %v618 = vld [vmem:[%s237 + $0x81c] sm:$0xf]
        %v619 = vld [vmem:[%s237 + $0x820] sm:$0xff]
        %v620 = vld [vmem:[%s237 + $0x828] sm:$0xff]
        %v621 = vld [vmem:[%s237 + $0x830] sm:$0xf]
        %v622 = vld [vmem:[%s237 + $0x834] sm:$0xff]
        %v623 = vld [vmem:[%s237 + $0x83c] sm:$0xff]
        %v624 = vld [vmem:[%s237 + $0x844] sm:$0xf]
        %v625 = vld [vmem:[%s237 + $0x848] sm:$0xff]
        %v626 = vld [vmem:[%s237 + $0x850] sm:$0xff]
        %v627 = vld [vmem:[%s237 + $0x858] sm:$0xf]
        %v628 = vld [vmem:[%s237 + $0x85c] sm:$0xff]
        %v629 = vld [vmem:[%s237 + $0x864] sm:$0xff]
        %v630 = vld [vmem:[%s237 + $0x86c] sm:$0xf]
        %v631 = vld [vmem:[%s237 + $0x870] sm:$0xff]
        %v632 = vld [vmem:[%s237 + $0x878] sm:$0xff]
        %v633 = vld [vmem:[%s237 + $0x880] sm:$0xf]
        %v634 = vld [vmem:[%s237 + $0x884] sm:$0xff]
        %v635 = vld [vmem:[%s237 + $0x88c] sm:$0xff]
        %v636 = vld [vmem:[%s237 + $0x894] sm:$0xf]
        %v637 = vld [vmem:[%s237 + $0x898] sm:$0xff]
        %v638 = vld [vmem:[%s237 + $0x8a0] sm:$0xff]
        %v639 = vld [vmem:[%s237 + $0x8a8] sm:$0xf]
        %v640 = vld [vmem:[%s237 + $0x8ac] sm:$0xff]
        %v641 = vld [vmem:[%s237 + $0x8b4] sm:$0xff]
        %v642 = vld [vmem:[%s237 + $0x8bc] sm:$0xf]
        %v643 = vld [vmem:[%s237 + $0x8c0] sm:$0xff]
        %v644 = vld [vmem:[%s237 + $0x8c8] sm:$0xff]
        %v645 = vld [vmem:[%s237 + $0x8d0] sm:$0xf]
        %v646 = vld [vmem:[%s237 + $0x8d4] sm:$0xff]
        %v647 = vld [vmem:[%s237 + $0x8dc] sm:$0xff]
        %v648 = vld [vmem:[%s237 + $0x8e4] sm:$0xf]
        %v649 = vld [vmem:[%s237 + $0x8e8] sm:$0xff]
        %v650 = vld [vmem:[%s237 + $0x8f0] sm:$0xff]
        %v651 = vld [vmem:[%s237 + $0x8f8] sm:$0xf]
        %v652 = vld [vmem:[%s237 + $0x8fc] sm:$0xff]
        %v653 = vld [vmem:[%s237 + $0x904] sm:$0xff]
        %v654 = vld [vmem:[%s237 + $0x90c] sm:$0xf]
        %v655 = vld [vmem:[%s237 + $0x910] sm:$0xff]
        %v656 = vld [vmem:[%s237 + $0x918] sm:$0xff]
        %v657 = vld [vmem:[%s237 + $0x920] sm:$0xf]
        %v658 = vld [vmem:[%s237 + $0x924] sm:$0xff]
        %v659 = vld [vmem:[%s237 + $0x92c] sm:$0xff]
        %v660 = vld [vmem:[%s237 + $0x934] sm:$0xf]
        %v661 = vld [vmem:[%s237 + $0x938] sm:$0xff]
        %v662 = vld [vmem:[%s237 + $0x940] sm:$0xff]
        %v663 = vld [vmem:[%s237 + $0x948] sm:$0xf]
        %v664 = vld [vmem:[%s237 + $0x94c] sm:$0xff]
        %v665 = vld [vmem:[%s237 + $0x954] sm:$0xff]
        %v666 = vld [vmem:[%s237 + $0x95c] sm:$0xf]
        %v667 = vld [vmem:[%s237 + $0x960] sm:$0xff]
        %v668 = vld [vmem:[%s237 + $0x968] sm:$0xff]
        %v669 = vld [vmem:[%s237 + $0x970] sm:$0xf]
        %v670 = vld [vmem:[%s237 + $0x974] sm:$0xff]
        %v671 = vld [vmem:[%s237 + $0x97c] sm:$0xff]
        %v672 = vld [vmem:[%s237 + $0x984] sm:$0xf]
        %v673 = vld [vmem:[%s237 + $0x988] sm:$0xff]
        %v674 = vld [vmem:[%s237 + $0x990] sm:$0xff]
        %v675 = vld [vmem:[%s237 + $0x998] sm:$0xf]
        %v676 = vld [vmem:[%s237 + $0x99c] sm:$0xff]
        %v677 = vld [vmem:[%s237 + $0x9a4] sm:$0xff]
        %v678 = vld [vmem:[%s237 + $0x9ac] sm:$0xf]
        %v679 = vld [vmem:[%s237 + $0x9b0] sm:$0xff]
        %v680 = vld [vmem:[%s237 + $0x9b8] sm:$0xff]
        %v681 = vld [vmem:[%s237 + $0x9c0] sm:$0xf]
        %v682 = vld [vmem:[%s237 + $0x9c4] sm:$0xff]
        %v683 = vld [vmem:[%s237 + $0x9cc] sm:$0xff]
        %v684 = vld [vmem:[%s237 + $0x9d4] sm:$0xf]
        %v685 = vld [vmem:[%s237 + $0x9d8] sm:$0xff]
        %v686 = vld [vmem:[%s237 + $0x9e0] sm:$0xff]
        %v687 = vld [vmem:[%s237 + $0x9e8] sm:$0xf]
        %v688 = vld [vmem:[%s237 + $0x9ec] sm:$0xff]
        %v689 = vld [vmem:[%s237 + $0x9f4] sm:$0xff]
        %v690 = vld [vmem:[%s237 + $0x9fc] sm:$0xf]
        %v691 = vld [vmem:[%s237 + $0xa00] sm:$0xff]
        %v692 = vld [vmem:[%s237 + $0xa08] sm:$0xff]
        %v693 = vld [vmem:[%s237 + $0xa10] sm:$0xf]
        %v694 = vld [vmem:[%s237 + $0xa14] sm:$0xff]
        %v695 = vld [vmem:[%s237 + $0xa1c] sm:$0xff]
        %v696 = vld [vmem:[%s237 + $0xa24] sm:$0xf]
        %v697 = vld [vmem:[%s237 + $0xa28] sm:$0xff]
        %v698 = vld [vmem:[%s237 + $0xa30] sm:$0xff]
        %v699 = vld [vmem:[%s237 + $0xa38] sm:$0xf]
        %v700 = vld [vmem:[%s237 + $0xa3c] sm:$0xff]
        %v701 = vld [vmem:[%s237 + $0xa44] sm:$0xff]
        %v702 = vld [vmem:[%s237 + $0xa4c] sm:$0xf]
        %v703 = vld [vmem:[%s237 + $0xa50] sm:$0xff]
        %v704 = vld [vmem:[%s237 + $0xa58] sm:$0xff]
        %v705 = vld [vmem:[%s237 + $0xa60] sm:$0xf]
        %v706 = vld [vmem:[%s237 + $0xa64] sm:$0xff]
        %v707 = vld [vmem:[%s237 + $0xa6c] sm:$0xff]
        %v708 = vld [vmem:[%s237 + $0xa74] sm:$0xf]
        %v709 = vld [vmem:[%s237 + $0xa78] sm:$0xff]
        %v710 = vld [vmem:[%s237 + $0xa80] sm:$0xff]
        %v711 = vld [vmem:[%s237 + $0xa88] sm:$0xf]
        %v712 = vld [vmem:[%s237 + $0xa8c] sm:$0xff]
        %v713 = vld [vmem:[%s237 + $0xa94] sm:$0xff]
        %v714 = vld [vmem:[%s237 + $0xa9c] sm:$0xf]
        %v715 = vld [vmem:[%s237 + $0xaa0] sm:$0xff]
        %v716 = vld [vmem:[%s237 + $0xaa8] sm:$0xff]
        %v717 = vld [vmem:[%s237 + $0xab0] sm:$0xf]
        %v718 = vld [vmem:[%s237 + $0xab4] sm:$0xff]
        %v719 = vld [vmem:[%s237 + $0xabc] sm:$0xff]
        %v720 = vld [vmem:[%s237 + $0xac4] sm:$0xf]
        %v721 = vld [vmem:[%s237 + $0xac8] sm:$0xff]
        %v722 = vld [vmem:[%s237 + $0xad0] sm:$0xff]
        %v723 = vld [vmem:[%s237 + $0xad8] sm:$0xf]
        %v724 = vld [vmem:[%s237 + $0xadc] sm:$0xff]
        %v725 = vld [vmem:[%s237 + $0xae4] sm:$0xff]
        %v726 = vld [vmem:[%s237 + $0xaec] sm:$0xf]
        %v727 = vld [vmem:[%s237 + $0xaf0] sm:$0xff]
        %v728 = vld [vmem:[%s237 + $0xaf8] sm:$0xff]
        %v729 = vld [vmem:[%s237 + $0xb00] sm:$0xf]
        %v730 = vld [vmem:[%s237 + $0xb04] sm:$0xff]
        %v731 = vld [vmem:[%s237 + $0xb0c] sm:$0xff]
        %v732 = vld [vmem:[%s237 + $0xb14] sm:$0xf]
        %v733 = vld [vmem:[%s237 + $0xb18] sm:$0xff]
        %v734 = vld [vmem:[%s237 + $0xb20] sm:$0xff]
        %v735 = vld [vmem:[%s237 + $0xb28] sm:$0xf]
        %v736 = vld [vmem:[%s237 + $0xb2c] sm:$0xff]
        %v737 = vld [vmem:[%s237 + $0xb34] sm:$0xff]
        %v738 = vld [vmem:[%s237 + $0xb3c] sm:$0xf]
        %v739 = vld [vmem:[%s237 + $0xb40] sm:$0xff]
        %v740 = vld [vmem:[%s237 + $0xb48] sm:$0xff]
        %v741 = vld [vmem:[%s237 + $0xb50] sm:$0xf]
        %v742 = vld [vmem:[%s237 + $0xb54] sm:$0xff]
        %v743 = vld [vmem:[%s237 + $0xb5c] sm:$0xff]
        %v744 = vld [vmem:[%s237 + $0xb64] sm:$0xf]
        %v745 = vld [vmem:[%s237 + $0xb68] sm:$0xff]
        %v746 = vld [vmem:[%s237 + $0xb70] sm:$0xff]
        %v747 = vld [vmem:[%s237 + $0xb78] sm:$0xf]
        %v748 = vld [vmem:[%s237 + $0xb7c] sm:$0xff]
        %v749 = vld [vmem:[%s237 + $0xb84] sm:$0xff]
        %v750 = vld [vmem:[%s237 + $0xb8c] sm:$0xf]
        %v751 = vld [vmem:[%s237 + $0xb90] sm:$0xff]
        %v752 = vld [vmem:[%s237 + $0xb98] sm:$0xff]
        %v753 = vld [vmem:[%s237 + $0xba0] sm:$0xf]
        %v754 = vld [vmem:[%s237 + $0xba4] sm:$0xff]
        %v755 = vld [vmem:[%s237 + $0xbac] sm:$0xff]
        %v756 = vld [vmem:[%s237 + $0xbb4] sm:$0xf]
        %v757 = vld [vmem:[%s237 + $0xbb8] sm:$0xff]
        %v758 = vld [vmem:[%s237 + $0xbc0] sm:$0xff]
        %v759 = vld [vmem:[%s237 + $0xbc8] sm:$0xf]
        %v760 = vld [vmem:[%s237 + $0xbcc] sm:$0xff]
        %v761 = vld [vmem:[%s237 + $0xbd4] sm:$0xff]
        %v762 = vld [vmem:[%s237 + $0xbdc] sm:$0xf]
        %v763 = vld [vmem:[%s237 + $0xbe0] sm:$0xff]
        %v764 = vld [vmem:[%s237 + $0xbe8] sm:$0xff]
        %v765 = vld [vmem:[%s237 + $0xbf0] sm:$0xf]
        %v766 = vld [vmem:[%s237 + $0xbf4] sm:$0xff]
        %v767 = vld [vmem:[%s237 + $0xbfc] sm:$0xff]
        %v768 = vld [vmem:[%s237 + $0xc04] sm:$0xf]
        %v769 = vld [vmem:[%s237 + $0xc08] sm:$0xff]
        %v770 = vld [vmem:[%s237 + $0xc10] sm:$0xff]
        %v771 = vld [vmem:[%s237 + $0xc18] sm:$0xf]
        %v772 = vld [vmem:[%s237 + $0xc1c] sm:$0xff]
        %v773 = vld [vmem:[%s237 + $0xc24] sm:$0xff]
        %v774 = vld [vmem:[%s237 + $0xc2c] sm:$0xf]
        %v775 = vld [vmem:[%s237 + $0xc30] sm:$0xff]
        %v776 = vld [vmem:[%s237 + $0xc38] sm:$0xff]
        %v777 = vld [vmem:[%s237 + $0xc40] sm:$0xf]
        %v778 = vld [vmem:[%s237 + $0xc44] sm:$0xff]
        %v779 = vld [vmem:[%s237 + $0xc4c] sm:$0xff]
        %v780 = vld [vmem:[%s237 + $0xc54] sm:$0xf]
        %v781 = vld [vmem:[%s237 + $0xc58] sm:$0xff]
        %v782 = vld [vmem:[%s237 + $0xc60] sm:$0xff]
        %v783 = vld [vmem:[%s237 + $0xc68] sm:$0xf]
        %v784 = vld [vmem:[%s237 + $0xc6c] sm:$0xff]
        %v785 = vld [vmem:[%s237 + $0xc74] sm:$0xff]
        %v786 = vld [vmem:[%s237 + $0xc7c] sm:$0xf]
        %v787 = vld [vmem:[%s237 + $0xc80] sm:$0xff]
        %v788 = vld [vmem:[%s237 + $0xc88] sm:$0xff]
        %v789 = vld [vmem:[%s237 + $0xc90] sm:$0xf]
        %v790 = vld [vmem:[%s237 + $0xc94] sm:$0xff]
        %v791 = vld [vmem:[%s237 + $0xc9c] sm:$0xff]
        %v792 = vld [vmem:[%s237 + $0xca4] sm:$0xf]
        %v793 = vld [vmem:[%s237 + $0xca8] sm:$0xff]
        %v794 = vld [vmem:[%s237 + $0xcb0] sm:$0xff]
        %v795 = vld [vmem:[%s237 + $0xcb8] sm:$0xf]
        %v796 = vld [vmem:[%s237 + $0xcbc] sm:$0xff]
        %v797 = vld [vmem:[%s237 + $0xcc4] sm:$0xff]
        %v798 = vld [vmem:[%s237 + $0xccc] sm:$0xf]
        %v799 = vld [vmem:[%s237 + $0xcd0] sm:$0xff]
        %v800 = vld [vmem:[%s237 + $0xcd8] sm:$0xff]
        %v801 = vld [vmem:[%s237 + $0xce0] sm:$0xf]
        %v802 = vld [vmem:[%s237 + $0xce4] sm:$0xff]
        %v803 = vld [vmem:[%s237 + $0xcec] sm:$0xff]
        %v804 = vld [vmem:[%s237 + $0xcf4] sm:$0xf]
        %v805 = vld [vmem:[%s237 + $0xcf8] sm:$0xff]
        %v806 = vld [vmem:[%s237 + $0xd00] sm:$0xff]
        %v807 = vld [vmem:[%s237 + $0xd08] sm:$0xf]
        %v808 = vld [vmem:[%s237 + $0xd0c] sm:$0xff]
        %v809 = vld [vmem:[%s237 + $0xd14] sm:$0xff]
        %v810 = vld [vmem:[%s237 + $0xd1c] sm:$0xf]
        %v811 = vld [vmem:[%s237 + $0xd20] sm:$0xff]
        %v812 = vld [vmem:[%s237 + $0xd28] sm:$0xff]
        %v813 = vld [vmem:[%s237 + $0xd30] sm:$0xf]
        %v814 = vld [vmem:[%s237 + $0xd34] sm:$0xff]
        %v815 = vld [vmem:[%s237 + $0xd3c] sm:$0xff]
        %v816 = vld [vmem:[%s237 + $0xd44] sm:$0xf]
        %v817 = vld [vmem:[%s237 + $0xd48] sm:$0xff]
        %v818 = vld [vmem:[%s237 + $0xd50] sm:$0xff]
        %v819 = vld [vmem:[%s237 + $0xd58] sm:$0xf]
        %v820 = vld [vmem:[%s237 + $0xd5c] sm:$0xff]
        %v821 = vld [vmem:[%s237 + $0xd64] sm:$0xff]
        %v822 = vld [vmem:[%s237 + $0xd6c] sm:$0xf]
        %v823 = vld [vmem:[%s237 + $0xd70] sm:$0xff]
        %v824 = vld [vmem:[%s237 + $0xd78] sm:$0xff]
        %v825 = vld [vmem:[%s237 + $0xd80] sm:$0xf]
        %v826 = vld [vmem:[%s237 + $0xd84] sm:$0xff]
        %v827 = vld [vmem:[%s237 + $0xd8c] sm:$0xff]
        %v828 = vld [vmem:[%s237 + $0xd94] sm:$0xf]
        %v829 = vld [vmem:[%s237 + $0xd98] sm:$0xff]
        %v830 = vld [vmem:[%s237 + $0xda0] sm:$0xff]
        %v831 = vld [vmem:[%s237 + $0xda8] sm:$0xf]
        %v832 = vld [vmem:[%s237 + $0xdac] sm:$0xff]
        %v833 = vld [vmem:[%s237 + $0xdb4] sm:$0xff]
        %v834 = vld [vmem:[%s237 + $0xdbc] sm:$0xf]
        %v835 = vld [vmem:[%s237 + $0xdc0] sm:$0xff]
        %v836 = vld [vmem:[%s237 + $0xdc8] sm:$0xff]
        %v837 = vld [vmem:[%s237 + $0xdd0] sm:$0xf]
        %v838 = vld [vmem:[%s237 + $0xdd4] sm:$0xff]
        %v839 = vld [vmem:[%s237 + $0xddc] sm:$0xff]
        %v840 = vld [vmem:[%s237 + $0xde4] sm:$0xf]
        %v841 = vld [vmem:[%s237 + $0xde8] sm:$0xff]
        %v842 = vld [vmem:[%s237 + $0xdf0] sm:$0xff]
        %v843 = vld [vmem:[%s237 + $0xdf8] sm:$0xf]
        %v844 = vld [vmem:[%s237 + $0xdfc] sm:$0xff]
        %v845 = vld [vmem:[%s237 + $0xe04] sm:$0xff]
        %v846 = vld [vmem:[%s237 + $0xe0c] sm:$0xf]
        %v847 = vld [vmem:[%s237 + $0xe10] sm:$0xff]
        %v848 = vld [vmem:[%s237 + $0xe18] sm:$0xff]
        %v849 = vld [vmem:[%s237 + $0xe20] sm:$0xf]
        %v850 = vld [vmem:[%s237 + $0xe24] sm:$0xff]
        %v851 = vld [vmem:[%s237 + $0xe2c] sm:$0xff]
        %v852 = vld [vmem:[%s237 + $0xe34] sm:$0xf]
        %v853 = vld [vmem:[%s237 + $0xe38] sm:$0xff]
        %v854 = vld [vmem:[%s237 + $0xe40] sm:$0xff]
        %v855 = vld [vmem:[%s237 + $0xe48] sm:$0xf]
        %v856 = vld [vmem:[%s237 + $0xe4c] sm:$0xff]
        %v857 = vld [vmem:[%s237 + $0xe54] sm:$0xff]
        %v858 = vld [vmem:[%s237 + $0xe5c] sm:$0xf]
        %v859 = vld [vmem:[%s237 + $0xe60] sm:$0xff]
        %v860 = vld [vmem:[%s237 + $0xe68] sm:$0xff]
        %v861 = vld [vmem:[%s237 + $0xe70] sm:$0xf]
        %v862 = vld [vmem:[%s237 + $0xe74] sm:$0xff]
        %v863 = vld [vmem:[%s237 + $0xe7c] sm:$0xff]
        %v864 = vld [vmem:[%s237 + $0xe84] sm:$0xf]
        %v865 = vld [vmem:[%s237 + $0xe88] sm:$0xff]
        %v866 = vld [vmem:[%s237 + $0xe90] sm:$0xff]
        %v867 = vld [vmem:[%s237 + $0xe98] sm:$0xf]
        %v868 = vld [vmem:[%s237 + $0xe9c] sm:$0xff]
        %v869 = vld [vmem:[%s237 + $0xea4] sm:$0xff]
        %v870 = vld [vmem:[%s237 + $0xeac] sm:$0xf]
        %v871 = vld [vmem:[%s237 + $0xeb0] sm:$0xff]
        %v872 = vld [vmem:[%s237 + $0xeb8] sm:$0xff]
        %v873 = vld [vmem:[%s237 + $0xec0] sm:$0xf]
        %v874 = vld [vmem:[%s237 + $0xec4] sm:$0xff]
        %v875 = vld [vmem:[%s237 + $0xecc] sm:$0xff]
        %v876 = vld [vmem:[%s237 + $0xed4] sm:$0xf]
        %v877 = vld [vmem:[%s237 + $0xed8] sm:$0xff]
        %v878 = vld [vmem:[%s237 + $0xee0] sm:$0xff]
        %v879 = vld [vmem:[%s237 + $0xee8] sm:$0xf]
        %v880 = vld [vmem:[%s237 + $0xeec] sm:$0xff]
        %v881 = vld [vmem:[%s237 + $0xef4] sm:$0xff]
        %v882 = vld [vmem:[%s237 + $0xefc] sm:$0xf]
        %v883 = vld [vmem:[%s237 + $0xf00] sm:$0xff]
        %v884 = vld [vmem:[%s237 + $0xf08] sm:$0xff]
        %v885 = vld [vmem:[%s237 + $0xf10] sm:$0xf]
        %v886 = vld [vmem:[%s237 + $0xf14] sm:$0xff]
        %v887 = vld [vmem:[%s237 + $0xf1c] sm:$0xff]
        %v888 = vld [vmem:[%s237 + $0xf24] sm:$0xf]
        %v889 = vld [vmem:[%s237 + $0xf28] sm:$0xff]
        %v890 = vld [vmem:[%s237 + $0xf30] sm:$0xff]
        %v891 = vld [vmem:[%s237 + $0xf38] sm:$0xf]
        %v892 = vld [vmem:[%s237 + $0xf3c] sm:$0xff]
        %v893 = vld [vmem:[%s237 + $0xf44] sm:$0xff]
        %v894 = vld [vmem:[%s237 + $0xf4c] sm:$0xf]
        %v895 = vld [vmem:[%s237 + $0xf50] sm:$0xff]
        %v896 = vld [vmem:[%s237 + $0xf58] sm:$0xff]
        %v897 = vld [vmem:[%s237 + $0xf60] sm:$0xf]
        %v898 = vld [vmem:[%s237 + $0xf64] sm:$0xff]
        %v899 = vld [vmem:[%s237 + $0xf6c] sm:$0xff]
        %v900 = vld [vmem:[%s237 + $0xf74] sm:$0xf]
        %v901 = vld [vmem:[%s237 + $0xf78] sm:$0xff]
        %v902 = vld [vmem:[%s237 + $0xf80] sm:$0xff]
        %v903 = vld [vmem:[%s237 + $0xf88] sm:$0xf]
        %v904 = vld [vmem:[%s237 + $0xf8c] sm:$0xff]
        %v905 = vld [vmem:[%s237 + $0xf94] sm:$0xff]
        %v906 = vld [vmem:[%s237 + $0xf9c] sm:$0xf]
        %v907 = vld [vmem:[%s237 + $0xfa0] sm:$0xff]
        %v908 = vld [vmem:[%s237 + $0xfa8] sm:$0xff]
        %v909 = vld [vmem:[%s237 + $0xfb0] sm:$0xf]
        %v910 = vld [vmem:[%s237 + $0xfb4] sm:$0xff]
        %v911 = vld [vmem:[%s237 + $0xfbc] sm:$0xff]
        %v912 = vld [vmem:[%s237 + $0xfc4] sm:$0xf]
        %v913 = vld [vmem:[%s237 + $0xfc8] sm:$0xff]
        %v914 = vld [vmem:[%s237 + $0xfd0] sm:$0xff]
        %v915 = vld [vmem:[%s237 + $0xfd8] sm:$0xf]
        %v916 = vld [vmem:[%s237 + $0xfdc] sm:$0xff]
        %v917 = vld [vmem:[%s237 + $0xfe4] sm:$0xff]
        %v918 = vld [vmem:[%s237 + $0xfec] sm:$0xf]
        %v919 = vld [vmem:[%s237 + $0xff0] sm:$0xff]
        %v920 = vld [vmem:[%s237 + $0xff8] sm:$0xff]
        %v921 = vld [vmem:[%s237 + $0x1000] sm:$0xf]
        %v922 = vld [vmem:[%s237 + $0x1004] sm:$0xff]
        %v923 = vld [vmem:[%s237 + $0x100c] sm:$0xff]
        %v924 = vld [vmem:[%s237 + $0x1014] sm:$0xf]
        %v925 = vld [vmem:[%s237 + $0x1018] sm:$0xff]
        %v926 = vld [vmem:[%s237 + $0x1020] sm:$0xff]
        %v927 = vld [vmem:[%s237 + $0x1028] sm:$0xf]
        %v928 = vld [vmem:[%s237 + $0x102c] sm:$0xff]
        %v929 = vld [vmem:[%s237 + $0x1034] sm:$0xff]
        %v930 = vld [vmem:[%s237 + $0x103c] sm:$0xf]
        %v931 = vld [vmem:[%s237 + $0x1040] sm:$0xff]
        %v932 = vld [vmem:[%s237 + $0x1048] sm:$0xff]
        %v933 = vld [vmem:[%s237 + $0x1050] sm:$0xf]
        %v934 = vld [vmem:[%s237 + $0x1054] sm:$0xff]
        %v935 = vld [vmem:[%s237 + $0x105c] sm:$0xff]
        %v936 = vld [vmem:[%s237 + $0x1064] sm:$0xf]
        %v937 = vld [vmem:[%s237 + $0x1068] sm:$0xff]
        %v938 = vld [vmem:[%s237 + $0x1070] sm:$0xff]
        %v939 = vld [vmem:[%s237 + $0x1078] sm:$0xf]
        %v940 = vld [vmem:[%s237 + $0x107c] sm:$0xff]
        %v941 = vld [vmem:[%s237 + $0x1084] sm:$0xff]
        %v942 = vld [vmem:[%s237 + $0x108c] sm:$0xf]
        %v943 = vld [vmem:[%s237 + $0x1090] sm:$0xff]
        %v944 = vld [vmem:[%s237 + $0x1098] sm:$0xff]
        %v945 = vld [vmem:[%s237 + $0x10a0] sm:$0xf]
        %v946 = vld [vmem:[%s237 + $0x10a4] sm:$0xff]
        %v947 = vld [vmem:[%s237 + $0x10ac] sm:$0xff]
        %v948 = vld [vmem:[%s237 + $0x10b4] sm:$0xf]
        %v949 = vld [vmem:[%s237 + $0x10b8] sm:$0xff]
        %v950 = vld [vmem:[%s237 + $0x10c0] sm:$0xff]
        %v951 = vld [vmem:[%s237 + $0x10c8] sm:$0xf]
        %v952 = vld [vmem:[%s237 + $0x10cc] sm:$0xff]
        %v953 = vld [vmem:[%s237 + $0x10d4] sm:$0xff]
        %v954 = vld [vmem:[%s237 + $0x10dc] sm:$0xf]
        %v955 = vld [vmem:[%s237 + $0x10e0] sm:$0xff]
        %v956 = vld [vmem:[%s237 + $0x10e8] sm:$0xff]
        %v957 = vld [vmem:[%s237 + $0x10f0] sm:$0xf]
        %v958 = vld [vmem:[%s237 + $0x10f4] sm:$0xff]
        %v959 = vld [vmem:[%s237 + $0x10fc] sm:$0xff]
        %v960 = vld [vmem:[%s237 + $0x1104] sm:$0xf]
        %v961 = vld [vmem:[%s237 + $0x1108] sm:$0xff]
        %v962 = vld [vmem:[%s237 + $0x1110] sm:$0xff]
        %v963 = vld [vmem:[%s237 + $0x1118] sm:$0xf]
        %v964 = vld [vmem:[%s237 + $0x111c] sm:$0xff]
        %v965 = vld [vmem:[%s237 + $0x1124] sm:$0xff]
        %v966 = vld [vmem:[%s237 + $0x112c] sm:$0xf]
        %v967 = vld [vmem:[%s237 + $0x1130] sm:$0xff]
        %v968 = vld [vmem:[%s237 + $0x1138] sm:$0xff]
        %v969 = vld [vmem:[%s237 + $0x1140] sm:$0xf]
        %v970 = vld [vmem:[%s237 + $0x1144] sm:$0xff]
        %v971 = vld [vmem:[%s237 + $0x114c] sm:$0xff]
        %v972 = vld [vmem:[%s237 + $0x1154] sm:$0xf]
        %v973 = vld [vmem:[%s237 + $0x1158] sm:$0xff]
        %v974 = vld [vmem:[%s237 + $0x1160] sm:$0xff]
        %v975 = vld [vmem:[%s237 + $0x1168] sm:$0xf]
        %v976 = vld [vmem:[%s237 + $0x116c] sm:$0xff]
        %v977 = vld [vmem:[%s237 + $0x1174] sm:$0xff]
        %v978 = vld [vmem:[%s237 + $0x117c] sm:$0xf]
        %v979 = vld [vmem:[%s237 + $0x1180] sm:$0xff]
        %v980 = vld [vmem:[%s237 + $0x1188] sm:$0xff]
        %v981 = vld [vmem:[%s237 + $0x1190] sm:$0xf]
        %v982 = vld [vmem:[%s237 + $0x1194] sm:$0xff]
        %v983 = vld [vmem:[%s237 + $0x119c] sm:$0xff]
        %v984 = vld [vmem:[%s237 + $0x11a4] sm:$0xf]
        %v985 = vld [vmem:[%s237 + $0x11a8] sm:$0xff]
        %v986 = vld [vmem:[%s237 + $0x11b0] sm:$0xff]
        %v987 = vld [vmem:[%s237 + $0x11b8] sm:$0xf]
        %v988 = vld [vmem:[%s237 + $0x11bc] sm:$0xff]
        %v989 = vld [vmem:[%s237 + $0x11c4] sm:$0xff]
        %v990 = vld [vmem:[%s237 + $0x11cc] sm:$0xf]
        %v991 = vld [vmem:[%s237 + $0x11d0] sm:$0xff]
        %v992 = vld [vmem:[%s237 + $0x11d8] sm:$0xff]
        %v993 = vld [vmem:[%s237 + $0x11e0] sm:$0xf]
        %v994 = vld [vmem:[%s237 + $0x11e4] sm:$0xff]
        %v995 = vld [vmem:[%s237 + $0x11ec] sm:$0xff]
        %v996 = vld [vmem:[%s237 + $0x11f4] sm:$0xf]
        %v997 = vld [vmem:[%s237 + $0x11f8] sm:$0xff]
        %v998 = vld [vmem:[%s237 + $0x1200] sm:$0xff]
        %v999 = vld [vmem:[%s237 + $0x1208] sm:$0xf]
        %v1000 = vld [vmem:[%s237 + $0x120c] sm:$0xff]
        %v1001 = vld [vmem:[%s237 + $0x1214] sm:$0xff]
        %v1002 = vld [vmem:[%s237 + $0x121c] sm:$0xf]
        %v1003 = vld [vmem:[%s237 + $0x1220] sm:$0xff]
        %v1004 = vld [vmem:[%s237 + $0x1228] sm:$0xff]
        %v1005 = vld [vmem:[%s237 + $0x1230] sm:$0xf]
        %v1006 = vld [vmem:[%s237 + $0x1234] sm:$0xff]
        %v1007 = vld [vmem:[%s237 + $0x123c] sm:$0xff]
        %v1008 = vld [vmem:[%s237 + $0x1244] sm:$0xf]
        %v1009 = vld [vmem:[%s237 + $0x1248] sm:$0xff]
        %v1010 = vld [vmem:[%s237 + $0x1250] sm:$0xff]
        %v1011 = vld [vmem:[%s237 + $0x1258] sm:$0xf]
        %v1012 = vld [vmem:[%s237 + $0x125c] sm:$0xff]
        %v1013 = vld [vmem:[%s237 + $0x1264] sm:$0xff]
        %v1014 = vld [vmem:[%s237 + $0x126c] sm:$0xf]
        %v1015 = vld [vmem:[%s237 + $0x1270] sm:$0xff]
        %v1016 = vld [vmem:[%s237 + $0x1278] sm:$0xff]
        %v1017 = vld [vmem:[%s237 + $0x1280] sm:$0xf]
        %v1018 = vld [vmem:[%s237 + $0x1284] sm:$0xff]
        %v1019 = vld [vmem:[%s237 + $0x128c] sm:$0xff]
        %v1020 = vld [vmem:[%s237 + $0x1294] sm:$0xf]
        %v1021 = vld [vmem:[%s237 + $0x1298] sm:$0xff]
        %v1022 = vld [vmem:[%s237 + $0x12a0] sm:$0xff]
        %v1023 = vld [vmem:[%s237 + $0x12a8] sm:$0xf]
        %v1024 = vld [vmem:[%s237 + $0x12ac] sm:$0xff]
        %v1025 = vld [vmem:[%s237 + $0x12b4] sm:$0xff]
        %v1026 = vld [vmem:[%s237 + $0x12bc] sm:$0xf]
        %v1027 = vld [vmem:[%s237 + $0x12c0] sm:$0xff]
        %v1028 = vld [vmem:[%s237 + $0x12c8] sm:$0xff]
        %v1029 = vld [vmem:[%s237 + $0x12d0] sm:$0xf]
        %v1030 = vld [vmem:[%s237 + $0x12d4] sm:$0xff]
        %v1031 = vld [vmem:[%s237 + $0x12dc] sm:$0xff]
        %v1032 = vld [vmem:[%s237 + $0x12e4] sm:$0xf]
        %v1033 = vld [vmem:[%s237 + $0x12e8] sm:$0xff]
        %v1034 = vld [vmem:[%s237 + $0x12f0] sm:$0xff]
        %v1035 = vld [vmem:[%s237 + $0x12f8] sm:$0xf]
        %v1036 = vld [vmem:[%s237 + $0x12fc] sm:$0xff]
        %v1037 = vld [vmem:[%s237 + $0x1304] sm:$0xff]
        %v1038 = vld [vmem:[%s237 + $0x130c] sm:$0xf]
        %v1039 = vld [vmem:[%s237 + $0x1310] sm:$0xff]
        %v1040 = vld [vmem:[%s237 + $0x1318] sm:$0xff]
        %v1041 = vld [vmem:[%s237 + $0x1320] sm:$0xf]
        %v1042 = vld [vmem:[%s237 + $0x1324] sm:$0xff]
        %v1043 = vld [vmem:[%s237 + $0x132c] sm:$0xff]
        %v1044 = vld [vmem:[%s237 + $0x1334] sm:$0xf]
        %v1045 = vld [vmem:[%s237 + $0x1338] sm:$0xff]
        %v1046 = vld [vmem:[%s237 + $0x1340] sm:$0xff]
        %v1047 = vld [vmem:[%s237 + $0x1348] sm:$0xf]
        %v1048 = vld [vmem:[%s237 + $0x134c] sm:$0xff]
        %v1049 = vld [vmem:[%s237 + $0x1354] sm:$0xff]
        %v1050 = vld [vmem:[%s237 + $0x135c] sm:$0xf]
        %v1051 = vld [vmem:[%s237 + $0x1360] sm:$0xff]
        %v1052 = vld [vmem:[%s237 + $0x1368] sm:$0xff]
        %v1053 = vld [vmem:[%s237 + $0x1370] sm:$0xf]
        %v1054 = vld [vmem:[%s237 + $0x1374] sm:$0xff]
        %v1055 = vld [vmem:[%s237 + $0x137c] sm:$0xff]
        %v1056 = vld [vmem:[%s237 + $0x1384] sm:$0xf]
        %v1057 = vld [vmem:[%s237 + $0x1388] sm:$0xff]
        %v1058 = vld [vmem:[%s237 + $0x1390] sm:$0xff]
        %v1059 = vld [vmem:[%s237 + $0x1398] sm:$0xf]
        %v1060 = vld [vmem:[%s237 + $0x139c] sm:$0xff]
        %v1061 = vld [vmem:[%s237 + $0x13a4] sm:$0xff]
        %v1062 = vld [vmem:[%s237 + $0x13ac] sm:$0xf]
        %v1063 = vld [vmem:[%s237 + $0x13b0] sm:$0xff]
        %v1064 = vld [vmem:[%s237 + $0x13b8] sm:$0xff]
        %v1065 = vld [vmem:[%s237 + $0x13c0] sm:$0xf]
        %v1066 = vld [vmem:[%s237 + $0x13c4] sm:$0xff]
        %v1067 = vld [vmem:[%s237 + $0x13cc] sm:$0xff]
        %v1068 = vld [vmem:[%s237 + $0x13d4] sm:$0xf]
        %v1069 = vld [vmem:[%s237 + $0x13d8] sm:$0xff]
        %v1070 = vld [vmem:[%s237 + $0x13e0] sm:$0xff]
        %v1071 = vld [vmem:[%s237 + $0x13e8] sm:$0xf]
        %v1072 = vld [vmem:[%s237 + $0x13ec] sm:$0xff]
        %v1073 = vld [vmem:[%s237 + $0x13f4] sm:$0xff]
        %v1074 = vld [vmem:[%s237 + $0x13fc] sm:$0xf]
        %v1083 = vunpack.c.l.b16 %v299
        %v1084 = vunpack.c.h.b16 %v299
        %v1085 = vunpack.c.l.b16 %v300
        %v1086 = vunpack.c.h.b16 %v300
        %v1087 = vunpack.c.l.b16 %v301
        %v1088 = vunpack.c.h.b16 %v301
        %v1089 = vunpack.c.l.b16 %v302
        %v1090 = vunpack.c.h.b16 %v302
        %v1091 = vunpack.c.l.b16 %v303
        %v1092 = vunpack.c.h.b16 %v303
        %v1093 = vunpack.c.l.b16 %v304
        %v1094 = vunpack.c.h.b16 %v304
        %v1095 = vunpack.c.l.b16 %v305
        %v1096 = vunpack.c.h.b16 %v305
        %v1097 = vunpack.c.l.b16 %v306
        %v1098 = vunpack.c.h.b16 %v306
        %v1099 = vpack.c.b16 %v1083, %v1083
        %v1100 = vpack.c.b16 %v1084, %v1084
        %v1101 = vpack.c.b16 %v1085, %v1085
        %v1102 = vpack.c.b16 %v1086, %v1086
        %v1103 = vpack.c.b16 %v1087, %v1087
        %v1104 = vpack.c.b16 %v1088, %v1088
        %v1105 = vpack.c.b16 %v1089, %v1089
        %v1106 = vpack.c.b16 %v1090, %v1090
        %v1107 = vpack.c.b16 %v1091, %v1091
        %v1108 = vpack.c.b16 %v1092, %v1092
        %v1109 = vpack.c.b16 %v1093, %v1093
        %v1110 = vpack.c.b16 %v1094, %v1094
        %v1111 = vpack.c.b16 %v1095, %v1095
        %v1112 = vpack.c.b16 %v1096, %v1096
        %v1113 = vpack.c.b16 %v1097, %v1097
        %v1114 = vpack.c.b16 %v1098, %v1098
        %v1899 = vunpack.c.l.b16 %v307
        %v1900 = vunpack.c.h.b16 %v307
        %v1901 = vunpack.c.l.b16 %v308
        %v1902 = vunpack.c.h.b16 %v308
        %v1903 = vunpack.c.l.b16 %v309
        %v1904 = vunpack.c.l.b16 %v310
        %v1905 = vunpack.c.h.b16 %v310
        %v1906 = vunpack.c.l.b16 %v311
        %v1907 = vunpack.c.h.b16 %v311
        %v1908 = vunpack.c.l.b16 %v312
        %v1909 = vunpack.c.l.b16 %v313
        %v1910 = vunpack.c.h.b16 %v313
        %v1911 = vunpack.c.l.b16 %v314
        %v1912 = vunpack.c.h.b16 %v314
        %v1913 = vunpack.c.l.b16 %v315
        %v1914 = vunpack.c.l.b16 %v316
        %v1915 = vunpack.c.h.b16 %v316
        %v1916 = vunpack.c.l.b16 %v317
        %v1917 = vunpack.c.h.b16 %v317
        %v1918 = vunpack.c.l.b16 %v318
        %v1919 = vunpack.c.l.b16 %v319
        %v1920 = vunpack.c.h.b16 %v319
        %v1921 = vunpack.c.l.b16 %v320
        %v1922 = vunpack.c.h.b16 %v320
        %v1923 = vunpack.c.l.b16 %v321
        %v1924 = vunpack.c.l.b16 %v322
        %v1925 = vunpack.c.h.b16 %v322
        %v1926 = vunpack.c.l.b16 %v323
        %v1927 = vunpack.c.h.b16 %v323
        %v1928 = vunpack.c.l.b16 %v324
        %v1929 = vunpack.c.l.b16 %v325
        %v1930 = vunpack.c.h.b16 %v325
        %v1931 = vunpack.c.l.b16 %v326
        %v1932 = vunpack.c.h.b16 %v326
        %v1933 = vunpack.c.l.b16 %v327
        %v1934 = vunpack.c.l.b16 %v328
        %v1935 = vunpack.c.h.b16 %v328
        %v1936 = vunpack.c.l.b16 %v329
        %v1937 = vunpack.c.h.b16 %v329
        %v1938 = vunpack.c.l.b16 %v330
        %v1939 = vunpack.c.l.b16 %v331
        %v1940 = vunpack.c.h.b16 %v331
        %v1941 = vunpack.c.l.b16 %v332
        %v1942 = vunpack.c.h.b16 %v332
        %v1943 = vunpack.c.l.b16 %v333
        %v1944 = vunpack.c.l.b16 %v334
        %v1945 = vunpack.c.h.b16 %v334
        %v1946 = vunpack.c.l.b16 %v335
        %v1947 = vunpack.c.h.b16 %v335
        %v1948 = vunpack.c.l.b16 %v336
        %v1949 = vunpack.c.l.b16 %v337
        %v1950 = vunpack.c.h.b16 %v337
        %v1951 = vunpack.c.l.b16 %v338
        %v1952 = vunpack.c.h.b16 %v338
        %v1953 = vunpack.c.l.b16 %v339
        %v1954 = vunpack.c.l.b16 %v340
        %v1955 = vunpack.c.h.b16 %v340
        %v1956 = vunpack.c.l.b16 %v341
        %v1957 = vunpack.c.h.b16 %v341
        %v1958 = vunpack.c.l.b16 %v342
        %v1959 = vunpack.c.l.b16 %v343
        %v1960 = vunpack.c.h.b16 %v343
        %v1961 = vunpack.c.l.b16 %v344
        %v1962 = vunpack.c.h.b16 %v344
        %v1963 = vunpack.c.l.b16 %v345
        %v1964 = vunpack.c.l.b16 %v346
        %v1965 = vunpack.c.h.b16 %v346
        %v1966 = vunpack.c.l.b16 %v347
        %v1967 = vunpack.c.h.b16 %v347
        %v1968 = vunpack.c.l.b16 %v348
        %v1969 = vunpack.c.l.b16 %v349
        %v1970 = vunpack.c.h.b16 %v349
        %v1971 = vunpack.c.l.b16 %v350
        %v1972 = vunpack.c.h.b16 %v350
        %v1973 = vunpack.c.l.b16 %v351
        %v1974 = vunpack.c.l.b16 %v352
        %v1975 = vunpack.c.h.b16 %v352
        %v1976 = vunpack.c.l.b16 %v353
        %v1977 = vunpack.c.h.b16 %v353
        %v1978 = vunpack.c.l.b16 %v354
        %v1979 = vunpack.c.l.b16 %v355
        %v1980 = vunpack.c.h.b16 %v355
        %v1981 = vunpack.c.l.b16 %v356
        %v1982 = vunpack.c.h.b16 %v356
        %v1983 = vunpack.c.l.b16 %v357
        %v1984 = vunpack.c.l.b16 %v358
        %v1985 = vunpack.c.h.b16 %v358
        %v1986 = vunpack.c.l.b16 %v359
        %v1987 = vunpack.c.h.b16 %v359
        %v1988 = vunpack.c.l.b16 %v360
        %v1989 = vunpack.c.l.b16 %v361
        %v1990 = vunpack.c.h.b16 %v361
        %v1991 = vunpack.c.l.b16 %v362
        %v1992 = vunpack.c.h.b16 %v362
        %v1993 = vunpack.c.l.b16 %v363
        %v1994 = vunpack.c.l.b16 %v364
        %v1995 = vunpack.c.h.b16 %v364
        %v1996 = vunpack.c.l.b16 %v365
        %v1997 = vunpack.c.h.b16 %v365
        %v1998 = vunpack.c.l.b16 %v366
        %v1999 = vunpack.c.l.b16 %v367
        %v2000 = vunpack.c.h.b16 %v367
        %v2001 = vunpack.c.l.b16 %v368
        %v2002 = vunpack.c.h.b16 %v368
        %v2003 = vunpack.c.l.b16 %v369
        %v2004 = vunpack.c.l.b16 %v370
        %v2005 = vunpack.c.h.b16 %v370
        %v2006 = vunpack.c.l.b16 %v371
        %v2007 = vunpack.c.h.b16 %v371
        %v2008 = vunpack.c.l.b16 %v372
        %v2009 = vunpack.c.l.b16 %v373
        %v2010 = vunpack.c.h.b16 %v373
        %v2011 = vunpack.c.l.b16 %v374
        %v2012 = vunpack.c.h.b16 %v374
        %v2013 = vunpack.c.l.b16 %v375
        %v2014 = vunpack.c.l.b16 %v376
        %v2015 = vunpack.c.h.b16 %v376
        %v2016 = vunpack.c.l.b16 %v377
        %v2017 = vunpack.c.h.b16 %v377
        %v2018 = vunpack.c.l.b16 %v378
        %v2019 = vunpack.c.l.b16 %v379
        %v2020 = vunpack.c.h.b16 %v379
        %v2021 = vunpack.c.l.b16 %v380
        %v2022 = vunpack.c.h.b16 %v380
        %v2023 = vunpack.c.l.b16 %v381
        %v2024 = vunpack.c.l.b16 %v382
        %v2025 = vunpack.c.h.b16 %v382
        %v2026 = vunpack.c.l.b16 %v383
        %v2027 = vunpack.c.h.b16 %v383
        %v2028 = vunpack.c.l.b16 %v384
        %v2029 = vunpack.c.l.b16 %v385
        %v2030 = vunpack.c.h.b16 %v385
        %v2031 = vunpack.c.l.b16 %v386
        %v2032 = vunpack.c.h.b16 %v386
        %v2033 = vunpack.c.l.b16 %v387
        %v2034 = vunpack.c.l.b16 %v388
        %v2035 = vunpack.c.h.b16 %v388
        %v2036 = vunpack.c.l.b16 %v389
        %v2037 = vunpack.c.h.b16 %v389
        %v2038 = vunpack.c.l.b16 %v390
        %v2039 = vunpack.c.l.b16 %v391
        %v2040 = vunpack.c.h.b16 %v391
        %v2041 = vunpack.c.l.b16 %v392
        %v2042 = vunpack.c.h.b16 %v392
        %v2043 = vunpack.c.l.b16 %v393
        %v2044 = vunpack.c.l.b16 %v394
        %v2045 = vunpack.c.h.b16 %v394
        %v2046 = vunpack.c.l.b16 %v395
        %v2047 = vunpack.c.h.b16 %v395
        %v2048 = vunpack.c.l.b16 %v396
        %v2049 = vunpack.c.l.b16 %v397
        %v2050 = vunpack.c.h.b16 %v397
        %v2051 = vunpack.c.l.b16 %v398
        %v2052 = vunpack.c.h.b16 %v398
        %v2053 = vunpack.c.l.b16 %v399
        %v2054 = vunpack.c.l.b16 %v400
        %v2055 = vunpack.c.h.b16 %v400
        %v2056 = vunpack.c.l.b16 %v401
        %v2057 = vunpack.c.h.b16 %v401
        %v2058 = vunpack.c.l.b16 %v402
        %v2059 = vunpack.c.l.b16 %v403
        %v2060 = vunpack.c.h.b16 %v403
        %v2061 = vunpack.c.l.b16 %v404
        %v2062 = vunpack.c.h.b16 %v404
        %v2063 = vunpack.c.l.b16 %v405
        %v2064 = vunpack.c.l.b16 %v406
        %v2065 = vunpack.c.h.b16 %v406
        %v2066 = vunpack.c.l.b16 %v407
        %v2067 = vunpack.c.h.b16 %v407
        %v2068 = vunpack.c.l.b16 %v408
        %v2069 = vunpack.c.l.b16 %v409
        %v2070 = vunpack.c.h.b16 %v409
        %v2071 = vunpack.c.l.b16 %v410
        %v2072 = vunpack.c.h.b16 %v410
        %v2073 = vunpack.c.l.b16 %v411
        %v2074 = vunpack.c.l.b16 %v412
        %v2075 = vunpack.c.h.b16 %v412
        %v2076 = vunpack.c.l.b16 %v413
        %v2077 = vunpack.c.h.b16 %v413
        %v2078 = vunpack.c.l.b16 %v414
        %v2079 = vunpack.c.l.b16 %v415
        %v2080 = vunpack.c.h.b16 %v415
        %v2081 = vunpack.c.l.b16 %v416
        %v2082 = vunpack.c.h.b16 %v416
        %v2083 = vunpack.c.l.b16 %v417
        %v2084 = vunpack.c.l.b16 %v418
        %v2085 = vunpack.c.h.b16 %v418
        %v2086 = vunpack.c.l.b16 %v419
        %v2087 = vunpack.c.h.b16 %v419
        %v2088 = vunpack.c.l.b16 %v420
        %v2089 = vunpack.c.l.b16 %v421
        %v2090 = vunpack.c.h.b16 %v421
        %v2091 = vunpack.c.l.b16 %v422
        %v2092 = vunpack.c.h.b16 %v422
        %v2093 = vunpack.c.l.b16 %v423
        %v2094 = vunpack.c.l.b16 %v424
        %v2095 = vunpack.c.h.b16 %v424
        %v2096 = vunpack.c.l.b16 %v425
        %v2097 = vunpack.c.h.b16 %v425
        %v2098 = vunpack.c.l.b16 %v426
        %v2099 = vunpack.c.l.b16 %v427
        %v2100 = vunpack.c.h.b16 %v427
        %v2101 = vunpack.c.l.b16 %v428
        %v2102 = vunpack.c.h.b16 %v428
        %v2103 = vunpack.c.l.b16 %v429
        %v2104 = vunpack.c.l.b16 %v430
        %v2105 = vunpack.c.h.b16 %v430
        %v2106 = vunpack.c.l.b16 %v431
        %v2107 = vunpack.c.h.b16 %v431
        %v2108 = vunpack.c.l.b16 %v432
        %v2109 = vunpack.c.l.b16 %v433
        %v2110 = vunpack.c.h.b16 %v433
        %v2111 = vunpack.c.l.b16 %v434
        %v2112 = vunpack.c.h.b16 %v434
        %v2113 = vunpack.c.l.b16 %v435
        %v2114 = vunpack.c.l.b16 %v436
        %v2115 = vunpack.c.h.b16 %v436
        %v2116 = vunpack.c.l.b16 %v437
        %v2117 = vunpack.c.h.b16 %v437
        %v2118 = vunpack.c.l.b16 %v438
        %v2119 = vunpack.c.l.b16 %v439
        %v2120 = vunpack.c.h.b16 %v439
        %v2121 = vunpack.c.l.b16 %v440
        %v2122 = vunpack.c.h.b16 %v440
        %v2123 = vunpack.c.l.b16 %v441
        %v2124 = vunpack.c.l.b16 %v442
        %v2125 = vunpack.c.h.b16 %v442
        %v2126 = vunpack.c.l.b16 %v443
        %v2127 = vunpack.c.h.b16 %v443
        %v2128 = vunpack.c.l.b16 %v444
        %v2129 = vunpack.c.l.b16 %v445
        %v2130 = vunpack.c.h.b16 %v445
        %v2131 = vunpack.c.l.b16 %v446
        %v2132 = vunpack.c.h.b16 %v446
        %v2133 = vunpack.c.l.b16 %v447
        %v2134 = vunpack.c.l.b16 %v448
        %v2135 = vunpack.c.h.b16 %v448
        %v2136 = vunpack.c.l.b16 %v449
        %v2137 = vunpack.c.h.b16 %v449
        %v2138 = vunpack.c.l.b16 %v450
        %v2139 = vunpack.c.l.b16 %v451
        %v2140 = vunpack.c.h.b16 %v451
        %v2141 = vunpack.c.l.b16 %v452
        %v2142 = vunpack.c.h.b16 %v452
        %v2143 = vunpack.c.l.b16 %v453
        %v2144 = vunpack.c.l.b16 %v454
        %v2145 = vunpack.c.h.b16 %v454
        %v2146 = vunpack.c.l.b16 %v455
        %v2147 = vunpack.c.h.b16 %v455
        %v2148 = vunpack.c.l.b16 %v456
        %v2149 = vunpack.c.l.b16 %v457
        %v2150 = vunpack.c.h.b16 %v457
        %v2151 = vunpack.c.l.b16 %v458
        %v2152 = vunpack.c.h.b16 %v458
        %v2153 = vunpack.c.l.b16 %v459
        %v2154 = vunpack.c.l.b16 %v460
        %v2155 = vunpack.c.h.b16 %v460
        %v2156 = vunpack.c.l.b16 %v461
        %v2157 = vunpack.c.h.b16 %v461
        %v2158 = vunpack.c.l.b16 %v462
        %v2159 = vunpack.c.l.b16 %v463
        %v2160 = vunpack.c.h.b16 %v463
        %v2161 = vunpack.c.l.b16 %v464
        %v2162 = vunpack.c.h.b16 %v464
        %v2163 = vunpack.c.l.b16 %v465
        %v2164 = vunpack.c.l.b16 %v466
        %v2165 = vunpack.c.h.b16 %v466
        %v2166 = vunpack.c.l.b16 %v467
        %v2167 = vunpack.c.h.b16 %v467
        %v2168 = vunpack.c.l.b16 %v468
        %v2169 = vunpack.c.l.b16 %v469
        %v2170 = vunpack.c.h.b16 %v469
        %v2171 = vunpack.c.l.b16 %v470
        %v2172 = vunpack.c.h.b16 %v470
        %v2173 = vunpack.c.l.b16 %v471
        %v2174 = vunpack.c.l.b16 %v472
        %v2175 = vunpack.c.h.b16 %v472
        %v2176 = vunpack.c.l.b16 %v473
        %v2177 = vunpack.c.h.b16 %v473
        %v2178 = vunpack.c.l.b16 %v474
        %v2179 = vunpack.c.l.b16 %v475
        %v2180 = vunpack.c.h.b16 %v475
        %v2181 = vunpack.c.l.b16 %v476
        %v2182 = vunpack.c.h.b16 %v476
        %v2183 = vunpack.c.l.b16 %v477
        %v2184 = vunpack.c.l.b16 %v478
        %v2185 = vunpack.c.h.b16 %v478
        %v2186 = vunpack.c.l.b16 %v479
        %v2187 = vunpack.c.h.b16 %v479
        %v2188 = vunpack.c.l.b16 %v480
        %v2189 = vunpack.c.l.b16 %v481
        %v2190 = vunpack.c.h.b16 %v481
        %v2191 = vunpack.c.l.b16 %v482
        %v2192 = vunpack.c.h.b16 %v482
        %v2193 = vunpack.c.l.b16 %v483
        %v2194 = vunpack.c.l.b16 %v484
        %v2195 = vunpack.c.h.b16 %v484
        %v2196 = vunpack.c.l.b16 %v485
        %v2197 = vunpack.c.h.b16 %v485
        %v2198 = vunpack.c.l.b16 %v486
        %v2199 = vunpack.c.l.b16 %v487
        %v2200 = vunpack.c.h.b16 %v487
        %v2201 = vunpack.c.l.b16 %v488
        %v2202 = vunpack.c.h.b16 %v488
        %v2203 = vunpack.c.l.b16 %v489
        %v2204 = vunpack.c.l.b16 %v490
        %v2205 = vunpack.c.h.b16 %v490
        %v2206 = vunpack.c.l.b16 %v491
        %v2207 = vunpack.c.h.b16 %v491
        %v2208 = vunpack.c.l.b16 %v492
        %v2209 = vunpack.c.l.b16 %v493
        %v2210 = vunpack.c.h.b16 %v493
        %v2211 = vunpack.c.l.b16 %v494
        %v2212 = vunpack.c.h.b16 %v494
        %v2213 = vunpack.c.l.b16 %v495
        %v2214 = vunpack.c.l.b16 %v496
        %v2215 = vunpack.c.h.b16 %v496
        %v2216 = vunpack.c.l.b16 %v497
        %v2217 = vunpack.c.h.b16 %v497
        %v2218 = vunpack.c.l.b16 %v498
        %v2219 = vunpack.c.l.b16 %v499
        %v2220 = vunpack.c.h.b16 %v499
        %v2221 = vunpack.c.l.b16 %v500
        %v2222 = vunpack.c.h.b16 %v500
        %v2223 = vunpack.c.l.b16 %v501
        %v2224 = vunpack.c.l.b16 %v502
        %v2225 = vunpack.c.h.b16 %v502
        %v2226 = vunpack.c.l.b16 %v503
        %v2227 = vunpack.c.h.b16 %v503
        %v2228 = vunpack.c.l.b16 %v504
        %v2229 = vunpack.c.l.b16 %v505
        %v2230 = vunpack.c.h.b16 %v505
        %v2231 = vunpack.c.l.b16 %v506
        %v2232 = vunpack.c.h.b16 %v506
        %v2233 = vunpack.c.l.b16 %v507
        %v2234 = vunpack.c.l.b16 %v508
        %v2235 = vunpack.c.h.b16 %v508
        %v2236 = vunpack.c.l.b16 %v509
        %v2237 = vunpack.c.h.b16 %v509
        %v2238 = vunpack.c.l.b16 %v510
        %v2239 = vunpack.c.l.b16 %v511
        %v2240 = vunpack.c.h.b16 %v511
        %v2241 = vunpack.c.l.b16 %v512
        %v2242 = vunpack.c.h.b16 %v512
        %v2243 = vunpack.c.l.b16 %v513
        %v2244 = vunpack.c.l.b16 %v514
        %v2245 = vunpack.c.h.b16 %v514
        %v2246 = vunpack.c.l.b16 %v515
        %v2247 = vunpack.c.h.b16 %v515
        %v2248 = vunpack.c.l.b16 %v516
        %v2249 = vunpack.c.l.b16 %v517
        %v2250 = vunpack.c.h.b16 %v517
        %v2251 = vunpack.c.l.b16 %v518
        %v2252 = vunpack.c.h.b16 %v518
        %v2253 = vunpack.c.l.b16 %v519
        %v2254 = vunpack.c.l.b16 %v520
        %v2255 = vunpack.c.h.b16 %v520
        %v2256 = vunpack.c.l.b16 %v521
        %v2257 = vunpack.c.h.b16 %v521
        %v2258 = vunpack.c.l.b16 %v522
        %v2259 = vunpack.c.l.b16 %v523
        %v2260 = vunpack.c.h.b16 %v523
        %v2261 = vunpack.c.l.b16 %v524
        %v2262 = vunpack.c.h.b16 %v524
        %v2263 = vunpack.c.l.b16 %v525
        %v2264 = vunpack.c.l.b16 %v526
        %v2265 = vunpack.c.h.b16 %v526
        %v2266 = vunpack.c.l.b16 %v527
        %v2267 = vunpack.c.h.b16 %v527
        %v2268 = vunpack.c.l.b16 %v528
        %v2269 = vunpack.c.l.b16 %v529
        %v2270 = vunpack.c.h.b16 %v529
        %v2271 = vunpack.c.l.b16 %v530
        %v2272 = vunpack.c.h.b16 %v530
        %v2273 = vunpack.c.l.b16 %v531
        %v2274 = vunpack.c.l.b16 %v532
        %v2275 = vunpack.c.h.b16 %v532
        %v2276 = vunpack.c.l.b16 %v533
        %v2277 = vunpack.c.h.b16 %v533
        %v2278 = vunpack.c.l.b16 %v534
        %v2279 = vunpack.c.l.b16 %v535
        %v2280 = vunpack.c.h.b16 %v535
        %v2281 = vunpack.c.l.b16 %v536
        %v2282 = vunpack.c.h.b16 %v536
        %v2283 = vunpack.c.l.b16 %v537
        %v2284 = vunpack.c.l.b16 %v538
        %v2285 = vunpack.c.h.b16 %v538
        %v2286 = vunpack.c.l.b16 %v539
        %v2287 = vunpack.c.h.b16 %v539
        %v2288 = vunpack.c.l.b16 %v540
        %v2289 = vunpack.c.l.b16 %v541
        %v2290 = vunpack.c.h.b16 %v541
        %v2291 = vunpack.c.l.b16 %v542
        %v2292 = vunpack.c.h.b16 %v542
        %v2293 = vunpack.c.l.b16 %v543
        %v2294 = vunpack.c.l.b16 %v544
        %v2295 = vunpack.c.h.b16 %v544
        %v2296 = vunpack.c.l.b16 %v545
        %v2297 = vunpack.c.h.b16 %v545
        %v2298 = vunpack.c.l.b16 %v546
        %v2299 = vunpack.c.l.b16 %v547
        %v2300 = vunpack.c.h.b16 %v547
        %v2301 = vunpack.c.l.b16 %v548
        %v2302 = vunpack.c.h.b16 %v548
        %v2303 = vunpack.c.l.b16 %v549
        %v2304 = vunpack.c.l.b16 %v550
        %v2305 = vunpack.c.h.b16 %v550
        %v2306 = vunpack.c.l.b16 %v551
        %v2307 = vunpack.c.h.b16 %v551
        %v2308 = vunpack.c.l.b16 %v552
        %v2309 = vunpack.c.l.b16 %v553
        %v2310 = vunpack.c.h.b16 %v553
        %v2311 = vunpack.c.l.b16 %v554
        %v2312 = vunpack.c.h.b16 %v554
        %v2313 = vunpack.c.l.b16 %v555
        %v2314 = vunpack.c.l.b16 %v556
        %v2315 = vunpack.c.h.b16 %v556
        %v2316 = vunpack.c.l.b16 %v557
        %v2317 = vunpack.c.h.b16 %v557
        %v2318 = vunpack.c.l.b16 %v558
        %v2319 = vunpack.c.l.b16 %v559
        %v2320 = vunpack.c.h.b16 %v559
        %v2321 = vunpack.c.l.b16 %v560
        %v2322 = vunpack.c.h.b16 %v560
        %v2323 = vunpack.c.l.b16 %v561
        %v2324 = vunpack.c.l.b16 %v562
        %v2325 = vunpack.c.h.b16 %v562
        %v2326 = vunpack.c.l.b16 %v563
        %v2327 = vunpack.c.h.b16 %v563
        %v2328 = vunpack.c.l.b16 %v564
        %v2329 = vunpack.c.l.b16 %v565
        %v2330 = vunpack.c.h.b16 %v565
        %v2331 = vunpack.c.l.b16 %v566
        %v2332 = vunpack.c.h.b16 %v566
        %v2333 = vunpack.c.l.b16 %v567
        %v2334 = vunpack.c.l.b16 %v568
        %v2335 = vunpack.c.h.b16 %v568
        %v2336 = vunpack.c.l.b16 %v569
        %v2337 = vunpack.c.h.b16 %v569
        %v2338 = vunpack.c.l.b16 %v570
        %v2339 = vunpack.c.l.b16 %v571
        %v2340 = vunpack.c.h.b16 %v571
        %v2341 = vunpack.c.l.b16 %v572
        %v2342 = vunpack.c.h.b16 %v572
        %v2343 = vunpack.c.l.b16 %v573
        %v2344 = vunpack.c.l.b16 %v574
        %v2345 = vunpack.c.h.b16 %v574
        %v2346 = vunpack.c.l.b16 %v575
        %v2347 = vunpack.c.h.b16 %v575
        %v2348 = vunpack.c.l.b16 %v576
        %v2349 = vunpack.c.l.b16 %v577
        %v2350 = vunpack.c.h.b16 %v577
        %v2351 = vunpack.c.l.b16 %v578
        %v2352 = vunpack.c.h.b16 %v578
        %v2353 = vunpack.c.l.b16 %v579
        %v2354 = vunpack.c.l.b16 %v580
        %v2355 = vunpack.c.h.b16 %v580
        %v2356 = vunpack.c.l.b16 %v581
        %v2357 = vunpack.c.h.b16 %v581
        %v2358 = vunpack.c.l.b16 %v582
        %v2359 = vunpack.c.l.b16 %v583
        %v2360 = vunpack.c.h.b16 %v583
        %v2361 = vunpack.c.l.b16 %v584
        %v2362 = vunpack.c.h.b16 %v584
        %v2363 = vunpack.c.l.b16 %v585
        %v2364 = vunpack.c.l.b16 %v586
        %v2365 = vunpack.c.h.b16 %v586
        %v2366 = vunpack.c.l.b16 %v587
        %v2367 = vunpack.c.h.b16 %v587
        %v2368 = vunpack.c.l.b16 %v588
        %v2369 = vunpack.c.l.b16 %v589
        %v2370 = vunpack.c.h.b16 %v589
        %v2371 = vunpack.c.l.b16 %v590
        %v2372 = vunpack.c.h.b16 %v590
        %v2373 = vunpack.c.l.b16 %v591
        %v2374 = vunpack.c.l.b16 %v592
        %v2375 = vunpack.c.h.b16 %v592
        %v2376 = vunpack.c.l.b16 %v593
        %v2377 = vunpack.c.h.b16 %v593
        %v2378 = vunpack.c.l.b16 %v594
        %v2379 = vunpack.c.l.b16 %v595
        %v2380 = vunpack.c.h.b16 %v595
        %v2381 = vunpack.c.l.b16 %v596
        %v2382 = vunpack.c.h.b16 %v596
        %v2383 = vunpack.c.l.b16 %v597
        %v2384 = vunpack.c.l.b16 %v598
        %v2385 = vunpack.c.h.b16 %v598
        %v2386 = vunpack.c.l.b16 %v599
        %v2387 = vunpack.c.h.b16 %v599
        %v2388 = vunpack.c.l.b16 %v600
        %v2389 = vunpack.c.l.b16 %v601
        %v2390 = vunpack.c.h.b16 %v601
        %v2391 = vunpack.c.l.b16 %v602
        %v2392 = vunpack.c.h.b16 %v602
        %v2393 = vunpack.c.l.b16 %v603
        %v2394 = vunpack.c.l.b16 %v604
        %v2395 = vunpack.c.h.b16 %v604
        %v2396 = vunpack.c.l.b16 %v605
        %v2397 = vunpack.c.h.b16 %v605
        %v2398 = vunpack.c.l.b16 %v606
        %v2399 = vunpack.c.l.b16 %v607
        %v2400 = vunpack.c.h.b16 %v607
        %v2401 = vunpack.c.l.b16 %v608
        %v2402 = vunpack.c.h.b16 %v608
        %v2403 = vunpack.c.l.b16 %v609
        %v2404 = vunpack.c.l.b16 %v610
        %v2405 = vunpack.c.h.b16 %v610
        %v2406 = vunpack.c.l.b16 %v611
        %v2407 = vunpack.c.h.b16 %v611
        %v2408 = vunpack.c.l.b16 %v612
        %v2409 = vunpack.c.l.b16 %v613
        %v2410 = vunpack.c.h.b16 %v613
        %v2411 = vunpack.c.l.b16 %v614
        %v2412 = vunpack.c.h.b16 %v614
        %v2413 = vunpack.c.l.b16 %v615
        %v2414 = vunpack.c.l.b16 %v616
        %v2415 = vunpack.c.h.b16 %v616
        %v2416 = vunpack.c.l.b16 %v617
        %v2417 = vunpack.c.h.b16 %v617
        %v2418 = vunpack.c.l.b16 %v618
        %v2419 = vunpack.c.l.b16 %v619
        %v2420 = vunpack.c.h.b16 %v619
        %v2421 = vunpack.c.l.b16 %v620
        %v2422 = vunpack.c.h.b16 %v620
        %v2423 = vunpack.c.l.b16 %v621
        %v2424 = vunpack.c.l.b16 %v622
        %v2425 = vunpack.c.h.b16 %v622
        %v2426 = vunpack.c.l.b16 %v623
        %v2427 = vunpack.c.h.b16 %v623
        %v2428 = vunpack.c.l.b16 %v624
        %v2429 = vunpack.c.l.b16 %v625
        %v2430 = vunpack.c.h.b16 %v625
        %v2431 = vunpack.c.l.b16 %v626
        %v2432 = vunpack.c.h.b16 %v626
        %v2433 = vunpack.c.l.b16 %v627
        %v2434 = vunpack.c.l.b16 %v628
        %v2435 = vunpack.c.h.b16 %v628
        %v2436 = vunpack.c.l.b16 %v629
        %v2437 = vunpack.c.h.b16 %v629
        %v2438 = vunpack.c.l.b16 %v630
        %v2439 = vunpack.c.l.b16 %v631
        %v2440 = vunpack.c.h.b16 %v631
        %v2441 = vunpack.c.l.b16 %v632
        %v2442 = vunpack.c.h.b16 %v632
        %v2443 = vunpack.c.l.b16 %v633
        %v2444 = vunpack.c.l.b16 %v634
        %v2445 = vunpack.c.h.b16 %v634
        %v2446 = vunpack.c.l.b16 %v635
        %v2447 = vunpack.c.h.b16 %v635
        %v2448 = vunpack.c.l.b16 %v636
        %v2449 = vunpack.c.l.b16 %v637
        %v2450 = vunpack.c.h.b16 %v637
        %v2451 = vunpack.c.l.b16 %v638
        %v2452 = vunpack.c.h.b16 %v638
        %v2453 = vunpack.c.l.b16 %v639
        %v2454 = vunpack.c.l.b16 %v640
        %v2455 = vunpack.c.h.b16 %v640
        %v2456 = vunpack.c.l.b16 %v641
        %v2457 = vunpack.c.h.b16 %v641
        %v2458 = vunpack.c.l.b16 %v642
        %v2459 = vunpack.c.l.b16 %v643
        %v2460 = vunpack.c.h.b16 %v643
        %v2461 = vunpack.c.l.b16 %v644
        %v2462 = vunpack.c.h.b16 %v644
        %v2463 = vunpack.c.l.b16 %v645
        %v2464 = vunpack.c.l.b16 %v646
        %v2465 = vunpack.c.h.b16 %v646
        %v2466 = vunpack.c.l.b16 %v647
        %v2467 = vunpack.c.h.b16 %v647
        %v2468 = vunpack.c.l.b16 %v648
        %v2469 = vunpack.c.l.b16 %v649
        %v2470 = vunpack.c.h.b16 %v649
        %v2471 = vunpack.c.l.b16 %v650
        %v2472 = vunpack.c.h.b16 %v650
        %v2473 = vunpack.c.l.b16 %v651
        %v2474 = vunpack.c.l.b16 %v652
        %v2475 = vunpack.c.h.b16 %v652
        %v2476 = vunpack.c.l.b16 %v653
        %v2477 = vunpack.c.h.b16 %v653
        %v2478 = vunpack.c.l.b16 %v654
        %v2479 = vunpack.c.l.b16 %v655
        %v2480 = vunpack.c.h.b16 %v655
        %v2481 = vunpack.c.l.b16 %v656
        %v2482 = vunpack.c.h.b16 %v656
        %v2483 = vunpack.c.l.b16 %v657
        %v2484 = vunpack.c.l.b16 %v658
        %v2485 = vunpack.c.h.b16 %v658
        %v2486 = vunpack.c.l.b16 %v659
        %v2487 = vunpack.c.h.b16 %v659
        %v2488 = vunpack.c.l.b16 %v660
        %v2489 = vunpack.c.l.b16 %v661
        %v2490 = vunpack.c.h.b16 %v661
        %v2491 = vunpack.c.l.b16 %v662
        %v2492 = vunpack.c.h.b16 %v662
        %v2493 = vunpack.c.l.b16 %v663
        %v2494 = vunpack.c.l.b16 %v664
        %v2495 = vunpack.c.h.b16 %v664
        %v2496 = vunpack.c.l.b16 %v665
        %v2497 = vunpack.c.h.b16 %v665
        %v2498 = vunpack.c.l.b16 %v666
        %v2499 = vunpack.c.l.b16 %v667
        %v2500 = vunpack.c.h.b16 %v667
        %v2501 = vunpack.c.l.b16 %v668
        %v2502 = vunpack.c.h.b16 %v668
        %v2503 = vunpack.c.l.b16 %v669
        %v2504 = vunpack.c.l.b16 %v670
        %v2505 = vunpack.c.h.b16 %v670
        %v2506 = vunpack.c.l.b16 %v671
        %v2507 = vunpack.c.h.b16 %v671
        %v2508 = vunpack.c.l.b16 %v672
        %v2509 = vunpack.c.l.b16 %v673
        %v2510 = vunpack.c.h.b16 %v673
        %v2511 = vunpack.c.l.b16 %v674
        %v2512 = vunpack.c.h.b16 %v674
        %v2513 = vunpack.c.l.b16 %v675
        %v2514 = vunpack.c.l.b16 %v676
        %v2515 = vunpack.c.h.b16 %v676
        %v2516 = vunpack.c.l.b16 %v677
        %v2517 = vunpack.c.h.b16 %v677
        %v2518 = vunpack.c.l.b16 %v678
        %v2519 = vunpack.c.l.b16 %v679
        %v2520 = vunpack.c.h.b16 %v679
        %v2521 = vunpack.c.l.b16 %v680
        %v2522 = vunpack.c.h.b16 %v680
        %v2523 = vunpack.c.l.b16 %v681
        %v2524 = vunpack.c.l.b16 %v682
        %v2525 = vunpack.c.h.b16 %v682
        %v2526 = vunpack.c.l.b16 %v683
        %v2527 = vunpack.c.h.b16 %v683
        %v2528 = vunpack.c.l.b16 %v684
        %v2529 = vunpack.c.l.b16 %v685
        %v2530 = vunpack.c.h.b16 %v685
        %v2531 = vunpack.c.l.b16 %v686
        %v2532 = vunpack.c.h.b16 %v686
        %v2533 = vunpack.c.l.b16 %v687
        %v2534 = vunpack.c.l.b16 %v688
        %v2535 = vunpack.c.h.b16 %v688
        %v2536 = vunpack.c.l.b16 %v689
        %v2537 = vunpack.c.h.b16 %v689
        %v2538 = vunpack.c.l.b16 %v690
        %v2539 = vunpack.c.l.b16 %v691
        %v2540 = vunpack.c.h.b16 %v691
        %v2541 = vunpack.c.l.b16 %v692
        %v2542 = vunpack.c.h.b16 %v692
        %v2543 = vunpack.c.l.b16 %v693
        %v2544 = vunpack.c.l.b16 %v694
        %v2545 = vunpack.c.h.b16 %v694
        %v2546 = vunpack.c.l.b16 %v695
        %v2547 = vunpack.c.h.b16 %v695
        %v2548 = vunpack.c.l.b16 %v696
        %v2549 = vunpack.c.l.b16 %v697
        %v2550 = vunpack.c.h.b16 %v697
        %v2551 = vunpack.c.l.b16 %v698
        %v2552 = vunpack.c.h.b16 %v698
        %v2553 = vunpack.c.l.b16 %v699
        %v2554 = vunpack.c.l.b16 %v700
        %v2555 = vunpack.c.h.b16 %v700
        %v2556 = vunpack.c.l.b16 %v701
        %v2557 = vunpack.c.h.b16 %v701
        %v2558 = vunpack.c.l.b16 %v702
        %v2559 = vunpack.c.l.b16 %v703
        %v2560 = vunpack.c.h.b16 %v703
        %v2561 = vunpack.c.l.b16 %v704
        %v2562 = vunpack.c.h.b16 %v704
        %v2563 = vunpack.c.l.b16 %v705
        %v2564 = vunpack.c.l.b16 %v706
        %v2565 = vunpack.c.h.b16 %v706
        %v2566 = vunpack.c.l.b16 %v707
        %v2567 = vunpack.c.h.b16 %v707
        %v2568 = vunpack.c.l.b16 %v708
        %v2569 = vunpack.c.l.b16 %v709
        %v2570 = vunpack.c.h.b16 %v709
        %v2571 = vunpack.c.l.b16 %v710
        %v2572 = vunpack.c.h.b16 %v710
        %v2573 = vunpack.c.l.b16 %v711
        %v2574 = vunpack.c.l.b16 %v712
        %v2575 = vunpack.c.h.b16 %v712
        %v2576 = vunpack.c.l.b16 %v713
        %v2577 = vunpack.c.h.b16 %v713
        %v2578 = vunpack.c.l.b16 %v714
        %v2579 = vunpack.c.l.b16 %v715
        %v2580 = vunpack.c.h.b16 %v715
        %v2581 = vunpack.c.l.b16 %v716
        %v2582 = vunpack.c.h.b16 %v716
        %v2583 = vunpack.c.l.b16 %v717
        %v2584 = vunpack.c.l.b16 %v718
        %v2585 = vunpack.c.h.b16 %v718
        %v2586 = vunpack.c.l.b16 %v719
        %v2587 = vunpack.c.h.b16 %v719
        %v2588 = vunpack.c.l.b16 %v720
        %v2589 = vunpack.c.l.b16 %v721
        %v2590 = vunpack.c.h.b16 %v721
        %v2591 = vunpack.c.l.b16 %v722
        %v2592 = vunpack.c.h.b16 %v722
        %v2593 = vunpack.c.l.b16 %v723
        %v2594 = vunpack.c.l.b16 %v724
        %v2595 = vunpack.c.h.b16 %v724
        %v2596 = vunpack.c.l.b16 %v725
        %v2597 = vunpack.c.h.b16 %v725
        %v2598 = vunpack.c.l.b16 %v726
        %v2599 = vunpack.c.l.b16 %v727
        %v2600 = vunpack.c.h.b16 %v727
        %v2601 = vunpack.c.l.b16 %v728
        %v2602 = vunpack.c.h.b16 %v728
        %v2603 = vunpack.c.l.b16 %v729
        %v2604 = vunpack.c.l.b16 %v730
        %v2605 = vunpack.c.h.b16 %v730
        %v2606 = vunpack.c.l.b16 %v731
        %v2607 = vunpack.c.h.b16 %v731
        %v2608 = vunpack.c.l.b16 %v732
        %v2609 = vunpack.c.l.b16 %v733
        %v2610 = vunpack.c.h.b16 %v733
        %v2611 = vunpack.c.l.b16 %v734
        %v2612 = vunpack.c.h.b16 %v734
        %v2613 = vunpack.c.l.b16 %v735
        %v2614 = vunpack.c.l.b16 %v736
        %v2615 = vunpack.c.h.b16 %v736
        %v2616 = vunpack.c.l.b16 %v737
        %v2617 = vunpack.c.h.b16 %v737
        %v2618 = vunpack.c.l.b16 %v738
        %v2619 = vunpack.c.l.b16 %v739
        %v2620 = vunpack.c.h.b16 %v739
        %v2621 = vunpack.c.l.b16 %v740
        %v2622 = vunpack.c.h.b16 %v740
        %v2623 = vunpack.c.l.b16 %v741
        %v2624 = vunpack.c.l.b16 %v742
        %v2625 = vunpack.c.h.b16 %v742
        %v2626 = vunpack.c.l.b16 %v743
        %v2627 = vunpack.c.h.b16 %v743
        %v2628 = vunpack.c.l.b16 %v744
        %v2629 = vunpack.c.l.b16 %v745
        %v2630 = vunpack.c.h.b16 %v745
        %v2631 = vunpack.c.l.b16 %v746
        %v2632 = vunpack.c.h.b16 %v746
        %v2633 = vunpack.c.l.b16 %v747
        %v2634 = vunpack.c.l.b16 %v748
        %v2635 = vunpack.c.h.b16 %v748
        %v2636 = vunpack.c.l.b16 %v749
        %v2637 = vunpack.c.h.b16 %v749
        %v2638 = vunpack.c.l.b16 %v750
        %v2639 = vunpack.c.l.b16 %v751
        %v2640 = vunpack.c.h.b16 %v751
        %v2641 = vunpack.c.l.b16 %v752
        %v2642 = vunpack.c.h.b16 %v752
        %v2643 = vunpack.c.l.b16 %v753
        %v2644 = vunpack.c.l.b16 %v754
        %v2645 = vunpack.c.h.b16 %v754
        %v2646 = vunpack.c.l.b16 %v755
        %v2647 = vunpack.c.h.b16 %v755
        %v2648 = vunpack.c.l.b16 %v756
        %v2649 = vunpack.c.l.b16 %v757
        %v2650 = vunpack.c.h.b16 %v757
        %v2651 = vunpack.c.l.b16 %v758
        %v2652 = vunpack.c.h.b16 %v758
        %v2653 = vunpack.c.l.b16 %v759
        %v2654 = vunpack.c.l.b16 %v760
        %v2655 = vunpack.c.h.b16 %v760
        %v2656 = vunpack.c.l.b16 %v761
        %v2657 = vunpack.c.h.b16 %v761
        %v2658 = vunpack.c.l.b16 %v762
        %v2659 = vunpack.c.l.b16 %v763
        %v2660 = vunpack.c.h.b16 %v763
        %v2661 = vunpack.c.l.b16 %v764
        %v2662 = vunpack.c.h.b16 %v764
        %v2663 = vunpack.c.l.b16 %v765
        %v2664 = vunpack.c.l.b16 %v766
        %v2665 = vunpack.c.h.b16 %v766
        %v2666 = vunpack.c.l.b16 %v767
        %v2667 = vunpack.c.h.b16 %v767
        %v2668 = vunpack.c.l.b16 %v768
        %v2669 = vunpack.c.l.b16 %v769
        %v2670 = vunpack.c.h.b16 %v769
        %v2671 = vunpack.c.l.b16 %v770
        %v2672 = vunpack.c.h.b16 %v770
        %v2673 = vunpack.c.l.b16 %v771
        %v2674 = vunpack.c.l.b16 %v772
        %v2675 = vunpack.c.h.b16 %v772
        %v2676 = vunpack.c.l.b16 %v773
        %v2677 = vunpack.c.h.b16 %v773
        %v2678 = vunpack.c.l.b16 %v774
        %v2679 = vunpack.c.l.b16 %v775
        %v2680 = vunpack.c.h.b16 %v775
        %v2681 = vunpack.c.l.b16 %v776
        %v2682 = vunpack.c.h.b16 %v776
        %v2683 = vunpack.c.l.b16 %v777
        %v2684 = vunpack.c.l.b16 %v778
        %v2685 = vunpack.c.h.b16 %v778
        %v2686 = vunpack.c.l.b16 %v779
        %v2687 = vunpack.c.h.b16 %v779
        %v2688 = vunpack.c.l.b16 %v780
        %v2689 = vunpack.c.l.b16 %v781
        %v2690 = vunpack.c.h.b16 %v781
        %v2691 = vunpack.c.l.b16 %v782
        %v2692 = vunpack.c.h.b16 %v782
        %v2693 = vunpack.c.l.b16 %v783
        %v2694 = vunpack.c.l.b16 %v784
        %v2695 = vunpack.c.h.b16 %v784
        %v2696 = vunpack.c.l.b16 %v785
        %v2697 = vunpack.c.h.b16 %v785
        %v2698 = vunpack.c.l.b16 %v786
        %v2699 = vunpack.c.l.b16 %v787
        %v2700 = vunpack.c.h.b16 %v787
        %v2701 = vunpack.c.l.b16 %v788
        %v2702 = vunpack.c.h.b16 %v788
        %v2703 = vunpack.c.l.b16 %v789
        %v2704 = vunpack.c.l.b16 %v790
        %v2705 = vunpack.c.h.b16 %v790
        %v2706 = vunpack.c.l.b16 %v791
        %v2707 = vunpack.c.h.b16 %v791
        %v2708 = vunpack.c.l.b16 %v792
        %v2709 = vunpack.c.l.b16 %v793
        %v2710 = vunpack.c.h.b16 %v793
        %v2711 = vunpack.c.l.b16 %v794
        %v2712 = vunpack.c.h.b16 %v794
        %v2713 = vunpack.c.l.b16 %v795
        %v2714 = vunpack.c.l.b16 %v796
        %v2715 = vunpack.c.h.b16 %v796
        %v2716 = vunpack.c.l.b16 %v797
        %v2717 = vunpack.c.h.b16 %v797
        %v2718 = vunpack.c.l.b16 %v798
        %v2719 = vunpack.c.l.b16 %v799
        %v2720 = vunpack.c.h.b16 %v799
        %v2721 = vunpack.c.l.b16 %v800
        %v2722 = vunpack.c.h.b16 %v800
        %v2723 = vunpack.c.l.b16 %v801
        %v2724 = vunpack.c.l.b16 %v802
        %v2725 = vunpack.c.h.b16 %v802
        %v2726 = vunpack.c.l.b16 %v803
        %v2727 = vunpack.c.h.b16 %v803
        %v2728 = vunpack.c.l.b16 %v804
        %v2729 = vunpack.c.l.b16 %v805
        %v2730 = vunpack.c.h.b16 %v805
        %v2731 = vunpack.c.l.b16 %v806
        %v2732 = vunpack.c.h.b16 %v806
        %v2733 = vunpack.c.l.b16 %v807
        %v2734 = vunpack.c.l.b16 %v808
        %v2735 = vunpack.c.h.b16 %v808
        %v2736 = vunpack.c.l.b16 %v809
        %v2737 = vunpack.c.h.b16 %v809
        %v2738 = vunpack.c.l.b16 %v810
        %v2739 = vunpack.c.l.b16 %v811
        %v2740 = vunpack.c.h.b16 %v811
        %v2741 = vunpack.c.l.b16 %v812
        %v2742 = vunpack.c.h.b16 %v812
        %v2743 = vunpack.c.l.b16 %v813
        %v2744 = vunpack.c.l.b16 %v814
        %v2745 = vunpack.c.h.b16 %v814
        %v2746 = vunpack.c.l.b16 %v815
        %v2747 = vunpack.c.h.b16 %v815
        %v2748 = vunpack.c.l.b16 %v816
        %v2749 = vunpack.c.l.b16 %v817
        %v2750 = vunpack.c.h.b16 %v817
        %v2751 = vunpack.c.l.b16 %v818
        %v2752 = vunpack.c.h.b16 %v818
        %v2753 = vunpack.c.l.b16 %v819
        %v2754 = vunpack.c.l.b16 %v820
        %v2755 = vunpack.c.h.b16 %v820
        %v2756 = vunpack.c.l.b16 %v821
        %v2757 = vunpack.c.h.b16 %v821
        %v2758 = vunpack.c.l.b16 %v822
        %v2759 = vunpack.c.l.b16 %v823
        %v2760 = vunpack.c.h.b16 %v823
        %v2761 = vunpack.c.l.b16 %v824
        %v2762 = vunpack.c.h.b16 %v824
        %v2763 = vunpack.c.l.b16 %v825
        %v2764 = vunpack.c.l.b16 %v826
        %v2765 = vunpack.c.h.b16 %v826
        %v2766 = vunpack.c.l.b16 %v827
        %v2767 = vunpack.c.h.b16 %v827
        %v2768 = vunpack.c.l.b16 %v828
        %v2769 = vunpack.c.l.b16 %v829
        %v2770 = vunpack.c.h.b16 %v829
        %v2771 = vunpack.c.l.b16 %v830
        %v2772 = vunpack.c.h.b16 %v830
        %v2773 = vunpack.c.l.b16 %v831
        %v2774 = vunpack.c.l.b16 %v832
        %v2775 = vunpack.c.h.b16 %v832
        %v2776 = vunpack.c.l.b16 %v833
        %v2777 = vunpack.c.h.b16 %v833
        %v2778 = vunpack.c.l.b16 %v834
        %v2779 = vunpack.c.l.b16 %v835
        %v2780 = vunpack.c.h.b16 %v835
        %v2781 = vunpack.c.l.b16 %v836
        %v2782 = vunpack.c.h.b16 %v836
        %v2783 = vunpack.c.l.b16 %v837
        %v2784 = vunpack.c.l.b16 %v838
        %v2785 = vunpack.c.h.b16 %v838
        %v2786 = vunpack.c.l.b16 %v839
        %v2787 = vunpack.c.h.b16 %v839
        %v2788 = vunpack.c.l.b16 %v840
        %v2789 = vunpack.c.l.b16 %v841
        %v2790 = vunpack.c.h.b16 %v841
        %v2791 = vunpack.c.l.b16 %v842
        %v2792 = vunpack.c.h.b16 %v842
        %v2793 = vunpack.c.l.b16 %v843
        %v2794 = vunpack.c.l.b16 %v844
        %v2795 = vunpack.c.h.b16 %v844
        %v2796 = vunpack.c.l.b16 %v845
        %v2797 = vunpack.c.h.b16 %v845
        %v2798 = vunpack.c.l.b16 %v846
        %v2799 = vunpack.c.l.b16 %v847
        %v2800 = vunpack.c.h.b16 %v847
        %v2801 = vunpack.c.l.b16 %v848
        %v2802 = vunpack.c.h.b16 %v848
        %v2803 = vunpack.c.l.b16 %v849
        %v2804 = vunpack.c.l.b16 %v850
        %v2805 = vunpack.c.h.b16 %v850
        %v2806 = vunpack.c.l.b16 %v851
        %v2807 = vunpack.c.h.b16 %v851
        %v2808 = vunpack.c.l.b16 %v852
        %v2809 = vunpack.c.l.b16 %v853
        %v2810 = vunpack.c.h.b16 %v853
        %v2811 = vunpack.c.l.b16 %v854
        %v2812 = vunpack.c.h.b16 %v854
        %v2813 = vunpack.c.l.b16 %v855
        %v2814 = vunpack.c.l.b16 %v856
        %v2815 = vunpack.c.h.b16 %v856
        %v2816 = vunpack.c.l.b16 %v857
        %v2817 = vunpack.c.h.b16 %v857
        %v2818 = vunpack.c.l.b16 %v858
        %v2819 = vunpack.c.l.b16 %v859
        %v2820 = vunpack.c.h.b16 %v859
        %v2821 = vunpack.c.l.b16 %v860
        %v2822 = vunpack.c.h.b16 %v860
        %v2823 = vunpack.c.l.b16 %v861
        %v2824 = vunpack.c.l.b16 %v862
        %v2825 = vunpack.c.h.b16 %v862
        %v2826 = vunpack.c.l.b16 %v863
        %v2827 = vunpack.c.h.b16 %v863
        %v2828 = vunpack.c.l.b16 %v864
        %v2829 = vunpack.c.l.b16 %v865
        %v2830 = vunpack.c.h.b16 %v865
        %v2831 = vunpack.c.l.b16 %v866
        %v2832 = vunpack.c.h.b16 %v866
        %v2833 = vunpack.c.l.b16 %v867
        %v2834 = vunpack.c.l.b16 %v868
        %v2835 = vunpack.c.h.b16 %v868
        %v2836 = vunpack.c.l.b16 %v869
        %v2837 = vunpack.c.h.b16 %v869
        %v2838 = vunpack.c.l.b16 %v870
        %v2839 = vunpack.c.l.b16 %v871
        %v2840 = vunpack.c.h.b16 %v871
        %v2841 = vunpack.c.l.b16 %v872
        %v2842 = vunpack.c.h.b16 %v872
        %v2843 = vunpack.c.l.b16 %v873
        %v2844 = vunpack.c.l.b16 %v874
        %v2845 = vunpack.c.h.b16 %v874
        %v2846 = vunpack.c.l.b16 %v875
        %v2847 = vunpack.c.h.b16 %v875
        %v2848 = vunpack.c.l.b16 %v876
        %v2849 = vunpack.c.l.b16 %v877
        %v2850 = vunpack.c.h.b16 %v877
        %v2851 = vunpack.c.l.b16 %v878
        %v2852 = vunpack.c.h.b16 %v878
        %v2853 = vunpack.c.l.b16 %v879
        %v2854 = vunpack.c.l.b16 %v880
        %v2855 = vunpack.c.h.b16 %v880
        %v2856 = vunpack.c.l.b16 %v881
        %v2857 = vunpack.c.h.b16 %v881
        %v2858 = vunpack.c.l.b16 %v882
        %v2859 = vunpack.c.l.b16 %v883
        %v2860 = vunpack.c.h.b16 %v883
        %v2861 = vunpack.c.l.b16 %v884
        %v2862 = vunpack.c.h.b16 %v884
        %v2863 = vunpack.c.l.b16 %v885
        %v2864 = vunpack.c.l.b16 %v886
        %v2865 = vunpack.c.h.b16 %v886
        %v2866 = vunpack.c.l.b16 %v887
        %v2867 = vunpack.c.h.b16 %v887
        %v2868 = vunpack.c.l.b16 %v888
        %v2869 = vunpack.c.l.b16 %v889
        %v2870 = vunpack.c.h.b16 %v889
        %v2871 = vunpack.c.l.b16 %v890
        %v2872 = vunpack.c.h.b16 %v890
        %v2873 = vunpack.c.l.b16 %v891
        %v2874 = vunpack.c.l.b16 %v892
        %v2875 = vunpack.c.h.b16 %v892
        %v2876 = vunpack.c.l.b16 %v893
        %v2877 = vunpack.c.h.b16 %v893
        %v2878 = vunpack.c.l.b16 %v894
        %v2879 = vunpack.c.l.b16 %v895
        %v2880 = vunpack.c.h.b16 %v895
        %v2881 = vunpack.c.l.b16 %v896
        %v2882 = vunpack.c.h.b16 %v896
        %v2883 = vunpack.c.l.b16 %v897
        %v2884 = vunpack.c.l.b16 %v898
        %v2885 = vunpack.c.h.b16 %v898
        %v2886 = vunpack.c.l.b16 %v899
        %v2887 = vunpack.c.h.b16 %v899
        %v2888 = vunpack.c.l.b16 %v900
        %v2889 = vunpack.c.l.b16 %v901
        %v2890 = vunpack.c.h.b16 %v901
        %v2891 = vunpack.c.l.b16 %v902
        %v2892 = vunpack.c.h.b16 %v902
        %v2893 = vunpack.c.l.b16 %v903
        %v2894 = vunpack.c.l.b16 %v904
        %v2895 = vunpack.c.h.b16 %v904
        %v2896 = vunpack.c.l.b16 %v905
        %v2897 = vunpack.c.h.b16 %v905
        %v2898 = vunpack.c.l.b16 %v906
        %v2899 = vunpack.c.l.b16 %v907
        %v2900 = vunpack.c.h.b16 %v907
        %v2901 = vunpack.c.l.b16 %v908
        %v2902 = vunpack.c.h.b16 %v908
        %v2903 = vunpack.c.l.b16 %v909
        %v2904 = vunpack.c.l.b16 %v910
        %v2905 = vunpack.c.h.b16 %v910
        %v2906 = vunpack.c.l.b16 %v911
        %v2907 = vunpack.c.h.b16 %v911
        %v2908 = vunpack.c.l.b16 %v912
        %v2909 = vunpack.c.l.b16 %v913
        %v2910 = vunpack.c.h.b16 %v913
        %v2911 = vunpack.c.l.b16 %v914
        %v2912 = vunpack.c.h.b16 %v914
        %v2913 = vunpack.c.l.b16 %v915
        %v2914 = vunpack.c.l.b16 %v916
        %v2915 = vunpack.c.h.b16 %v916
        %v2916 = vunpack.c.l.b16 %v917
        %v2917 = vunpack.c.h.b16 %v917
        %v2918 = vunpack.c.l.b16 %v918
        %v2919 = vunpack.c.l.b16 %v919
        %v2920 = vunpack.c.h.b16 %v919
        %v2921 = vunpack.c.l.b16 %v920
        %v2922 = vunpack.c.h.b16 %v920
        %v2923 = vunpack.c.l.b16 %v921
        %v2924 = vunpack.c.l.b16 %v922
        %v2925 = vunpack.c.h.b16 %v922
        %v2926 = vunpack.c.l.b16 %v923
        %v2927 = vunpack.c.h.b16 %v923
        %v2928 = vunpack.c.l.b16 %v924
        %v2929 = vunpack.c.l.b16 %v925
        %v2930 = vunpack.c.h.b16 %v925
        %v2931 = vunpack.c.l.b16 %v926
        %v2932 = vunpack.c.h.b16 %v926
        %v2933 = vunpack.c.l.b16 %v927
        %v2934 = vunpack.c.l.b16 %v928
        %v2935 = vunpack.c.h.b16 %v928
        %v2936 = vunpack.c.l.b16 %v929
        %v2937 = vunpack.c.h.b16 %v929
        %v2938 = vunpack.c.l.b16 %v930
        %v2939 = vunpack.c.l.b16 %v931
        %v2940 = vunpack.c.h.b16 %v931
        %v2941 = vunpack.c.l.b16 %v932
        %v2942 = vunpack.c.h.b16 %v932
        %v2943 = vunpack.c.l.b16 %v933
        %v2944 = vunpack.c.l.b16 %v934
        %v2945 = vunpack.c.h.b16 %v934
        %v2946 = vunpack.c.l.b16 %v935
        %v2947 = vunpack.c.h.b16 %v935
        %v2948 = vunpack.c.l.b16 %v936
        %v2949 = vunpack.c.l.b16 %v937
        %v2950 = vunpack.c.h.b16 %v937
        %v2951 = vunpack.c.l.b16 %v938
        %v2952 = vunpack.c.h.b16 %v938
        %v2953 = vunpack.c.l.b16 %v939
        %v2954 = vunpack.c.l.b16 %v940
        %v2955 = vunpack.c.h.b16 %v940
        %v2956 = vunpack.c.l.b16 %v941
        %v2957 = vunpack.c.h.b16 %v941
        %v2958 = vunpack.c.l.b16 %v942
        %v2959 = vunpack.c.l.b16 %v943
        %v2960 = vunpack.c.h.b16 %v943
        %v2961 = vunpack.c.l.b16 %v944
        %v2962 = vunpack.c.h.b16 %v944
        %v2963 = vunpack.c.l.b16 %v945
        %v2964 = vunpack.c.l.b16 %v946
        %v2965 = vunpack.c.h.b16 %v946
        %v2966 = vunpack.c.l.b16 %v947
        %v2967 = vunpack.c.h.b16 %v947
        %v2968 = vunpack.c.l.b16 %v948
        %v2969 = vunpack.c.l.b16 %v949
        %v2970 = vunpack.c.h.b16 %v949
        %v2971 = vunpack.c.l.b16 %v950
        %v2972 = vunpack.c.h.b16 %v950
        %v2973 = vunpack.c.l.b16 %v951
        %v2974 = vunpack.c.l.b16 %v952
        %v2975 = vunpack.c.h.b16 %v952
        %v2976 = vunpack.c.l.b16 %v953
        %v2977 = vunpack.c.h.b16 %v953
        %v2978 = vunpack.c.l.b16 %v954
        %v2979 = vunpack.c.l.b16 %v955
        %v2980 = vunpack.c.h.b16 %v955
        %v2981 = vunpack.c.l.b16 %v956
        %v2982 = vunpack.c.h.b16 %v956
        %v2983 = vunpack.c.l.b16 %v957
        %v2984 = vunpack.c.l.b16 %v958
        %v2985 = vunpack.c.h.b16 %v958
        %v2986 = vunpack.c.l.b16 %v959
        %v2987 = vunpack.c.h.b16 %v959
        %v2988 = vunpack.c.l.b16 %v960
        %v2989 = vunpack.c.l.b16 %v961
        %v2990 = vunpack.c.h.b16 %v961
        %v2991 = vunpack.c.l.b16 %v962
        %v2992 = vunpack.c.h.b16 %v962
        %v2993 = vunpack.c.l.b16 %v963
        %v2994 = vunpack.c.l.b16 %v964
        %v2995 = vunpack.c.h.b16 %v964
        %v2996 = vunpack.c.l.b16 %v965
        %v2997 = vunpack.c.h.b16 %v965
        %v2998 = vunpack.c.l.b16 %v966
        %v2999 = vunpack.c.l.b16 %v967
        %v3000 = vunpack.c.h.b16 %v967
        %v3001 = vunpack.c.l.b16 %v968
        %v3002 = vunpack.c.h.b16 %v968
        %v3003 = vunpack.c.l.b16 %v969
        %v3004 = vunpack.c.l.b16 %v970
        %v3005 = vunpack.c.h.b16 %v970
        %v3006 = vunpack.c.l.b16 %v971
        %v3007 = vunpack.c.h.b16 %v971
        %v3008 = vunpack.c.l.b16 %v972
        %v3009 = vunpack.c.l.b16 %v973
        %v3010 = vunpack.c.h.b16 %v973
        %v3011 = vunpack.c.l.b16 %v974
        %v3012 = vunpack.c.h.b16 %v974
        %v3013 = vunpack.c.l.b16 %v975
        %v3014 = vunpack.c.l.b16 %v976
        %v3015 = vunpack.c.h.b16 %v976
        %v3016 = vunpack.c.l.b16 %v977
        %v3017 = vunpack.c.h.b16 %v977
        %v3018 = vunpack.c.l.b16 %v978
        %v3019 = vunpack.c.l.b16 %v979
        %v3020 = vunpack.c.h.b16 %v979
        %v3021 = vunpack.c.l.b16 %v980
        %v3022 = vunpack.c.h.b16 %v980
        %v3023 = vunpack.c.l.b16 %v981
        %v3024 = vunpack.c.l.b16 %v982
        %v3025 = vunpack.c.h.b16 %v982
        %v3026 = vunpack.c.l.b16 %v983
        %v3027 = vunpack.c.h.b16 %v983
        %v3028 = vunpack.c.l.b16 %v984
        %v3029 = vunpack.c.l.b16 %v985
        %v3030 = vunpack.c.h.b16 %v985
        %v3031 = vunpack.c.l.b16 %v986
        %v3032 = vunpack.c.h.b16 %v986
        %v3033 = vunpack.c.l.b16 %v987
        %v3034 = vunpack.c.l.b16 %v988
        %v3035 = vunpack.c.h.b16 %v988
        %v3036 = vunpack.c.l.b16 %v989
        %v3037 = vunpack.c.h.b16 %v989
        %v3038 = vunpack.c.l.b16 %v990
        %v3039 = vunpack.c.l.b16 %v991
        %v3040 = vunpack.c.h.b16 %v991
        %v3041 = vunpack.c.l.b16 %v992
        %v3042 = vunpack.c.h.b16 %v992
        %v3043 = vunpack.c.l.b16 %v993
        %v3044 = vunpack.c.l.b16 %v994
        %v3045 = vunpack.c.h.b16 %v994
        %v3046 = vunpack.c.l.b16 %v995
        %v3047 = vunpack.c.h.b16 %v995
        %v3048 = vunpack.c.l.b16 %v996
        %v3049 = vunpack.c.l.b16 %v997
        %v3050 = vunpack.c.h.b16 %v997
        %v3051 = vunpack.c.l.b16 %v998
        %v3052 = vunpack.c.h.b16 %v998
        %v3053 = vunpack.c.l.b16 %v999
        %v3054 = vunpack.c.l.b16 %v1000
        %v3055 = vunpack.c.h.b16 %v1000
        %v3056 = vunpack.c.l.b16 %v1001
        %v3057 = vunpack.c.h.b16 %v1001
        %v3058 = vunpack.c.l.b16 %v1002
        %v3059 = vunpack.c.l.b16 %v1003
        %v3060 = vunpack.c.h.b16 %v1003
        %v3061 = vunpack.c.l.b16 %v1004
        %v3062 = vunpack.c.h.b16 %v1004
        %v3063 = vunpack.c.l.b16 %v1005
        %v3064 = vunpack.c.l.b16 %v1006
        %v3065 = vunpack.c.h.b16 %v1006
        %v3066 = vunpack.c.l.b16 %v1007
        %v3067 = vunpack.c.h.b16 %v1007
        %v3068 = vunpack.c.l.b16 %v1008
        %v3069 = vunpack.c.l.b16 %v1009
        %v3070 = vunpack.c.h.b16 %v1009
        %v3071 = vunpack.c.l.b16 %v1010
        %v3072 = vunpack.c.h.b16 %v1010
        %v3073 = vunpack.c.l.b16 %v1011
        %v3074 = vunpack.c.l.b16 %v1012
        %v3075 = vunpack.c.h.b16 %v1012
        %v3076 = vunpack.c.l.b16 %v1013
        %v3077 = vunpack.c.h.b16 %v1013
        %v3078 = vunpack.c.l.b16 %v1014
        %v3079 = vunpack.c.l.b16 %v1015
        %v3080 = vunpack.c.h.b16 %v1015
        %v3081 = vunpack.c.l.b16 %v1016
        %v3082 = vunpack.c.h.b16 %v1016
        %v3083 = vunpack.c.l.b16 %v1017
        %v3084 = vunpack.c.l.b16 %v1018
        %v3085 = vunpack.c.h.b16 %v1018
        %v3086 = vunpack.c.l.b16 %v1019
        %v3087 = vunpack.c.h.b16 %v1019
        %v3088 = vunpack.c.l.b16 %v1020
        %v3089 = vunpack.c.l.b16 %v1021
        %v3090 = vunpack.c.h.b16 %v1021
        %v3091 = vunpack.c.l.b16 %v1022
        %v3092 = vunpack.c.h.b16 %v1022
        %v3093 = vunpack.c.l.b16 %v1023
        %v3094 = vunpack.c.l.b16 %v1024
        %v3095 = vunpack.c.h.b16 %v1024
        %v3096 = vunpack.c.l.b16 %v1025
        %v3097 = vunpack.c.h.b16 %v1025
        %v3098 = vunpack.c.l.b16 %v1026
        %v3099 = vunpack.c.l.b16 %v1027
        %v3100 = vunpack.c.h.b16 %v1027
        %v3101 = vunpack.c.l.b16 %v1028
        %v3102 = vunpack.c.h.b16 %v1028
        %v3103 = vunpack.c.l.b16 %v1029
        %v3104 = vunpack.c.l.b16 %v1030
        %v3105 = vunpack.c.h.b16 %v1030
        %v3106 = vunpack.c.l.b16 %v1031
        %v3107 = vunpack.c.h.b16 %v1031
        %v3108 = vunpack.c.l.b16 %v1032
        %v3109 = vunpack.c.l.b16 %v1033
        %v3110 = vunpack.c.h.b16 %v1033
        %v3111 = vunpack.c.l.b16 %v1034
        %v3112 = vunpack.c.h.b16 %v1034
        %v3113 = vunpack.c.l.b16 %v1035
        %v3114 = vunpack.c.l.b16 %v1036
        %v3115 = vunpack.c.h.b16 %v1036
        %v3116 = vunpack.c.l.b16 %v1037
        %v3117 = vunpack.c.h.b16 %v1037
        %v3118 = vunpack.c.l.b16 %v1038
        %v3119 = vunpack.c.l.b16 %v1039
        %v3120 = vunpack.c.h.b16 %v1039
        %v3121 = vunpack.c.l.b16 %v1040
        %v3122 = vunpack.c.h.b16 %v1040
        %v3123 = vunpack.c.l.b16 %v1041
        %v3124 = vunpack.c.l.b16 %v1042
        %v3125 = vunpack.c.h.b16 %v1042
        %v3126 = vunpack.c.l.b16 %v1043
        %v3127 = vunpack.c.h.b16 %v1043
        %v3128 = vunpack.c.l.b16 %v1044
        %v3129 = vunpack.c.l.b16 %v1045
        %v3130 = vunpack.c.h.b16 %v1045
        %v3131 = vunpack.c.l.b16 %v1046
        %v3132 = vunpack.c.h.b16 %v1046
        %v3133 = vunpack.c.l.b16 %v1047
        %v3134 = vunpack.c.l.b16 %v1048
        %v3135 = vunpack.c.h.b16 %v1048
        %v3136 = vunpack.c.l.b16 %v1049
        %v3137 = vunpack.c.h.b16 %v1049
        %v3138 = vunpack.c.l.b16 %v1050
        %v3139 = vunpack.c.l.b16 %v1051
        %v3140 = vunpack.c.h.b16 %v1051
        %v3141 = vunpack.c.l.b16 %v1052
        %v3142 = vunpack.c.h.b16 %v1052
        %v3143 = vunpack.c.l.b16 %v1053
        %v3144 = vunpack.c.l.b16 %v1054
        %v3145 = vunpack.c.h.b16 %v1054
        %v3146 = vunpack.c.l.b16 %v1055
        %v3147 = vunpack.c.h.b16 %v1055
        %v3148 = vunpack.c.l.b16 %v1056
        %v3149 = vunpack.c.l.b16 %v1057
        %v3150 = vunpack.c.h.b16 %v1057
        %v3151 = vunpack.c.l.b16 %v1058
        %v3152 = vunpack.c.h.b16 %v1058
        %v3153 = vunpack.c.l.b16 %v1059
        %v3154 = vunpack.c.l.b16 %v1060
        %v3155 = vunpack.c.h.b16 %v1060
        %v3156 = vunpack.c.l.b16 %v1061
        %v3157 = vunpack.c.h.b16 %v1061
        %v3158 = vunpack.c.l.b16 %v1062
        %v3159 = vunpack.c.l.b16 %v1063
        %v3160 = vunpack.c.h.b16 %v1063
        %v3161 = vunpack.c.l.b16 %v1064
        %v3162 = vunpack.c.h.b16 %v1064
        %v3163 = vunpack.c.l.b16 %v1065
        %v3164 = vunpack.c.l.b16 %v1066
        %v3165 = vunpack.c.h.b16 %v1066
        %v3166 = vunpack.c.l.b16 %v1067
        %v3167 = vunpack.c.h.b16 %v1067
        %v3168 = vunpack.c.l.b16 %v1068
        %v3169 = vunpack.c.l.b16 %v1069
        %v3170 = vunpack.c.h.b16 %v1069
        %v3171 = vunpack.c.l.b16 %v1070
        %v3172 = vunpack.c.h.b16 %v1070
        %v3173 = vunpack.c.l.b16 %v1071
        %v3174 = vunpack.c.l.b16 %v1072
        %v3175 = vunpack.c.h.b16 %v1072
        %v3176 = vunpack.c.l.b16 %v1073
        %v3177 = vunpack.c.h.b16 %v1073
        %v3178 = vunpack.c.l.b16 %v1074
        %v3179 = vpack.c.b16 %v1904, %v1899
        %v3180 = vpack.c.b16 %v1905, %v1900
        %v3181 = vpack.c.b16 %v1906, %v1901
        %v3182 = vpack.c.b16 %v1907, %v1902
        %v3183 = vpack.c.b16 %v1908, %v1903
        %v3184 = vpack.c.b16 %v1914, %v1909
        %v3185 = vpack.c.b16 %v1915, %v1910
        %v3186 = vpack.c.b16 %v1916, %v1911
        %v3187 = vpack.c.b16 %v1917, %v1912
        %v3188 = vpack.c.b16 %v1918, %v1913
        %v3189 = vpack.c.b16 %v1924, %v1919
        %v3190 = vpack.c.b16 %v1925, %v1920
        %v3191 = vpack.c.b16 %v1926, %v1921
        %v3192 = vpack.c.b16 %v1927, %v1922
        %v3193 = vpack.c.b16 %v1928, %v1923
        %v3194 = vpack.c.b16 %v1934, %v1929
        %v3195 = vpack.c.b16 %v1935, %v1930
        %v3196 = vpack.c.b16 %v1936, %v1931
        %v3197 = vpack.c.b16 %v1937, %v1932
        %v3198 = vpack.c.b16 %v1938, %v1933
        %v3199 = vpack.c.b16 %v1944, %v1939
        %v3200 = vpack.c.b16 %v1945, %v1940
        %v3201 = vpack.c.b16 %v1946, %v1941
        %v3202 = vpack.c.b16 %v1947, %v1942
        %v3203 = vpack.c.b16 %v1948, %v1943
        %v3204 = vpack.c.b16 %v1954, %v1949
        %v3205 = vpack.c.b16 %v1955, %v1950
        %v3206 = vpack.c.b16 %v1956, %v1951
        %v3207 = vpack.c.b16 %v1957, %v1952
        %v3208 = vpack.c.b16 %v1958, %v1953
        %v3209 = vpack.c.b16 %v1964, %v1959
        %v3210 = vpack.c.b16 %v1965, %v1960
        %v3211 = vpack.c.b16 %v1966, %v1961
        %v3212 = vpack.c.b16 %v1967, %v1962
        %v3213 = vpack.c.b16 %v1968, %v1963
        %v3214 = vpack.c.b16 %v1974, %v1969
        %v3215 = vpack.c.b16 %v1975, %v1970
        %v3216 = vpack.c.b16 %v1976, %v1971
        %v3217 = vpack.c.b16 %v1977, %v1972
        %v3218 = vpack.c.b16 %v1978, %v1973
        %v3219 = vpack.c.b16 %v1984, %v1979
        %v3220 = vpack.c.b16 %v1985, %v1980
        %v3221 = vpack.c.b16 %v1986, %v1981
        %v3222 = vpack.c.b16 %v1987, %v1982
        %v3223 = vpack.c.b16 %v1988, %v1983
        %v3224 = vpack.c.b16 %v1994, %v1989
        %v3225 = vpack.c.b16 %v1995, %v1990
        %v3226 = vpack.c.b16 %v1996, %v1991
        %v3227 = vpack.c.b16 %v1997, %v1992
        %v3228 = vpack.c.b16 %v1998, %v1993
        %v3229 = vpack.c.b16 %v2004, %v1999
        %v3230 = vpack.c.b16 %v2005, %v2000
        %v3231 = vpack.c.b16 %v2006, %v2001
        %v3232 = vpack.c.b16 %v2007, %v2002
        %v3233 = vpack.c.b16 %v2008, %v2003
        %v3234 = vpack.c.b16 %v2014, %v2009
        %v3235 = vpack.c.b16 %v2015, %v2010
        %v3236 = vpack.c.b16 %v2016, %v2011
        %v3237 = vpack.c.b16 %v2017, %v2012
        %v3238 = vpack.c.b16 %v2018, %v2013
        %v3239 = vpack.c.b16 %v2024, %v2019
        %v3240 = vpack.c.b16 %v2025, %v2020
        %v3241 = vpack.c.b16 %v2026, %v2021
        %v3242 = vpack.c.b16 %v2027, %v2022
        %v3243 = vpack.c.b16 %v2028, %v2023
        %v3244 = vpack.c.b16 %v2034, %v2029
        %v3245 = vpack.c.b16 %v2035, %v2030
        %v3246 = vpack.c.b16 %v2036, %v2031
        %v3247 = vpack.c.b16 %v2037, %v2032
        %v3248 = vpack.c.b16 %v2038, %v2033
        %v3249 = vpack.c.b16 %v2044, %v2039
        %v3250 = vpack.c.b16 %v2045, %v2040
        %v3251 = vpack.c.b16 %v2046, %v2041
        %v3252 = vpack.c.b16 %v2047, %v2042
        %v3253 = vpack.c.b16 %v2048, %v2043
        %v3254 = vpack.c.b16 %v2054, %v2049
        %v3255 = vpack.c.b16 %v2055, %v2050
        %v3256 = vpack.c.b16 %v2056, %v2051
        %v3257 = vpack.c.b16 %v2057, %v2052
        %v3258 = vpack.c.b16 %v2058, %v2053
        %v3259 = vpack.c.b16 %v2064, %v2059
        %v3260 = vpack.c.b16 %v2065, %v2060
        %v3261 = vpack.c.b16 %v2066, %v2061
        %v3262 = vpack.c.b16 %v2067, %v2062
        %v3263 = vpack.c.b16 %v2068, %v2063
        %v3264 = vpack.c.b16 %v2074, %v2069
        %v3265 = vpack.c.b16 %v2075, %v2070
        %v3266 = vpack.c.b16 %v2076, %v2071
        %v3267 = vpack.c.b16 %v2077, %v2072
        %v3268 = vpack.c.b16 %v2078, %v2073
        %v3269 = vpack.c.b16 %v2084, %v2079
        %v3270 = vpack.c.b16 %v2085, %v2080
        %v3271 = vpack.c.b16 %v2086, %v2081
        %v3272 = vpack.c.b16 %v2087, %v2082
        %v3273 = vpack.c.b16 %v2088, %v2083
        %v3274 = vpack.c.b16 %v2094, %v2089
        %v3275 = vpack.c.b16 %v2095, %v2090
        %v3276 = vpack.c.b16 %v2096, %v2091
        %v3277 = vpack.c.b16 %v2097, %v2092
        %v3278 = vpack.c.b16 %v2098, %v2093
        %v3279 = vpack.c.b16 %v2104, %v2099
        %v3280 = vpack.c.b16 %v2105, %v2100
        %v3281 = vpack.c.b16 %v2106, %v2101
        %v3282 = vpack.c.b16 %v2107, %v2102
        %v3283 = vpack.c.b16 %v2108, %v2103
        %v3284 = vpack.c.b16 %v2114, %v2109
        %v3285 = vpack.c.b16 %v2115, %v2110
        %v3286 = vpack.c.b16 %v2116, %v2111
        %v3287 = vpack.c.b16 %v2117, %v2112
        %v3288 = vpack.c.b16 %v2118, %v2113
        %v3289 = vpack.c.b16 %v2124, %v2119
        %v3290 = vpack.c.b16 %v2125, %v2120
        %v3291 = vpack.c.b16 %v2126, %v2121
        %v3292 = vpack.c.b16 %v2127, %v2122
        %v3293 = vpack.c.b16 %v2128, %v2123
        %v3294 = vpack.c.b16 %v2134, %v2129
        %v3295 = vpack.c.b16 %v2135, %v2130
        %v3296 = vpack.c.b16 %v2136, %v2131
        %v3297 = vpack.c.b16 %v2137, %v2132
        %v3298 = vpack.c.b16 %v2138, %v2133
        %v3299 = vpack.c.b16 %v2144, %v2139
        %v3300 = vpack.c.b16 %v2145, %v2140
        %v3301 = vpack.c.b16 %v2146, %v2141
        %v3302 = vpack.c.b16 %v2147, %v2142
        %v3303 = vpack.c.b16 %v2148, %v2143
        %v3304 = vpack.c.b16 %v2154, %v2149
        %v3305 = vpack.c.b16 %v2155, %v2150
        %v3306 = vpack.c.b16 %v2156, %v2151
        %v3307 = vpack.c.b16 %v2157, %v2152
        %v3308 = vpack.c.b16 %v2158, %v2153
        %v3309 = vpack.c.b16 %v2164, %v2159
        %v3310 = vpack.c.b16 %v2165, %v2160
        %v3311 = vpack.c.b16 %v2166, %v2161
        %v3312 = vpack.c.b16 %v2167, %v2162
        %v3313 = vpack.c.b16 %v2168, %v2163
        %v3314 = vpack.c.b16 %v2174, %v2169
        %v3315 = vpack.c.b16 %v2175, %v2170
        %v3316 = vpack.c.b16 %v2176, %v2171
        %v3317 = vpack.c.b16 %v2177, %v2172
        %v3318 = vpack.c.b16 %v2178, %v2173
        %v3319 = vpack.c.b16 %v2184, %v2179
        %v3320 = vpack.c.b16 %v2185, %v2180
        %v3321 = vpack.c.b16 %v2186, %v2181
        %v3322 = vpack.c.b16 %v2187, %v2182
        %v3323 = vpack.c.b16 %v2188, %v2183
        %v3324 = vpack.c.b16 %v2194, %v2189
        %v3325 = vpack.c.b16 %v2195, %v2190
        %v3326 = vpack.c.b16 %v2196, %v2191
        %v3327 = vpack.c.b16 %v2197, %v2192
        %v3328 = vpack.c.b16 %v2198, %v2193
        %v3329 = vpack.c.b16 %v2204, %v2199
        %v3330 = vpack.c.b16 %v2205, %v2200
        %v3331 = vpack.c.b16 %v2206, %v2201
        %v3332 = vpack.c.b16 %v2207, %v2202
        %v3333 = vpack.c.b16 %v2208, %v2203
        %v3334 = vpack.c.b16 %v2214, %v2209
        %v3335 = vpack.c.b16 %v2215, %v2210
        %v3336 = vpack.c.b16 %v2216, %v2211
        %v3337 = vpack.c.b16 %v2217, %v2212
        %v3338 = vpack.c.b16 %v2218, %v2213
        %v3339 = vpack.c.b16 %v2224, %v2219
        %v3340 = vpack.c.b16 %v2225, %v2220
        %v3341 = vpack.c.b16 %v2226, %v2221
        %v3342 = vpack.c.b16 %v2227, %v2222
        %v3343 = vpack.c.b16 %v2228, %v2223
        %v3344 = vpack.c.b16 %v2234, %v2229
        %v3345 = vpack.c.b16 %v2235, %v2230
        %v3346 = vpack.c.b16 %v2236, %v2231
        %v3347 = vpack.c.b16 %v2237, %v2232
        %v3348 = vpack.c.b16 %v2238, %v2233
        %v3349 = vpack.c.b16 %v2244, %v2239
        %v3350 = vpack.c.b16 %v2245, %v2240
        %v3351 = vpack.c.b16 %v2246, %v2241
        %v3352 = vpack.c.b16 %v2247, %v2242
        %v3353 = vpack.c.b16 %v2248, %v2243
        %v3354 = vpack.c.b16 %v2254, %v2249
        %v3355 = vpack.c.b16 %v2255, %v2250
        %v3356 = vpack.c.b16 %v2256, %v2251
        %v3357 = vpack.c.b16 %v2257, %v2252
        %v3358 = vpack.c.b16 %v2258, %v2253
        %v3359 = vpack.c.b16 %v2264, %v2259
        %v3360 = vpack.c.b16 %v2265, %v2260
        %v3361 = vpack.c.b16 %v2266, %v2261
        %v3362 = vpack.c.b16 %v2267, %v2262
        %v3363 = vpack.c.b16 %v2268, %v2263
        %v3364 = vpack.c.b16 %v2274, %v2269
        %v3365 = vpack.c.b16 %v2275, %v2270
        %v3366 = vpack.c.b16 %v2276, %v2271
        %v3367 = vpack.c.b16 %v2277, %v2272
        %v3368 = vpack.c.b16 %v2278, %v2273
        %v3369 = vpack.c.b16 %v2284, %v2279
        %v3370 = vpack.c.b16 %v2285, %v2280
        %v3371 = vpack.c.b16 %v2286, %v2281
        %v3372 = vpack.c.b16 %v2287, %v2282
        %v3373 = vpack.c.b16 %v2288, %v2283
        %v3374 = vpack.c.b16 %v2294, %v2289
        %v3375 = vpack.c.b16 %v2295, %v2290
        %v3376 = vpack.c.b16 %v2296, %v2291
        %v3377 = vpack.c.b16 %v2297, %v2292
        %v3378 = vpack.c.b16 %v2298, %v2293
        %v3379 = vpack.c.b16 %v2304, %v2299
        %v3380 = vpack.c.b16 %v2305, %v2300
        %v3381 = vpack.c.b16 %v2306, %v2301
        %v3382 = vpack.c.b16 %v2307, %v2302
        %v3383 = vpack.c.b16 %v2308, %v2303
        %v3384 = vpack.c.b16 %v2314, %v2309
        %v3385 = vpack.c.b16 %v2315, %v2310
        %v3386 = vpack.c.b16 %v2316, %v2311
        %v3387 = vpack.c.b16 %v2317, %v2312
        %v3388 = vpack.c.b16 %v2318, %v2313
        %v3389 = vpack.c.b16 %v2324, %v2319
        %v3390 = vpack.c.b16 %v2325, %v2320
        %v3391 = vpack.c.b16 %v2326, %v2321
        %v3392 = vpack.c.b16 %v2327, %v2322
        %v3393 = vpack.c.b16 %v2328, %v2323
        %v3394 = vpack.c.b16 %v2334, %v2329
        %v3395 = vpack.c.b16 %v2335, %v2330
        %v3396 = vpack.c.b16 %v2336, %v2331
        %v3397 = vpack.c.b16 %v2337, %v2332
        %v3398 = vpack.c.b16 %v2338, %v2333
        %v3399 = vpack.c.b16 %v2344, %v2339
        %v3400 = vpack.c.b16 %v2345, %v2340
        %v3401 = vpack.c.b16 %v2346, %v2341
        %v3402 = vpack.c.b16 %v2347, %v2342
        %v3403 = vpack.c.b16 %v2348, %v2343
        %v3404 = vpack.c.b16 %v2354, %v2349
        %v3405 = vpack.c.b16 %v2355, %v2350
        %v3406 = vpack.c.b16 %v2356, %v2351
        %v3407 = vpack.c.b16 %v2357, %v2352
        %v3408 = vpack.c.b16 %v2358, %v2353
        %v3409 = vpack.c.b16 %v2364, %v2359
        %v3410 = vpack.c.b16 %v2365, %v2360
        %v3411 = vpack.c.b16 %v2366, %v2361
        %v3412 = vpack.c.b16 %v2367, %v2362
        %v3413 = vpack.c.b16 %v2368, %v2363
        %v3414 = vpack.c.b16 %v2374, %v2369
        %v3415 = vpack.c.b16 %v2375, %v2370
        %v3416 = vpack.c.b16 %v2376, %v2371
        %v3417 = vpack.c.b16 %v2377, %v2372
        %v3418 = vpack.c.b16 %v2378, %v2373
        %v3419 = vpack.c.b16 %v2384, %v2379
        %v3420 = vpack.c.b16 %v2385, %v2380
        %v3421 = vpack.c.b16 %v2386, %v2381
        %v3422 = vpack.c.b16 %v2387, %v2382
        %v3423 = vpack.c.b16 %v2388, %v2383
        %v3424 = vpack.c.b16 %v2394, %v2389
        %v3425 = vpack.c.b16 %v2395, %v2390
        %v3426 = vpack.c.b16 %v2396, %v2391
        %v3427 = vpack.c.b16 %v2397, %v2392
        %v3428 = vpack.c.b16 %v2398, %v2393
        %v3429 = vpack.c.b16 %v2404, %v2399
        %v3430 = vpack.c.b16 %v2405, %v2400
        %v3431 = vpack.c.b16 %v2406, %v2401
        %v3432 = vpack.c.b16 %v2407, %v2402
        %v3433 = vpack.c.b16 %v2408, %v2403
        %v3434 = vpack.c.b16 %v2414, %v2409
        %v3435 = vpack.c.b16 %v2415, %v2410
        %v3436 = vpack.c.b16 %v2416, %v2411
        %v3437 = vpack.c.b16 %v2417, %v2412
        %v3438 = vpack.c.b16 %v2418, %v2413
        %v3439 = vpack.c.b16 %v2424, %v2419
        %v3440 = vpack.c.b16 %v2425, %v2420
        %v3441 = vpack.c.b16 %v2426, %v2421
        %v3442 = vpack.c.b16 %v2427, %v2422
        %v3443 = vpack.c.b16 %v2428, %v2423
        %v3444 = vpack.c.b16 %v2434, %v2429
        %v3445 = vpack.c.b16 %v2435, %v2430
        %v3446 = vpack.c.b16 %v2436, %v2431
        %v3447 = vpack.c.b16 %v2437, %v2432
        %v3448 = vpack.c.b16 %v2438, %v2433
        %v3449 = vpack.c.b16 %v2444, %v2439
        %v3450 = vpack.c.b16 %v2445, %v2440
        %v3451 = vpack.c.b16 %v2446, %v2441
        %v3452 = vpack.c.b16 %v2447, %v2442
        %v3453 = vpack.c.b16 %v2448, %v2443
        %v3454 = vpack.c.b16 %v2454, %v2449
        %v3455 = vpack.c.b16 %v2455, %v2450
        %v3456 = vpack.c.b16 %v2456, %v2451
        %v3457 = vpack.c.b16 %v2457, %v2452
        %v3458 = vpack.c.b16 %v2458, %v2453
        %v3459 = vpack.c.b16 %v2464, %v2459
        %v3460 = vpack.c.b16 %v2465, %v2460
        %v3461 = vpack.c.b16 %v2466, %v2461
        %v3462 = vpack.c.b16 %v2467, %v2462
        %v3463 = vpack.c.b16 %v2468, %v2463
        %v3464 = vpack.c.b16 %v2474, %v2469
        %v3465 = vpack.c.b16 %v2475, %v2470
        %v3466 = vpack.c.b16 %v2476, %v2471
        %v3467 = vpack.c.b16 %v2477, %v2472
        %v3468 = vpack.c.b16 %v2478, %v2473
        %v3469 = vpack.c.b16 %v2484, %v2479
        %v3470 = vpack.c.b16 %v2485, %v2480
        %v3471 = vpack.c.b16 %v2486, %v2481
        %v3472 = vpack.c.b16 %v2487, %v2482
        %v3473 = vpack.c.b16 %v2488, %v2483
        %v3474 = vpack.c.b16 %v2494, %v2489
        %v3475 = vpack.c.b16 %v2495, %v2490
        %v3476 = vpack.c.b16 %v2496, %v2491
        %v3477 = vpack.c.b16 %v2497, %v2492
        %v3478 = vpack.c.b16 %v2498, %v2493
        %v3479 = vpack.c.b16 %v2504, %v2499
        %v3480 = vpack.c.b16 %v2505, %v2500
        %v3481 = vpack.c.b16 %v2506, %v2501
        %v3482 = vpack.c.b16 %v2507, %v2502
        %v3483 = vpack.c.b16 %v2508, %v2503
        %v3484 = vpack.c.b16 %v2514, %v2509
        %v3485 = vpack.c.b16 %v2515, %v2510
        %v3486 = vpack.c.b16 %v2516, %v2511
        %v3487 = vpack.c.b16 %v2517, %v2512
        %v3488 = vpack.c.b16 %v2518, %v2513
        %v3489 = vpack.c.b16 %v2524, %v2519
        %v3490 = vpack.c.b16 %v2525, %v2520
        %v3491 = vpack.c.b16 %v2526, %v2521
        %v3492 = vpack.c.b16 %v2527, %v2522
        %v3493 = vpack.c.b16 %v2528, %v2523
        %v3494 = vpack.c.b16 %v2534, %v2529
        %v3495 = vpack.c.b16 %v2535, %v2530
        %v3496 = vpack.c.b16 %v2536, %v2531
        %v3497 = vpack.c.b16 %v2537, %v2532
        %v3498 = vpack.c.b16 %v2538, %v2533
        %v3499 = vpack.c.b16 %v2544, %v2539
        %v3500 = vpack.c.b16 %v2545, %v2540
        %v3501 = vpack.c.b16 %v2546, %v2541
        %v3502 = vpack.c.b16 %v2547, %v2542
        %v3503 = vpack.c.b16 %v2548, %v2543
        %v3504 = vpack.c.b16 %v2554, %v2549
        %v3505 = vpack.c.b16 %v2555, %v2550
        %v3506 = vpack.c.b16 %v2556, %v2551
        %v3507 = vpack.c.b16 %v2557, %v2552
        %v3508 = vpack.c.b16 %v2558, %v2553
        %v3509 = vpack.c.b16 %v2564, %v2559
        %v3510 = vpack.c.b16 %v2565, %v2560
        %v3511 = vpack.c.b16 %v2566, %v2561
        %v3512 = vpack.c.b16 %v2567, %v2562
        %v3513 = vpack.c.b16 %v2568, %v2563
        %v3514 = vpack.c.b16 %v2574, %v2569
        %v3515 = vpack.c.b16 %v2575, %v2570
        %v3516 = vpack.c.b16 %v2576, %v2571
        %v3517 = vpack.c.b16 %v2577, %v2572
        %v3518 = vpack.c.b16 %v2578, %v2573
        %v3519 = vpack.c.b16 %v2584, %v2579
        %v3520 = vpack.c.b16 %v2585, %v2580
        %v3521 = vpack.c.b16 %v2586, %v2581
        %v3522 = vpack.c.b16 %v2587, %v2582
        %v3523 = vpack.c.b16 %v2588, %v2583
        %v3524 = vpack.c.b16 %v2594, %v2589
        %v3525 = vpack.c.b16 %v2595, %v2590
        %v3526 = vpack.c.b16 %v2596, %v2591
        %v3527 = vpack.c.b16 %v2597, %v2592
        %v3528 = vpack.c.b16 %v2598, %v2593
        %v3529 = vpack.c.b16 %v2604, %v2599
        %v3530 = vpack.c.b16 %v2605, %v2600
        %v3531 = vpack.c.b16 %v2606, %v2601
        %v3532 = vpack.c.b16 %v2607, %v2602
        %v3533 = vpack.c.b16 %v2608, %v2603
        %v3534 = vpack.c.b16 %v2614, %v2609
        %v3535 = vpack.c.b16 %v2615, %v2610
        %v3536 = vpack.c.b16 %v2616, %v2611
        %v3537 = vpack.c.b16 %v2617, %v2612
        %v3538 = vpack.c.b16 %v2618, %v2613
        %v3539 = vpack.c.b16 %v2624, %v2619
        %v3540 = vpack.c.b16 %v2625, %v2620
        %v3541 = vpack.c.b16 %v2626, %v2621
        %v3542 = vpack.c.b16 %v2627, %v2622
        %v3543 = vpack.c.b16 %v2628, %v2623
        %v3544 = vpack.c.b16 %v2634, %v2629
        %v3545 = vpack.c.b16 %v2635, %v2630
        %v3546 = vpack.c.b16 %v2636, %v2631
        %v3547 = vpack.c.b16 %v2637, %v2632
        %v3548 = vpack.c.b16 %v2638, %v2633
        %v3549 = vpack.c.b16 %v2644, %v2639
        %v3550 = vpack.c.b16 %v2645, %v2640
        %v3551 = vpack.c.b16 %v2646, %v2641
        %v3552 = vpack.c.b16 %v2647, %v2642
        %v3553 = vpack.c.b16 %v2648, %v2643
        %v3554 = vpack.c.b16 %v2654, %v2649
        %v3555 = vpack.c.b16 %v2655, %v2650
        %v3556 = vpack.c.b16 %v2656, %v2651
        %v3557 = vpack.c.b16 %v2657, %v2652
        %v3558 = vpack.c.b16 %v2658, %v2653
        %v3559 = vpack.c.b16 %v2664, %v2659
        %v3560 = vpack.c.b16 %v2665, %v2660
        %v3561 = vpack.c.b16 %v2666, %v2661
        %v3562 = vpack.c.b16 %v2667, %v2662
        %v3563 = vpack.c.b16 %v2668, %v2663
        %v3564 = vpack.c.b16 %v2674, %v2669
        %v3565 = vpack.c.b16 %v2675, %v2670
        %v3566 = vpack.c.b16 %v2676, %v2671
        %v3567 = vpack.c.b16 %v2677, %v2672
        %v3568 = vpack.c.b16 %v2678, %v2673
        %v3569 = vpack.c.b16 %v2684, %v2679
        %v3570 = vpack.c.b16 %v2685, %v2680
        %v3571 = vpack.c.b16 %v2686, %v2681
        %v3572 = vpack.c.b16 %v2687, %v2682
        %v3573 = vpack.c.b16 %v2688, %v2683
        %v3574 = vpack.c.b16 %v2694, %v2689
        %v3575 = vpack.c.b16 %v2695, %v2690
        %v3576 = vpack.c.b16 %v2696, %v2691
        %v3577 = vpack.c.b16 %v2697, %v2692
        %v3578 = vpack.c.b16 %v2698, %v2693
        %v3579 = vpack.c.b16 %v2704, %v2699
        %v3580 = vpack.c.b16 %v2705, %v2700
        %v3581 = vpack.c.b16 %v2706, %v2701
        %v3582 = vpack.c.b16 %v2707, %v2702
        %v3583 = vpack.c.b16 %v2708, %v2703
        %v3584 = vpack.c.b16 %v2714, %v2709
        %v3585 = vpack.c.b16 %v2715, %v2710
        %v3586 = vpack.c.b16 %v2716, %v2711
        %v3587 = vpack.c.b16 %v2717, %v2712
        %v3588 = vpack.c.b16 %v2718, %v2713
        %v3589 = vpack.c.b16 %v2724, %v2719
        %v3590 = vpack.c.b16 %v2725, %v2720
        %v3591 = vpack.c.b16 %v2726, %v2721
        %v3592 = vpack.c.b16 %v2727, %v2722
        %v3593 = vpack.c.b16 %v2728, %v2723
        %v3594 = vpack.c.b16 %v2734, %v2729
        %v3595 = vpack.c.b16 %v2735, %v2730
        %v3596 = vpack.c.b16 %v2736, %v2731
        %v3597 = vpack.c.b16 %v2737, %v2732
        %v3598 = vpack.c.b16 %v2738, %v2733
        %v3599 = vpack.c.b16 %v2744, %v2739
        %v3600 = vpack.c.b16 %v2745, %v2740
        %v3601 = vpack.c.b16 %v2746, %v2741
        %v3602 = vpack.c.b16 %v2747, %v2742
        %v3603 = vpack.c.b16 %v2748, %v2743
        %v3604 = vpack.c.b16 %v2754, %v2749
        %v3605 = vpack.c.b16 %v2755, %v2750
        %v3606 = vpack.c.b16 %v2756, %v2751
        %v3607 = vpack.c.b16 %v2757, %v2752
        %v3608 = vpack.c.b16 %v2758, %v2753
        %v3609 = vpack.c.b16 %v2764, %v2759
        %v3610 = vpack.c.b16 %v2765, %v2760
        %v3611 = vpack.c.b16 %v2766, %v2761
        %v3612 = vpack.c.b16 %v2767, %v2762
        %v3613 = vpack.c.b16 %v2768, %v2763
        %v3614 = vpack.c.b16 %v2774, %v2769
        %v3615 = vpack.c.b16 %v2775, %v2770
        %v3616 = vpack.c.b16 %v2776, %v2771
        %v3617 = vpack.c.b16 %v2777, %v2772
        %v3618 = vpack.c.b16 %v2778, %v2773
        %v3619 = vpack.c.b16 %v2784, %v2779
        %v3620 = vpack.c.b16 %v2785, %v2780
        %v3621 = vpack.c.b16 %v2786, %v2781
        %v3622 = vpack.c.b16 %v2787, %v2782
        %v3623 = vpack.c.b16 %v2788, %v2783
        %v3624 = vpack.c.b16 %v2794, %v2789
        %v3625 = vpack.c.b16 %v2795, %v2790
        %v3626 = vpack.c.b16 %v2796, %v2791
        %v3627 = vpack.c.b16 %v2797, %v2792
        %v3628 = vpack.c.b16 %v2798, %v2793
        %v3629 = vpack.c.b16 %v2804, %v2799
        %v3630 = vpack.c.b16 %v2805, %v2800
        %v3631 = vpack.c.b16 %v2806, %v2801
        %v3632 = vpack.c.b16 %v2807, %v2802
        %v3633 = vpack.c.b16 %v2808, %v2803
        %v3634 = vpack.c.b16 %v2814, %v2809
        %v3635 = vpack.c.b16 %v2815, %v2810
        %v3636 = vpack.c.b16 %v2816, %v2811
        %v3637 = vpack.c.b16 %v2817, %v2812
        %v3638 = vpack.c.b16 %v2818, %v2813
        %v3639 = vpack.c.b16 %v2824, %v2819
        %v3640 = vpack.c.b16 %v2825, %v2820
        %v3641 = vpack.c.b16 %v2826, %v2821
        %v3642 = vpack.c.b16 %v2827, %v2822
        %v3643 = vpack.c.b16 %v2828, %v2823
        %v3644 = vpack.c.b16 %v2834, %v2829
        %v3645 = vpack.c.b16 %v2835, %v2830
        %v3646 = vpack.c.b16 %v2836, %v2831
        %v3647 = vpack.c.b16 %v2837, %v2832
        %v3648 = vpack.c.b16 %v2838, %v2833
        %v3649 = vpack.c.b16 %v2844, %v2839
        %v3650 = vpack.c.b16 %v2845, %v2840
        %v3651 = vpack.c.b16 %v2846, %v2841
        %v3652 = vpack.c.b16 %v2847, %v2842
        %v3653 = vpack.c.b16 %v2848, %v2843
        %v3654 = vpack.c.b16 %v2854, %v2849
        %v3655 = vpack.c.b16 %v2855, %v2850
        %v3656 = vpack.c.b16 %v2856, %v2851
        %v3657 = vpack.c.b16 %v2857, %v2852
        %v3658 = vpack.c.b16 %v2858, %v2853
        %v3659 = vpack.c.b16 %v2864, %v2859
        %v3660 = vpack.c.b16 %v2865, %v2860
        %v3661 = vpack.c.b16 %v2866, %v2861
        %v3662 = vpack.c.b16 %v2867, %v2862
        %v3663 = vpack.c.b16 %v2868, %v2863
        %v3664 = vpack.c.b16 %v2874, %v2869
        %v3665 = vpack.c.b16 %v2875, %v2870
        %v3666 = vpack.c.b16 %v2876, %v2871
        %v3667 = vpack.c.b16 %v2877, %v2872
        %v3668 = vpack.c.b16 %v2878, %v2873
        %v3669 = vpack.c.b16 %v2884, %v2879
        %v3670 = vpack.c.b16 %v2885, %v2880
        %v3671 = vpack.c.b16 %v2886, %v2881
        %v3672 = vpack.c.b16 %v2887, %v2882
        %v3673 = vpack.c.b16 %v2888, %v2883
        %v3674 = vpack.c.b16 %v2894, %v2889
        %v3675 = vpack.c.b16 %v2895, %v2890
        %v3676 = vpack.c.b16 %v2896, %v2891
        %v3677 = vpack.c.b16 %v2897, %v2892
        %v3678 = vpack.c.b16 %v2898, %v2893
        %v3679 = vpack.c.b16 %v2904, %v2899
        %v3680 = vpack.c.b16 %v2905, %v2900
        %v3681 = vpack.c.b16 %v2906, %v2901
        %v3682 = vpack.c.b16 %v2907, %v2902
        %v3683 = vpack.c.b16 %v2908, %v2903
        %v3684 = vpack.c.b16 %v2914, %v2909
        %v3685 = vpack.c.b16 %v2915, %v2910
        %v3686 = vpack.c.b16 %v2916, %v2911
        %v3687 = vpack.c.b16 %v2917, %v2912
        %v3688 = vpack.c.b16 %v2918, %v2913
        %v3689 = vpack.c.b16 %v2924, %v2919
        %v3690 = vpack.c.b16 %v2925, %v2920
        %v3691 = vpack.c.b16 %v2926, %v2921
        %v3692 = vpack.c.b16 %v2927, %v2922
        %v3693 = vpack.c.b16 %v2928, %v2923
        %v3694 = vpack.c.b16 %v2934, %v2929
        %v3695 = vpack.c.b16 %v2935, %v2930
        %v3696 = vpack.c.b16 %v2936, %v2931
        %v3697 = vpack.c.b16 %v2937, %v2932
        %v3698 = vpack.c.b16 %v2938, %v2933
        %v3699 = vpack.c.b16 %v2944, %v2939
        %v3700 = vpack.c.b16 %v2945, %v2940
        %v3701 = vpack.c.b16 %v2946, %v2941
        %v3702 = vpack.c.b16 %v2947, %v2942
        %v3703 = vpack.c.b16 %v2948, %v2943
        %v3704 = vpack.c.b16 %v2954, %v2949
        %v3705 = vpack.c.b16 %v2955, %v2950
        %v3706 = vpack.c.b16 %v2956, %v2951
        %v3707 = vpack.c.b16 %v2957, %v2952
        %v3708 = vpack.c.b16 %v2958, %v2953
        %v3709 = vpack.c.b16 %v2964, %v2959
        %v3710 = vpack.c.b16 %v2965, %v2960
        %v3711 = vpack.c.b16 %v2966, %v2961
        %v3712 = vpack.c.b16 %v2967, %v2962
        %v3713 = vpack.c.b16 %v2968, %v2963
        %v3714 = vpack.c.b16 %v2974, %v2969
        %v3715 = vpack.c.b16 %v2975, %v2970
        %v3716 = vpack.c.b16 %v2976, %v2971
        %v3717 = vpack.c.b16 %v2977, %v2972
        %v3718 = vpack.c.b16 %v2978, %v2973
        %v3719 = vpack.c.b16 %v2984, %v2979
        %v3720 = vpack.c.b16 %v2985, %v2980
        %v3721 = vpack.c.b16 %v2986, %v2981
        %v3722 = vpack.c.b16 %v2987, %v2982
        %v3723 = vpack.c.b16 %v2988, %v2983
        %v3724 = vpack.c.b16 %v2994, %v2989
        %v3725 = vpack.c.b16 %v2995, %v2990
        %v3726 = vpack.c.b16 %v2996, %v2991
        %v3727 = vpack.c.b16 %v2997, %v2992
        %v3728 = vpack.c.b16 %v2998, %v2993
        %v3729 = vpack.c.b16 %v3004, %v2999
        %v3730 = vpack.c.b16 %v3005, %v3000
        %v3731 = vpack.c.b16 %v3006, %v3001
        %v3732 = vpack.c.b16 %v3007, %v3002
        %v3733 = vpack.c.b16 %v3008, %v3003
        %v3734 = vpack.c.b16 %v3014, %v3009
        %v3735 = vpack.c.b16 %v3015, %v3010
        %v3736 = vpack.c.b16 %v3016, %v3011
        %v3737 = vpack.c.b16 %v3017, %v3012
        %v3738 = vpack.c.b16 %v3018, %v3013
        %v3739 = vpack.c.b16 %v3024, %v3019
        %v3740 = vpack.c.b16 %v3025, %v3020
        %v3741 = vpack.c.b16 %v3026, %v3021
        %v3742 = vpack.c.b16 %v3027, %v3022
        %v3743 = vpack.c.b16 %v3028, %v3023
        %v3744 = vpack.c.b16 %v3034, %v3029
        %v3745 = vpack.c.b16 %v3035, %v3030
        %v3746 = vpack.c.b16 %v3036, %v3031
        %v3747 = vpack.c.b16 %v3037, %v3032
        %v3748 = vpack.c.b16 %v3038, %v3033
        %v3749 = vpack.c.b16 %v3044, %v3039
        %v3750 = vpack.c.b16 %v3045, %v3040
        %v3751 = vpack.c.b16 %v3046, %v3041
        %v3752 = vpack.c.b16 %v3047, %v3042
        %v3753 = vpack.c.b16 %v3048, %v3043
        %v3754 = vpack.c.b16 %v3054, %v3049
        %v3755 = vpack.c.b16 %v3055, %v3050
        %v3756 = vpack.c.b16 %v3056, %v3051
        %v3757 = vpack.c.b16 %v3057, %v3052
        %v3758 = vpack.c.b16 %v3058, %v3053
        %v3759 = vpack.c.b16 %v3064, %v3059
        %v3760 = vpack.c.b16 %v3065, %v3060
        %v3761 = vpack.c.b16 %v3066, %v3061
        %v3762 = vpack.c.b16 %v3067, %v3062
        %v3763 = vpack.c.b16 %v3068, %v3063
        %v3764 = vpack.c.b16 %v3074, %v3069
        %v3765 = vpack.c.b16 %v3075, %v3070
        %v3766 = vpack.c.b16 %v3076, %v3071
        %v3767 = vpack.c.b16 %v3077, %v3072
        %v3768 = vpack.c.b16 %v3078, %v3073
        %v3769 = vpack.c.b16 %v3084, %v3079
        %v3770 = vpack.c.b16 %v3085, %v3080
        %v3771 = vpack.c.b16 %v3086, %v3081
        %v3772 = vpack.c.b16 %v3087, %v3082
        %v3773 = vpack.c.b16 %v3088, %v3083
        %v3774 = vpack.c.b16 %v3094, %v3089
        %v3775 = vpack.c.b16 %v3095, %v3090
        %v3776 = vpack.c.b16 %v3096, %v3091
        %v3777 = vpack.c.b16 %v3097, %v3092
        %v3778 = vpack.c.b16 %v3098, %v3093
        %v3779 = vpack.c.b16 %v3104, %v3099
        %v3780 = vpack.c.b16 %v3105, %v3100
        %v3781 = vpack.c.b16 %v3106, %v3101
        %v3782 = vpack.c.b16 %v3107, %v3102
        %v3783 = vpack.c.b16 %v3108, %v3103
        %v3784 = vpack.c.b16 %v3114, %v3109
        %v3785 = vpack.c.b16 %v3115, %v3110
        %v3786 = vpack.c.b16 %v3116, %v3111
        %v3787 = vpack.c.b16 %v3117, %v3112
        %v3788 = vpack.c.b16 %v3118, %v3113
        %v3789 = vpack.c.b16 %v3124, %v3119
        %v3790 = vpack.c.b16 %v3125, %v3120
        %v3791 = vpack.c.b16 %v3126, %v3121
        %v3792 = vpack.c.b16 %v3127, %v3122
        %v3793 = vpack.c.b16 %v3128, %v3123
        %v3794 = vpack.c.b16 %v3134, %v3129
        %v3795 = vpack.c.b16 %v3135, %v3130
        %v3796 = vpack.c.b16 %v3136, %v3131
        %v3797 = vpack.c.b16 %v3137, %v3132
        %v3798 = vpack.c.b16 %v3138, %v3133
        %v3799 = vpack.c.b16 %v3144, %v3139
        %v3800 = vpack.c.b16 %v3145, %v3140
        %v3801 = vpack.c.b16 %v3146, %v3141
        %v3802 = vpack.c.b16 %v3147, %v3142
        %v3803 = vpack.c.b16 %v3148, %v3143
        %v3804 = vpack.c.b16 %v3154, %v3149
        %v3805 = vpack.c.b16 %v3155, %v3150
        %v3806 = vpack.c.b16 %v3156, %v3151
        %v3807 = vpack.c.b16 %v3157, %v3152
        %v3808 = vpack.c.b16 %v3158, %v3153
        %v3809 = vpack.c.b16 %v3164, %v3159
        %v3810 = vpack.c.b16 %v3165, %v3160
        %v3811 = vpack.c.b16 %v3166, %v3161
        %v3812 = vpack.c.b16 %v3167, %v3162
        %v3813 = vpack.c.b16 %v3168, %v3163
        %v3814 = vpack.c.b16 %v3174, %v3169
        %v3815 = vpack.c.b16 %v3175, %v3170
        %v3816 = vpack.c.b16 %v3176, %v3171
        %v3817 = vpack.c.b16 %v3177, %v3172
        %v3818 = vpack.c.b16 %v3178, %v3173
        %4459 = vmatprep.subr.bf16.mxu0 %v3180
        %4460 = vmatpush1.bf16.msra.mxu0 %v3179
        %4461 = vmatprep.subr.bf16.mxu0 %v3185
        %4462 = vmatpush1.bf16.msra.mxu0 %v3184
        %4463 = vmatprep.subr.bf16.mxu0 %v3190
        %4464 = vmatpush1.bf16.msra.mxu0 %v3189
        %4465 = vmatprep.subr.bf16.mxu0 %v3195
        %4466 = vmatpush1.bf16.msra.mxu0 %v3194
        %4467 = vmatprep.subr.bf16.mxu0 %v3200
        %4468 = vmatpush1.bf16.msra.mxu0 %v3199
        %4469 = vmatprep.subr.bf16.mxu0 %v3205
        %4470 = vmatpush1.bf16.msra.mxu0 %v3204
        %4471 = vmatprep.subr.bf16.mxu0 %v3210
        %4472 = vmatpush1.bf16.msra.mxu0 %v3209
        %4473 = vmatprep.subr.bf16.mxu0 %v3215
        %4474 = vmatpush1.bf16.msra.mxu0 %v3214
        %4475 = vmatprep.subr.bf16.mxu0 %v3220
        %4476 = vmatpush1.bf16.msra.mxu0 %v3219
        %4477 = vmatprep.subr.bf16.mxu0 %v3225
        %4478 = vmatpush1.bf16.msra.mxu0 %v3224
        %4479 = vmatprep.subr.bf16.mxu0 %v3230
        %4480 = vmatpush1.bf16.msra.mxu0 %v3229
        %4481 = vmatprep.subr.bf16.mxu0 %v3235
        %4482 = vmatpush1.bf16.msra.mxu0 %v3234
        %4483 = vmatprep.subr.bf16.mxu0 %v3240
        %4484 = vmatpush1.bf16.msra.mxu0 %v3239
        %4485 = vmatprep.subr.bf16.mxu0 %v3245
        %4486 = vmatpush1.bf16.msra.mxu0 %v3244
        %4487 = vmatprep.subr.bf16.mxu0 %v3250
        %4488 = vmatpush1.bf16.msra.mxu0 %v3249
        %4489 = vmatprep.subr.bf16.mxu0 %v3255
        %4490 = vmatpush1.bf16.msra.mxu0 %v3254
        %4491 = vmatprep.mubr.bf16.mxu0 %v1100
        %4492 = vmatmul.mubr.bf16.gmra.mrb[0].mxu0 %v1099
        %v4493 = vpop.f32.mrb[0].mxu0
        %v4494 = vadd.f32 0.0, %v4493
        %v4495 = vpop.f32.mrb[0].mxu0
        %v4496 = vadd.f32 0.0, %v4495
        %v4497 = vpop.f32.mrb[0].mxu0
        %v4498 = vpop.f32.mrb[0].mxu0
        %4499 = vdwg.mxu0
        %4500 = vmatprep.subr.bf16.mxu0 %v3260
        %4501 = vmatpush1.bf16.msra.mxu0 %v3259
        %4502 = vmatprep.subr.bf16.mxu0 %v3265
        %4503 = vmatpush1.bf16.msra.mxu0 %v3264
        %4504 = vmatprep.subr.bf16.mxu0 %v3270
        %4505 = vmatpush1.bf16.msra.mxu0 %v3269
        %4506 = vmatprep.subr.bf16.mxu0 %v3275
        %4507 = vmatpush1.bf16.msra.mxu0 %v3274
        %4508 = vmatprep.subr.bf16.mxu0 %v3280
        %4509 = vmatpush1.bf16.msra.mxu0 %v3279
        %4510 = vmatprep.subr.bf16.mxu0 %v3285
        %4511 = vmatpush1.bf16.msra.mxu0 %v3284
        %4512 = vmatprep.subr.bf16.mxu0 %v3290
        %4513 = vmatpush1.bf16.msra.mxu0 %v3289
        %4514 = vmatprep.subr.bf16.mxu0 %v3295
        %4515 = vmatpush1.bf16.msra.mxu0 %v3294
        %4516 = vmatprep.subr.bf16.mxu0 %v3300
        %4517 = vmatpush1.bf16.msra.mxu0 %v3299
        %4518 = vmatprep.subr.bf16.mxu0 %v3305
        %4519 = vmatpush1.bf16.msra.mxu0 %v3304
        %4520 = vmatprep.subr.bf16.mxu0 %v3310
        %4521 = vmatpush1.bf16.msra.mxu0 %v3309
        %4522 = vmatprep.subr.bf16.mxu0 %v3315
        %4523 = vmatpush1.bf16.msra.mxu0 %v3314
        %4524 = vmatprep.subr.bf16.mxu0 %v3320
        %4525 = vmatpush1.bf16.msra.mxu0 %v3319
        %4526 = vmatprep.subr.bf16.mxu0 %v3325
        %4527 = vmatpush1.bf16.msra.mxu0 %v3324
        %4528 = vmatprep.subr.bf16.mxu0 %v3330
        %4529 = vmatpush1.bf16.msra.mxu0 %v3329
        %4530 = vmatprep.subr.bf16.mxu0 %v3335
        %4531 = vmatpush1.bf16.msra.mxu0 %v3334
        %4532 = vmatprep.mubr.bf16.mxu0 %v1102
        %4533 = vmatmul.mubr.bf16.gmra.mrb[0].mxu0 %v1101
        %v4534 = vpop.f32.mrb[0].mxu0
        %v4535 = vadd.f32 %v4494, %v4534
        %v4536 = vpop.f32.mrb[0].mxu0
        %v4537 = vadd.f32 %v4496, %v4536
        %v4538 = vpop.f32.mrb[0].mxu0
        %v4539 = vpop.f32.mrb[0].mxu0
        %4540 = vdwg.mxu0
        %4541 = vmatprep.subr.bf16.mxu0 %v3340
        %4542 = vmatpush1.bf16.msra.mxu0 %v3339
        %4543 = vmatprep.subr.bf16.mxu0 %v3345
        %4544 = vmatpush1.bf16.msra.mxu0 %v3344
        %4545 = vmatprep.subr.bf16.mxu0 %v3350
        %4546 = vmatpush1.bf16.msra.mxu0 %v3349
        %4547 = vmatprep.subr.bf16.mxu0 %v3355
        %4548 = vmatpush1.bf16.msra.mxu0 %v3354
        %4549 = vmatprep.subr.bf16.mxu0 %v3360
        %4550 = vmatpush1.bf16.msra.mxu0 %v3359
        %4551 = vmatprep.subr.bf16.mxu0 %v3365
        %4552 = vmatpush1.bf16.msra.mxu0 %v3364
        %4553 = vmatprep.subr.bf16.mxu0 %v3370
        %4554 = vmatpush1.bf16.msra.mxu0 %v3369
        %4555 = vmatprep.subr.bf16.mxu0 %v3375
        %4556 = vmatpush1.bf16.msra.mxu0 %v3374
        %4557 = vmatprep.subr.bf16.mxu0 %v3380
        %4558 = vmatpush1.bf16.msra.mxu0 %v3379
        %4559 = vmatprep.subr.bf16.mxu0 %v3385
        %4560 = vmatpush1.bf16.msra.mxu0 %v3384
        %4561 = vmatprep.subr.bf16.mxu0 %v3390
        %4562 = vmatpush1.bf16.msra.mxu0 %v3389
        %4563 = vmatprep.subr.bf16.mxu0 %v3395
        %4564 = vmatpush1.bf16.msra.mxu0 %v3394
        %4565 = vmatprep.subr.bf16.mxu0 %v3400
        %4566 = vmatpush1.bf16.msra.mxu0 %v3399
        %4567 = vmatprep.subr.bf16.mxu0 %v3405
        %4568 = vmatpush1.bf16.msra.mxu0 %v3404
        %4569 = vmatprep.subr.bf16.mxu0 %v3410
        %4570 = vmatpush1.bf16.msra.mxu0 %v3409
        %4571 = vmatprep.subr.bf16.mxu0 %v3415
        %4572 = vmatpush1.bf16.msra.mxu0 %v3414
        %4573 = vmatprep.mubr.bf16.mxu0 %v1104
        %4574 = vmatmul.mubr.bf16.gmra.mrb[0].mxu0 %v1103
        %v4575 = vpop.f32.mrb[0].mxu0
        %v4576 = vadd.f32 %v4535, %v4575
        %v4577 = vpop.f32.mrb[0].mxu0
        %v4578 = vadd.f32 %v4537, %v4577
        %v4579 = vpop.f32.mrb[0].mxu0
        %v4580 = vpop.f32.mrb[0].mxu0
        %4581 = vdwg.mxu0
        %4582 = vmatprep.subr.bf16.mxu0 %v3420
        %4583 = vmatpush1.bf16.msra.mxu0 %v3419
        %4584 = vmatprep.subr.bf16.mxu0 %v3425
        %4585 = vmatpush1.bf16.msra.mxu0 %v3424
        %4586 = vmatprep.subr.bf16.mxu0 %v3430
        %4587 = vmatpush1.bf16.msra.mxu0 %v3429
        %4588 = vmatprep.subr.bf16.mxu0 %v3435
        %4589 = vmatpush1.bf16.msra.mxu0 %v3434
        %4590 = vmatprep.subr.bf16.mxu0 %v3440
        %4591 = vmatpush1.bf16.msra.mxu0 %v3439
        %4592 = vmatprep.subr.bf16.mxu0 %v3445
        %4593 = vmatpush1.bf16.msra.mxu0 %v3444
        %4594 = vmatprep.subr.bf16.mxu0 %v3450
        %4595 = vmatpush1.bf16.msra.mxu0 %v3449
        %4596 = vmatprep.subr.bf16.mxu0 %v3455
        %4597 = vmatpush1.bf16.msra.mxu0 %v3454
        %4598 = vmatprep.subr.bf16.mxu0 %v3460
        %4599 = vmatpush1.bf16.msra.mxu0 %v3459
        %4600 = vmatprep.subr.bf16.mxu0 %v3465
        %4601 = vmatpush1.bf16.msra.mxu0 %v3464
        %4602 = vmatprep.subr.bf16.mxu0 %v3470
        %4603 = vmatpush1.bf16.msra.mxu0 %v3469
        %4604 = vmatprep.subr.bf16.mxu0 %v3475
        %4605 = vmatpush1.bf16.msra.mxu0 %v3474
        %4606 = vmatprep.subr.bf16.mxu0 %v3480
        %4607 = vmatpush1.bf16.msra.mxu0 %v3479
        %4608 = vmatprep.subr.bf16.mxu0 %v3485
        %4609 = vmatpush1.bf16.msra.mxu0 %v3484
        %4610 = vmatprep.subr.bf16.mxu0 %v3490
        %4611 = vmatpush1.bf16.msra.mxu0 %v3489
        %4612 = vmatprep.subr.bf16.mxu0 %v3495
        %4613 = vmatpush1.bf16.msra.mxu0 %v3494
        %4614 = vmatprep.mubr.bf16.mxu0 %v1106
        %4615 = vmatmul.mubr.bf16.gmra.mrb[0].mxu0 %v1105
        %v4616 = vpop.f32.mrb[0].mxu0
        %v4617 = vadd.f32 %v4576, %v4616
        %v4618 = vpop.f32.mrb[0].mxu0
        %v4619 = vadd.f32 %v4578, %v4618
        %v4620 = vpop.f32.mrb[0].mxu0
        %v4621 = vpop.f32.mrb[0].mxu0
        %4622 = vdwg.mxu0
        %4623 = vmatprep.subr.bf16.mxu0 %v3500
        %4624 = vmatpush1.bf16.msra.mxu0 %v3499
        %4625 = vmatprep.subr.bf16.mxu0 %v3505
        %4626 = vmatpush1.bf16.msra.mxu0 %v3504
        %4627 = vmatprep.subr.bf16.mxu0 %v3510
        %4628 = vmatpush1.bf16.msra.mxu0 %v3509
        %4629 = vmatprep.subr.bf16.mxu0 %v3515
        %4630 = vmatpush1.bf16.msra.mxu0 %v3514
        %4631 = vmatprep.subr.bf16.mxu0 %v3520
        %4632 = vmatpush1.bf16.msra.mxu0 %v3519
        %4633 = vmatprep.subr.bf16.mxu0 %v3525
        %4634 = vmatpush1.bf16.msra.mxu0 %v3524
        %4635 = vmatprep.subr.bf16.mxu0 %v3530
        %4636 = vmatpush1.bf16.msra.mxu0 %v3529
        %4637 = vmatprep.subr.bf16.mxu0 %v3535
        %4638 = vmatpush1.bf16.msra.mxu0 %v3534
        %4639 = vmatprep.subr.bf16.mxu0 %v3540
        %4640 = vmatpush1.bf16.msra.mxu0 %v3539
        %4641 = vmatprep.subr.bf16.mxu0 %v3545
        %4642 = vmatpush1.bf16.msra.mxu0 %v3544
        %4643 = vmatprep.subr.bf16.mxu0 %v3550
        %4644 = vmatpush1.bf16.msra.mxu0 %v3549
        %4645 = vmatprep.subr.bf16.mxu0 %v3555
        %4646 = vmatpush1.bf16.msra.mxu0 %v3554
        %4647 = vmatprep.subr.bf16.mxu0 %v3560
        %4648 = vmatpush1.bf16.msra.mxu0 %v3559
        %4649 = vmatprep.subr.bf16.mxu0 %v3565
        %4650 = vmatpush1.bf16.msra.mxu0 %v3564
        %4651 = vmatprep.subr.bf16.mxu0 %v3570
        %4652 = vmatpush1.bf16.msra.mxu0 %v3569
        %4653 = vmatprep.subr.bf16.mxu0 %v3575
        %4654 = vmatpush1.bf16.msra.mxu0 %v3574
        %4655 = vmatprep.mubr.bf16.mxu0 %v1108
        %4656 = vmatmul.mubr.bf16.gmra.mrb[0].mxu0 %v1107
        %v4657 = vpop.f32.mrb[0].mxu0
        %v4658 = vadd.f32 %v4617, %v4657
        %v4659 = vpop.f32.mrb[0].mxu0
        %v4660 = vadd.f32 %v4619, %v4659
        %v4661 = vpop.f32.mrb[0].mxu0
        %v4662 = vpop.f32.mrb[0].mxu0
        %4663 = vdwg.mxu0
        %4664 = vmatprep.subr.bf16.mxu0 %v3580
        %4665 = vmatpush1.bf16.msra.mxu0 %v3579
        %4666 = vmatprep.subr.bf16.mxu0 %v3585
        %4667 = vmatpush1.bf16.msra.mxu0 %v3584
        %4668 = vmatprep.subr.bf16.mxu0 %v3590
        %4669 = vmatpush1.bf16.msra.mxu0 %v3589
        %4670 = vmatprep.subr.bf16.mxu0 %v3595
        %4671 = vmatpush1.bf16.msra.mxu0 %v3594
        %4672 = vmatprep.subr.bf16.mxu0 %v3600
        %4673 = vmatpush1.bf16.msra.mxu0 %v3599
        %4674 = vmatprep.subr.bf16.mxu0 %v3605
        %4675 = vmatpush1.bf16.msra.mxu0 %v3604
        %4676 = vmatprep.subr.bf16.mxu0 %v3610
        %4677 = vmatpush1.bf16.msra.mxu0 %v3609
        %4678 = vmatprep.subr.bf16.mxu0 %v3615
        %4679 = vmatpush1.bf16.msra.mxu0 %v3614
        %4680 = vmatprep.subr.bf16.mxu0 %v3620
        %4681 = vmatpush1.bf16.msra.mxu0 %v3619
        %4682 = vmatprep.subr.bf16.mxu0 %v3625
        %4683 = vmatpush1.bf16.msra.mxu0 %v3624
        %4684 = vmatprep.subr.bf16.mxu0 %v3630
        %4685 = vmatpush1.bf16.msra.mxu0 %v3629
        %4686 = vmatprep.subr.bf16.mxu0 %v3635
        %4687 = vmatpush1.bf16.msra.mxu0 %v3634
        %4688 = vmatprep.subr.bf16.mxu0 %v3640
        %4689 = vmatpush1.bf16.msra.mxu0 %v3639
        %4690 = vmatprep.subr.bf16.mxu0 %v3645
        %4691 = vmatpush1.bf16.msra.mxu0 %v3644
        %4692 = vmatprep.subr.bf16.mxu0 %v3650
        %4693 = vmatpush1.bf16.msra.mxu0 %v3649
        %4694 = vmatprep.subr.bf16.mxu0 %v3655
        %4695 = vmatpush1.bf16.msra.mxu0 %v3654
        %4696 = vmatprep.mubr.bf16.mxu0 %v1110
        %4697 = vmatmul.mubr.bf16.gmra.mrb[0].mxu0 %v1109
        %v4698 = vpop.f32.mrb[0].mxu0
        %v4699 = vadd.f32 %v4658, %v4698
        %v4700 = vpop.f32.mrb[0].mxu0
        %v4701 = vadd.f32 %v4660, %v4700
        %v4702 = vpop.f32.mrb[0].mxu0
        %v4703 = vpop.f32.mrb[0].mxu0
        %4704 = vdwg.mxu0
        %4705 = vmatprep.subr.bf16.mxu0 %v3660
        %4706 = vmatpush1.bf16.msra.mxu0 %v3659
        %4707 = vmatprep.subr.bf16.mxu0 %v3665
        %4708 = vmatpush1.bf16.msra.mxu0 %v3664
        %4709 = vmatprep.subr.bf16.mxu0 %v3670
        %4710 = vmatpush1.bf16.msra.mxu0 %v3669
        %4711 = vmatprep.subr.bf16.mxu0 %v3675
        %4712 = vmatpush1.bf16.msra.mxu0 %v3674
        %4713 = vmatprep.subr.bf16.mxu0 %v3680
        %4714 = vmatpush1.bf16.msra.mxu0 %v3679
        %4715 = vmatprep.subr.bf16.mxu0 %v3685
        %4716 = vmatpush1.bf16.msra.mxu0 %v3684
        %4717 = vmatprep.subr.bf16.mxu0 %v3690
        %4718 = vmatpush1.bf16.msra.mxu0 %v3689
        %4719 = vmatprep.subr.bf16.mxu0 %v3695
        %4720 = vmatpush1.bf16.msra.mxu0 %v3694
        %4721 = vmatprep.subr.bf16.mxu0 %v3700
        %4722 = vmatpush1.bf16.msra.mxu0 %v3699
        %4723 = vmatprep.subr.bf16.mxu0 %v3705
        %4724 = vmatpush1.bf16.msra.mxu0 %v3704
        %4725 = vmatprep.subr.bf16.mxu0 %v3710
        %4726 = vmatpush1.bf16.msra.mxu0 %v3709
        %4727 = vmatprep.subr.bf16.mxu0 %v3715
        %4728 = vmatpush1.bf16.msra.mxu0 %v3714
        %4729 = vmatprep.subr.bf16.mxu0 %v3720
        %4730 = vmatpush1.bf16.msra.mxu0 %v3719
        %4731 = vmatprep.subr.bf16.mxu0 %v3725
        %4732 = vmatpush1.bf16.msra.mxu0 %v3724
        %4733 = vmatprep.subr.bf16.mxu0 %v3730
        %4734 = vmatpush1.bf16.msra.mxu0 %v3729
        %4735 = vmatprep.subr.bf16.mxu0 %v3735
        %4736 = vmatpush1.bf16.msra.mxu0 %v3734
        %4737 = vmatprep.mubr.bf16.mxu0 %v1112
        %4738 = vmatmul.mubr.bf16.gmra.mrb[0].mxu0 %v1111
        %v4739 = vpop.f32.mrb[0].mxu0
        %v4740 = vadd.f32 %v4699, %v4739
        %v4741 = vpop.f32.mrb[0].mxu0
        %v4742 = vadd.f32 %v4701, %v4741
        %v4743 = vpop.f32.mrb[0].mxu0
        %v4744 = vpop.f32.mrb[0].mxu0
        %4745 = vdwg.mxu0
        %4746 = vmatprep.subr.bf16.mxu0 %v3740
        %4747 = vmatpush1.bf16.msra.mxu0 %v3739
        %4748 = vmatprep.subr.bf16.mxu0 %v3745
        %4749 = vmatpush1.bf16.msra.mxu0 %v3744
        %4750 = vmatprep.subr.bf16.mxu0 %v3750
        %4751 = vmatpush1.bf16.msra.mxu0 %v3749
        %4752 = vmatprep.subr.bf16.mxu0 %v3755
        %4753 = vmatpush1.bf16.msra.mxu0 %v3754
        %4754 = vmatprep.subr.bf16.mxu0 %v3760
        %4755 = vmatpush1.bf16.msra.mxu0 %v3759
        %4756 = vmatprep.subr.bf16.mxu0 %v3765
        %4757 = vmatpush1.bf16.msra.mxu0 %v3764
        %4758 = vmatprep.subr.bf16.mxu0 %v3770
        %4759 = vmatpush1.bf16.msra.mxu0 %v3769
        %4760 = vmatprep.subr.bf16.mxu0 %v3775
        %4761 = vmatpush1.bf16.msra.mxu0 %v3774
        %4762 = vmatprep.subr.bf16.mxu0 %v3780
        %4763 = vmatpush1.bf16.msra.mxu0 %v3779
        %4764 = vmatprep.subr.bf16.mxu0 %v3785
        %4765 = vmatpush1.bf16.msra.mxu0 %v3784
        %4766 = vmatprep.subr.bf16.mxu0 %v3790
        %4767 = vmatpush1.bf16.msra.mxu0 %v3789
        %4768 = vmatprep.subr.bf16.mxu0 %v3795
        %4769 = vmatpush1.bf16.msra.mxu0 %v3794
        %4770 = vmatprep.subr.bf16.mxu0 %v3800
        %4771 = vmatpush1.bf16.msra.mxu0 %v3799
        %4772 = vmatprep.subr.bf16.mxu0 %v3805
        %4773 = vmatpush1.bf16.msra.mxu0 %v3804
        %4774 = vmatprep.subr.bf16.mxu0 %v3810
        %4775 = vmatpush1.bf16.msra.mxu0 %v3809
        %4776 = vmatprep.subr.bf16.mxu0 %v3815
        %4777 = vmatpush1.bf16.msra.mxu0 %v3814
        %4778 = vmatprep.mubr.bf16.mxu0 %v1114
        %4779 = vmatmul.mubr.bf16.gmra.mrb[0].mxu0 %v1113
        %v4780 = vpop.f32.mrb[0].mxu0
        %v4781 = vadd.f32 %v4740, %v4780
        %v4782 = vpop.f32.mrb[0].mxu0
        %v4783 = vadd.f32 %v4742, %v4782
        %v4784 = vpop.f32.mrb[0].mxu0
        %v4785 = vpop.f32.mrb[0].mxu0
        %4786 = vdwg.mxu0
        %4787 = vmatprep.subr.bf16.mxu0 %v3182
        %4788 = vmatpush1.bf16.msra.mxu0 %v3181
        %4789 = vmatprep.subr.bf16.mxu0 %v3187
        %4790 = vmatpush1.bf16.msra.mxu0 %v3186
        %4791 = vmatprep.subr.bf16.mxu0 %v3192
        %4792 = vmatpush1.bf16.msra.mxu0 %v3191
        %4793 = vmatprep.subr.bf16.mxu0 %v3197
        %4794 = vmatpush1.bf16.msra.mxu0 %v3196
        %4795 = vmatprep.subr.bf16.mxu0 %v3202
        %4796 = vmatpush1.bf16.msra.mxu0 %v3201
        %4797 = vmatprep.subr.bf16.mxu0 %v3207
        %4798 = vmatpush1.bf16.msra.mxu0 %v3206
        %4799 = vmatprep.subr.bf16.mxu0 %v3212
        %4800 = vmatpush1.bf16.msra.mxu0 %v3211
        %4801 = vmatprep.subr.bf16.mxu0 %v3217
        %4802 = vmatpush1.bf16.msra.mxu0 %v3216
        %4803 = vmatprep.subr.bf16.mxu0 %v3222
        %4804 = vmatpush1.bf16.msra.mxu0 %v3221
        %4805 = vmatprep.subr.bf16.mxu0 %v3227
        %4806 = vmatpush1.bf16.msra.mxu0 %v3226
        %4807 = vmatprep.subr.bf16.mxu0 %v3232
        %4808 = vmatpush1.bf16.msra.mxu0 %v3231
        %4809 = vmatprep.subr.bf16.mxu0 %v3237
        %4810 = vmatpush1.bf16.msra.mxu0 %v3236
        %4811 = vmatprep.subr.bf16.mxu0 %v3242
        %4812 = vmatpush1.bf16.msra.mxu0 %v3241
        %4813 = vmatprep.subr.bf16.mxu0 %v3247
        %4814 = vmatpush1.bf16.msra.mxu0 %v3246
        %4815 = vmatprep.subr.bf16.mxu0 %v3252
        %4816 = vmatpush1.bf16.msra.mxu0 %v3251
        %4817 = vmatprep.subr.bf16.mxu0 %v3257
        %4818 = vmatpush1.bf16.msra.mxu0 %v3256
        %4819 = vmatprep.mubr.bf16.mxu0 %v1100
        %4820 = vmatmul.mubr.bf16.gmra.mrb[0].mxu0 %v1099
        %v4821 = vpop.f32.mrb[0].mxu0
        %v4822 = vadd.f32 0.0, %v4821
        %v4823 = vpop.f32.mrb[0].mxu0
        %v4824 = vadd.f32 0.0, %v4823
        %v4825 = vpop.f32.mrb[0].mxu0
        %v4826 = vpop.f32.mrb[0].mxu0
        %4827 = vdwg.mxu0
        %4828 = vmatprep.subr.bf16.mxu0 %v3262
        %4829 = vmatpush1.bf16.msra.mxu0 %v3261
        %4830 = vmatprep.subr.bf16.mxu0 %v3267
        %4831 = vmatpush1.bf16.msra.mxu0 %v3266
        %4832 = vmatprep.subr.bf16.mxu0 %v3272
        %4833 = vmatpush1.bf16.msra.mxu0 %v3271
        %4834 = vmatprep.subr.bf16.mxu0 %v3277
        %4835 = vmatpush1.bf16.msra.mxu0 %v3276
        %4836 = vmatprep.subr.bf16.mxu0 %v3282
        %4837 = vmatpush1.bf16.msra.mxu0 %v3281
        %4838 = vmatprep.subr.bf16.mxu0 %v3287
        %4839 = vmatpush1.bf16.msra.mxu0 %v3286
        %4840 = vmatprep.subr.bf16.mxu0 %v3292
        %4841 = vmatpush1.bf16.msra.mxu0 %v3291
        %4842 = vmatprep.subr.bf16.mxu0 %v3297
        %4843 = vmatpush1.bf16.msra.mxu0 %v3296
        %4844 = vmatprep.subr.bf16.mxu0 %v3302
        %4845 = vmatpush1.bf16.msra.mxu0 %v3301
        %4846 = vmatprep.subr.bf16.mxu0 %v3307
        %4847 = vmatpush1.bf16.msra.mxu0 %v3306
        %4848 = vmatprep.subr.bf16.mxu0 %v3312
        %4849 = vmatpush1.bf16.msra.mxu0 %v3311
        %4850 = vmatprep.subr.bf16.mxu0 %v3317
        %4851 = vmatpush1.bf16.msra.mxu0 %v3316
        %4852 = vmatprep.subr.bf16.mxu0 %v3322
        %4853 = vmatpush1.bf16.msra.mxu0 %v3321
        %4854 = vmatprep.subr.bf16.mxu0 %v3327
        %4855 = vmatpush1.bf16.msra.mxu0 %v3326
        %4856 = vmatprep.subr.bf16.mxu0 %v3332
        %4857 = vmatpush1.bf16.msra.mxu0 %v3331
        %4858 = vmatprep.subr.bf16.mxu0 %v3337
        %4859 = vmatpush1.bf16.msra.mxu0 %v3336
        %4860 = vmatprep.mubr.bf16.mxu0 %v1102
        %4861 = vmatmul.mubr.bf16.gmra.mrb[0].mxu0 %v1101
        %v4862 = vpop.f32.mrb[0].mxu0
        %v4863 = vadd.f32 %v4822, %v4862
        %v4864 = vpop.f32.mrb[0].mxu0
        %v4865 = vadd.f32 %v4824, %v4864
        %v4866 = vpop.f32.mrb[0].mxu0
        %v4867 = vpop.f32.mrb[0].mxu0
        %4868 = vdwg.mxu0
        %4869 = vmatprep.subr.bf16.mxu0 %v3342
        %4870 = vmatpush1.bf16.msra.mxu0 %v3341
        %4871 = vmatprep.subr.bf16.mxu0 %v3347
        %4872 = vmatpush1.bf16.msra.mxu0 %v3346
        %4873 = vmatprep.subr.bf16.mxu0 %v3352
        %4874 = vmatpush1.bf16.msra.mxu0 %v3351
        %4875 = vmatprep.subr.bf16.mxu0 %v3357
        %4876 = vmatpush1.bf16.msra.mxu0 %v3356
        %4877 = vmatprep.subr.bf16.mxu0 %v3362
        %4878 = vmatpush1.bf16.msra.mxu0 %v3361
        %4879 = vmatprep.subr.bf16.mxu0 %v3367
        %4880 = vmatpush1.bf16.msra.mxu0 %v3366
        %4881 = vmatprep.subr.bf16.mxu0 %v3372
        %4882 = vmatpush1.bf16.msra.mxu0 %v3371
        %4883 = vmatprep.subr.bf16.mxu0 %v3377
        %4884 = vmatpush1.bf16.msra.mxu0 %v3376
        %4885 = vmatprep.subr.bf16.mxu0 %v3382
        %4886 = vmatpush1.bf16.msra.mxu0 %v3381
        %4887 = vmatprep.subr.bf16.mxu0 %v3387
        %4888 = vmatpush1.bf16.msra.mxu0 %v3386
        %4889 = vmatprep.subr.bf16.mxu0 %v3392
        %4890 = vmatpush1.bf16.msra.mxu0 %v3391
        %4891 = vmatprep.subr.bf16.mxu0 %v3397
        %4892 = vmatpush1.bf16.msra.mxu0 %v3396
        %4893 = vmatprep.subr.bf16.mxu0 %v3402
        %4894 = vmatpush1.bf16.msra.mxu0 %v3401
        %4895 = vmatprep.subr.bf16.mxu0 %v3407
        %4896 = vmatpush1.bf16.msra.mxu0 %v3406
        %4897 = vmatprep.subr.bf16.mxu0 %v3412
        %4898 = vmatpush1.bf16.msra.mxu0 %v3411
        %4899 = vmatprep.subr.bf16.mxu0 %v3417
        %4900 = vmatpush1.bf16.msra.mxu0 %v3416
        %4901 = vmatprep.mubr.bf16.mxu0 %v1104
        %4902 = vmatmul.mubr.bf16.gmra.mrb[0].mxu0 %v1103
        %v4903 = vpop.f32.mrb[0].mxu0
        %v4904 = vadd.f32 %v4863, %v4903
        %v4905 = vpop.f32.mrb[0].mxu0
        %v4906 = vadd.f32 %v4865, %v4905
        %v4907 = vpop.f32.mrb[0].mxu0
        %v4908 = vpop.f32.mrb[0].mxu0
        %4909 = vdwg.mxu0
        %4910 = vmatprep.subr.bf16.mxu0 %v3422
        %4911 = vmatpush1.bf16.msra.mxu0 %v3421
        %4912 = vmatprep.subr.bf16.mxu0 %v3427
        %4913 = vmatpush1.bf16.msra.mxu0 %v3426
        %4914 = vmatprep.subr.bf16.mxu0 %v3432
        %4915 = vmatpush1.bf16.msra.mxu0 %v3431
        %4916 = vmatprep.subr.bf16.mxu0 %v3437
        %4917 = vmatpush1.bf16.msra.mxu0 %v3436
        %4918 = vmatprep.subr.bf16.mxu0 %v3442
        %4919 = vmatpush1.bf16.msra.mxu0 %v3441
        %4920 = vmatprep.subr.bf16.mxu0 %v3447
        %4921 = vmatpush1.bf16.msra.mxu0 %v3446
        %4922 = vmatprep.subr.bf16.mxu0 %v3452
        %4923 = vmatpush1.bf16.msra.mxu0 %v3451
        %4924 = vmatprep.subr.bf16.mxu0 %v3457
        %4925 = vmatpush1.bf16.msra.mxu0 %v3456
        %4926 = vmatprep.subr.bf16.mxu0 %v3462
        %4927 = vmatpush1.bf16.msra.mxu0 %v3461
        %4928 = vmatprep.subr.bf16.mxu0 %v3467
        %4929 = vmatpush1.bf16.msra.mxu0 %v3466
        %4930 = vmatprep.subr.bf16.mxu0 %v3472
        %4931 = vmatpush1.bf16.msra.mxu0 %v3471
        %4932 = vmatprep.subr.bf16.mxu0 %v3477
        %4933 = vmatpush1.bf16.msra.mxu0 %v3476
        %4934 = vmatprep.subr.bf16.mxu0 %v3482
        %4935 = vmatpush1.bf16.msra.mxu0 %v3481
        %4936 = vmatprep.subr.bf16.mxu0 %v3487
        %4937 = vmatpush1.bf16.msra.mxu0 %v3486
        %4938 = vmatprep.subr.bf16.mxu0 %v3492
        %4939 = vmatpush1.bf16.msra.mxu0 %v3491
        %4940 = vmatprep.subr.bf16.mxu0 %v3497
        %4941 = vmatpush1.bf16.msra.mxu0 %v3496
        %4942 = vmatprep.mubr.bf16.mxu0 %v1106
        %4943 = vmatmul.mubr.bf16.gmra.mrb[0].mxu0 %v1105
        %v4944 = vpop.f32.mrb[0].mxu0
        %v4945 = vadd.f32 %v4904, %v4944
        %v4946 = vpop.f32.mrb[0].mxu0
        %v4947 = vadd.f32 %v4906, %v4946
        %v4948 = vpop.f32.mrb[0].mxu0
        %v4949 = vpop.f32.mrb[0].mxu0
        %4950 = vdwg.mxu0
        %4951 = vmatprep.subr.bf16.mxu0 %v3502
        %4952 = vmatpush1.bf16.msra.mxu0 %v3501
        %4953 = vmatprep.subr.bf16.mxu0 %v3507
        %4954 = vmatpush1.bf16.msra.mxu0 %v3506
        %4955 = vmatprep.subr.bf16.mxu0 %v3512
        %4956 = vmatpush1.bf16.msra.mxu0 %v3511
        %4957 = vmatprep.subr.bf16.mxu0 %v3517
        %4958 = vmatpush1.bf16.msra.mxu0 %v3516
        %4959 = vmatprep.subr.bf16.mxu0 %v3522
        %4960 = vmatpush1.bf16.msra.mxu0 %v3521
        %4961 = vmatprep.subr.bf16.mxu0 %v3527
        %4962 = vmatpush1.bf16.msra.mxu0 %v3526
        %4963 = vmatprep.subr.bf16.mxu0 %v3532
        %4964 = vmatpush1.bf16.msra.mxu0 %v3531
        %4965 = vmatprep.subr.bf16.mxu0 %v3537
        %4966 = vmatpush1.bf16.msra.mxu0 %v3536
        %4967 = vmatprep.subr.bf16.mxu0 %v3542
        %4968 = vmatpush1.bf16.msra.mxu0 %v3541
        %4969 = vmatprep.subr.bf16.mxu0 %v3547
        %4970 = vmatpush1.bf16.msra.mxu0 %v3546
        %4971 = vmatprep.subr.bf16.mxu0 %v3552
        %4972 = vmatpush1.bf16.msra.mxu0 %v3551
        %4973 = vmatprep.subr.bf16.mxu0 %v3557
        %4974 = vmatpush1.bf16.msra.mxu0 %v3556
        %4975 = vmatprep.subr.bf16.mxu0 %v3562
        %4976 = vmatpush1.bf16.msra.mxu0 %v3561
        %4977 = vmatprep.subr.bf16.mxu0 %v3567
        %4978 = vmatpush1.bf16.msra.mxu0 %v3566
        %4979 = vmatprep.subr.bf16.mxu0 %v3572
        %4980 = vmatpush1.bf16.msra.mxu0 %v3571
        %4981 = vmatprep.subr.bf16.mxu0 %v3577
        %4982 = vmatpush1.bf16.msra.mxu0 %v3576
        %4983 = vmatprep.mubr.bf16.mxu0 %v1108
        %4984 = vmatmul.mubr.bf16.gmra.mrb[0].mxu0 %v1107
        %v4985 = vpop.f32.mrb[0].mxu0
        %v4986 = vadd.f32 %v4945, %v4985
        %v4987 = vpop.f32.mrb[0].mxu0
        %v4988 = vadd.f32 %v4947, %v4987
        %v4989 = vpop.f32.mrb[0].mxu0
        %v4990 = vpop.f32.mrb[0].mxu0
        %4991 = vdwg.mxu0
        %4992 = vmatprep.subr.bf16.mxu0 %v3582
        %4993 = vmatpush1.bf16.msra.mxu0 %v3581
        %4994 = vmatprep.subr.bf16.mxu0 %v3587
        %4995 = vmatpush1.bf16.msra.mxu0 %v3586
        %4996 = vmatprep.subr.bf16.mxu0 %v3592
        %4997 = vmatpush1.bf16.msra.mxu0 %v3591
        %4998 = vmatprep.subr.bf16.mxu0 %v3597
        %4999 = vmatpush1.bf16.msra.mxu0 %v3596
        %5000 = vmatprep.subr.bf16.mxu0 %v3602
        %5001 = vmatpush1.bf16.msra.mxu0 %v3601
        %5002 = vmatprep.subr.bf16.mxu0 %v3607
        %5003 = vmatpush1.bf16.msra.mxu0 %v3606
        %5004 = vmatprep.subr.bf16.mxu0 %v3612
        %5005 = vmatpush1.bf16.msra.mxu0 %v3611
        %5006 = vmatprep.subr.bf16.mxu0 %v3617
        %5007 = vmatpush1.bf16.msra.mxu0 %v3616
        %5008 = vmatprep.subr.bf16.mxu0 %v3622
        %5009 = vmatpush1.bf16.msra.mxu0 %v3621
        %5010 = vmatprep.subr.bf16.mxu0 %v3627
        %5011 = vmatpush1.bf16.msra.mxu0 %v3626
        %5012 = vmatprep.subr.bf16.mxu0 %v3632
        %5013 = vmatpush1.bf16.msra.mxu0 %v3631
        %5014 = vmatprep.subr.bf16.mxu0 %v3637
        %5015 = vmatpush1.bf16.msra.mxu0 %v3636
        %5016 = vmatprep.subr.bf16.mxu0 %v3642
        %5017 = vmatpush1.bf16.msra.mxu0 %v3641
        %5018 = vmatprep.subr.bf16.mxu0 %v3647
        %5019 = vmatpush1.bf16.msra.mxu0 %v3646
        %5020 = vmatprep.subr.bf16.mxu0 %v3652
        %5021 = vmatpush1.bf16.msra.mxu0 %v3651
        %5022 = vmatprep.subr.bf16.mxu0 %v3657
        %5023 = vmatpush1.bf16.msra.mxu0 %v3656
        %5024 = vmatprep.mubr.bf16.mxu0 %v1110
        %5025 = vmatmul.mubr.bf16.gmra.mrb[0].mxu0 %v1109
        %v5026 = vpop.f32.mrb[0].mxu0
        %v5027 = vadd.f32 %v4986, %v5026
        %v5028 = vpop.f32.mrb[0].mxu0
        %v5029 = vadd.f32 %v4988, %v5028
        %v5030 = vpop.f32.mrb[0].mxu0
        %v5031 = vpop.f32.mrb[0].mxu0
        %5032 = vdwg.mxu0
        %5033 = vmatprep.subr.bf16.mxu0 %v3662
        %5034 = vmatpush1.bf16.msra.mxu0 %v3661
        %5035 = vmatprep.subr.bf16.mxu0 %v3667
        %5036 = vmatpush1.bf16.msra.mxu0 %v3666
        %5037 = vmatprep.subr.bf16.mxu0 %v3672
        %5038 = vmatpush1.bf16.msra.mxu0 %v3671
        %5039 = vmatprep.subr.bf16.mxu0 %v3677
        %5040 = vmatpush1.bf16.msra.mxu0 %v3676
        %5041 = vmatprep.subr.bf16.mxu0 %v3682
        %5042 = vmatpush1.bf16.msra.mxu0 %v3681
        %5043 = vmatprep.subr.bf16.mxu0 %v3687
        %5044 = vmatpush1.bf16.msra.mxu0 %v3686
        %5045 = vmatprep.subr.bf16.mxu0 %v3692
        %5046 = vmatpush1.bf16.msra.mxu0 %v3691
        %5047 = vmatprep.subr.bf16.mxu0 %v3697
        %5048 = vmatpush1.bf16.msra.mxu0 %v3696
        %5049 = vmatprep.subr.bf16.mxu0 %v3702
        %5050 = vmatpush1.bf16.msra.mxu0 %v3701
        %5051 = vmatprep.subr.bf16.mxu0 %v3707
        %5052 = vmatpush1.bf16.msra.mxu0 %v3706
        %5053 = vmatprep.subr.bf16.mxu0 %v3712
        %5054 = vmatpush1.bf16.msra.mxu0 %v3711
        %5055 = vmatprep.subr.bf16.mxu0 %v3717
        %5056 = vmatpush1.bf16.msra.mxu0 %v3716
        %5057 = vmatprep.subr.bf16.mxu0 %v3722
        %5058 = vmatpush1.bf16.msra.mxu0 %v3721
        %5059 = vmatprep.subr.bf16.mxu0 %v3727
        %5060 = vmatpush1.bf16.msra.mxu0 %v3726
        %5061 = vmatprep.subr.bf16.mxu0 %v3732
        %5062 = vmatpush1.bf16.msra.mxu0 %v3731
        %5063 = vmatprep.subr.bf16.mxu0 %v3737
        %5064 = vmatpush1.bf16.msra.mxu0 %v3736
        %5065 = vmatprep.mubr.bf16.mxu0 %v1112
        %5066 = vmatmul.mubr.bf16.gmra.mrb[0].mxu0 %v1111
        %v5067 = vpop.f32.mrb[0].mxu0
        %v5068 = vadd.f32 %v5027, %v5067
        %v5069 = vpop.f32.mrb[0].mxu0
        %v5070 = vadd.f32 %v5029, %v5069
        %v5071 = vpop.f32.mrb[0].mxu0
        %v5072 = vpop.f32.mrb[0].mxu0
        %5073 = vdwg.mxu0
        %5074 = vmatprep.subr.bf16.mxu0 %v3742
        %5075 = vmatpush1.bf16.msra.mxu0 %v3741
        %5076 = vmatprep.subr.bf16.mxu0 %v3747
        %5077 = vmatpush1.bf16.msra.mxu0 %v3746
        %5078 = vmatprep.subr.bf16.mxu0 %v3752
        %5079 = vmatpush1.bf16.msra.mxu0 %v3751
        %5080 = vmatprep.subr.bf16.mxu0 %v3757
        %5081 = vmatpush1.bf16.msra.mxu0 %v3756
        %5082 = vmatprep.subr.bf16.mxu0 %v3762
        %5083 = vmatpush1.bf16.msra.mxu0 %v3761
        %5084 = vmatprep.subr.bf16.mxu0 %v3767
        %5085 = vmatpush1.bf16.msra.mxu0 %v3766
        %5086 = vmatprep.subr.bf16.mxu0 %v3772
        %5087 = vmatpush1.bf16.msra.mxu0 %v3771
        %5088 = vmatprep.subr.bf16.mxu0 %v3777
        %5089 = vmatpush1.bf16.msra.mxu0 %v3776
        %5090 = vmatprep.subr.bf16.mxu0 %v3782
        %5091 = vmatpush1.bf16.msra.mxu0 %v3781
        %5092 = vmatprep.subr.bf16.mxu0 %v3787
        %5093 = vmatpush1.bf16.msra.mxu0 %v3786
        %5094 = vmatprep.subr.bf16.mxu0 %v3792
        %5095 = vmatpush1.bf16.msra.mxu0 %v3791
        %5096 = vmatprep.subr.bf16.mxu0 %v3797
        %5097 = vmatpush1.bf16.msra.mxu0 %v3796
        %5098 = vmatprep.subr.bf16.mxu0 %v3802
        %5099 = vmatpush1.bf16.msra.mxu0 %v3801
        %5100 = vmatprep.subr.bf16.mxu0 %v3807
        %5101 = vmatpush1.bf16.msra.mxu0 %v3806
        %5102 = vmatprep.subr.bf16.mxu0 %v3812
        %5103 = vmatpush1.bf16.msra.mxu0 %v3811
        %5104 = vmatprep.subr.bf16.mxu0 %v3817
        %5105 = vmatpush1.bf16.msra.mxu0 %v3816
        %5106 = vmatprep.mubr.bf16.mxu0 %v1114
        %5107 = vmatmul.mubr.bf16.gmra.mrb[0].mxu0 %v1113
        %v5108 = vpop.f32.mrb[0].mxu0
        %v5109 = vadd.f32 %v5068, %v5108
        %v5110 = vpop.f32.mrb[0].mxu0
        %v5111 = vadd.f32 %v5070, %v5110
        %v5112 = vpop.f32.mrb[0].mxu0
        %v5113 = vpop.f32.mrb[0].mxu0
        %5114 = vdwg.mxu0
        %5115 = vmatprep.subr.bf16.mxu0 0
        %5116 = vmatpush1.bf16.msra.mxu0 %v3183
        %5117 = vmatprep.subr.bf16.mxu0 0
        %5118 = vmatpush1.bf16.msra.mxu0 %v3188
        %5119 = vmatprep.subr.bf16.mxu0 0
        %5120 = vmatpush1.bf16.msra.mxu0 %v3193
        %5121 = vmatprep.subr.bf16.mxu0 0
        %5122 = vmatpush1.bf16.msra.mxu0 %v3198
        %5123 = vmatprep.subr.bf16.mxu0 0
        %5124 = vmatpush1.bf16.msra.mxu0 %v3203
        %5125 = vmatprep.subr.bf16.mxu0 0
        %5126 = vmatpush1.bf16.msra.mxu0 %v3208
        %5127 = vmatprep.subr.bf16.mxu0 0
        %5128 = vmatpush1.bf16.msra.mxu0 %v3213
        %5129 = vmatprep.subr.bf16.mxu0 0
        %5130 = vmatpush1.bf16.msra.mxu0 %v3218
        %5131 = vmatprep.subr.bf16.mxu0 0
        %5132 = vmatpush1.bf16.msra.mxu0 %v3223
        %5133 = vmatprep.subr.bf16.mxu0 0
        %5134 = vmatpush1.bf16.msra.mxu0 %v3228
        %5135 = vmatprep.subr.bf16.mxu0 0
        %5136 = vmatpush1.bf16.msra.mxu0 %v3233
        %5137 = vmatprep.subr.bf16.mxu0 0
        %5138 = vmatpush1.bf16.msra.mxu0 %v3238
        %5139 = vmatprep.subr.bf16.mxu0 0
        %5140 = vmatpush1.bf16.msra.mxu0 %v3243
        %5141 = vmatprep.subr.bf16.mxu0 0
        %5142 = vmatpush1.bf16.msra.mxu0 %v3248
        %5143 = vmatprep.subr.bf16.mxu0 0
        %5144 = vmatpush1.bf16.msra.mxu0 %v3253
        %5145 = vmatprep.subr.bf16.mxu0 0
        %5146 = vmatpush1.bf16.msra.mxu0 %v3258
        %5147 = vmatprep.mubr.bf16.mxu0 %v1100
        %5148 = vmatmul.mubr.bf16.gmra.mrb[0].mxu0 %v1099
        %v5149 = vpop.f32.mrb[0].mxu0
        %v5150 = vadd.f32 0.0, %v5149
        %v5151 = vpop.f32.mrb[0].mxu0
        %v5152 = vpop.f32.mrb[0].mxu0
        %v5153 = vpop.f32.mrb[0].mxu0
        %5154 = vdwg.mxu0
        %5155 = vmatprep.subr.bf16.mxu0 0
        %5156 = vmatpush1.bf16.msra.mxu0 %v3263
        %5157 = vmatprep.subr.bf16.mxu0 0
        %5158 = vmatpush1.bf16.msra.mxu0 %v3268
        %5159 = vmatprep.subr.bf16.mxu0 0
        %5160 = vmatpush1.bf16.msra.mxu0 %v3273
        %5161 = vmatprep.subr.bf16.mxu0 0
        %5162 = vmatpush1.bf16.msra.mxu0 %v3278
        %5163 = vmatprep.subr.bf16.mxu0 0
        %5164 = vmatpush1.bf16.msra.mxu0 %v3283
        %5165 = vmatprep.subr.bf16.mxu0 0
        %5166 = vmatpush1.bf16.msra.mxu0 %v3288
        %5167 = vmatprep.subr.bf16.mxu0 0
        %5168 = vmatpush1.bf16.msra.mxu0 %v3293
        %5169 = vmatprep.subr.bf16.mxu0 0
        %5170 = vmatpush1.bf16.msra.mxu0 %v3298
        %5171 = vmatprep.subr.bf16.mxu0 0
        %5172 = vmatpush1.bf16.msra.mxu0 %v3303
        %5173 = vmatprep.subr.bf16.mxu0 0
        %5174 = vmatpush1.bf16.msra.mxu0 %v3308
        %5175 = vmatprep.subr.bf16.mxu0 0
        %5176 = vmatpush1.bf16.msra.mxu0 %v3313
        %5177 = vmatprep.subr.bf16.mxu0 0
        %5178 = vmatpush1.bf16.msra.mxu0 %v3318
        %5179 = vmatprep.subr.bf16.mxu0 0
        %5180 = vmatpush1.bf16.msra.mxu0 %v3323
        %5181 = vmatprep.subr.bf16.mxu0 0
        %5182 = vmatpush1.bf16.msra.mxu0 %v3328
        %5183 = vmatprep.subr.bf16.mxu0 0
        %5184 = vmatpush1.bf16.msra.mxu0 %v3333
        %5185 = vmatprep.subr.bf16.mxu0 0
        %5186 = vmatpush1.bf16.msra.mxu0 %v3338
        %5187 = vmatprep.mubr.bf16.mxu0 %v1102
        %5188 = vmatmul.mubr.bf16.gmra.mrb[0].mxu0 %v1101
        %v5189 = vpop.f32.mrb[0].mxu0
        %v5190 = vadd.f32 %v5150, %v5189
        %v5191 = vpop.f32.mrb[0].mxu0
        %v5192 = vpop.f32.mrb[0].mxu0
        %v5193 = vpop.f32.mrb[0].mxu0
        %5194 = vdwg.mxu0
        %5195 = vmatprep.subr.bf16.mxu0 0
        %5196 = vmatpush1.bf16.msra.mxu0 %v3343
        %5197 = vmatprep.subr.bf16.mxu0 0
        %5198 = vmatpush1.bf16.msra.mxu0 %v3348
        %5199 = vmatprep.subr.bf16.mxu0 0
        %5200 = vmatpush1.bf16.msra.mxu0 %v3353
        %5201 = vmatprep.subr.bf16.mxu0 0
        %5202 = vmatpush1.bf16.msra.mxu0 %v3358
        %5203 = vmatprep.subr.bf16.mxu0 0
        %5204 = vmatpush1.bf16.msra.mxu0 %v3363
        %5205 = vmatprep.subr.bf16.mxu0 0
        %5206 = vmatpush1.bf16.msra.mxu0 %v3368
        %5207 = vmatprep.subr.bf16.mxu0 0
        %5208 = vmatpush1.bf16.msra.mxu0 %v3373
        %5209 = vmatprep.subr.bf16.mxu0 0
        %5210 = vmatpush1.bf16.msra.mxu0 %v3378
        %5211 = vmatprep.subr.bf16.mxu0 0
        %5212 = vmatpush1.bf16.msra.mxu0 %v3383
        %5213 = vmatprep.subr.bf16.mxu0 0
        %5214 = vmatpush1.bf16.msra.mxu0 %v3388
        %5215 = vmatprep.subr.bf16.mxu0 0
        %5216 = vmatpush1.bf16.msra.mxu0 %v3393
        %5217 = vmatprep.subr.bf16.mxu0 0
        %5218 = vmatpush1.bf16.msra.mxu0 %v3398
        %5219 = vmatprep.subr.bf16.mxu0 0
        %5220 = vmatpush1.bf16.msra.mxu0 %v3403
        %5221 = vmatprep.subr.bf16.mxu0 0
        %5222 = vmatpush1.bf16.msra.mxu0 %v3408
        %5223 = vmatprep.subr.bf16.mxu0 0
        %5224 = vmatpush1.bf16.msra.mxu0 %v3413
        %5225 = vmatprep.subr.bf16.mxu0 0
        %5226 = vmatpush1.bf16.msra.mxu0 %v3418
        %5227 = vmatprep.mubr.bf16.mxu0 %v1104
        %5228 = vmatmul.mubr.bf16.gmra.mrb[0].mxu0 %v1103
        %v5229 = vpop.f32.mrb[0].mxu0
        %v5230 = vadd.f32 %v5190, %v5229
        %v5231 = vpop.f32.mrb[0].mxu0
        %v5232 = vpop.f32.mrb[0].mxu0
        %v5233 = vpop.f32.mrb[0].mxu0
        %5234 = vdwg.mxu0
        %5235 = vmatprep.subr.bf16.mxu0 0
        %5236 = vmatpush1.bf16.msra.mxu0 %v3423
        %5237 = vmatprep.subr.bf16.mxu0 0
        %5238 = vmatpush1.bf16.msra.mxu0 %v3428
        %5239 = vmatprep.subr.bf16.mxu0 0
        %5240 = vmatpush1.bf16.msra.mxu0 %v3433
        %5241 = vmatprep.subr.bf16.mxu0 0
        %5242 = vmatpush1.bf16.msra.mxu0 %v3438
        %5243 = vmatprep.subr.bf16.mxu0 0
        %5244 = vmatpush1.bf16.msra.mxu0 %v3443
        %5245 = vmatprep.subr.bf16.mxu0 0
        %5246 = vmatpush1.bf16.msra.mxu0 %v3448
        %5247 = vmatprep.subr.bf16.mxu0 0
        %5248 = vmatpush1.bf16.msra.mxu0 %v3453
        %5249 = vmatprep.subr.bf16.mxu0 0
        %5250 = vmatpush1.bf16.msra.mxu0 %v3458
        %5251 = vmatprep.subr.bf16.mxu0 0
        %5252 = vmatpush1.bf16.msra.mxu0 %v3463
        %5253 = vmatprep.subr.bf16.mxu0 0
        %5254 = vmatpush1.bf16.msra.mxu0 %v3468
        %5255 = vmatprep.subr.bf16.mxu0 0
        %5256 = vmatpush1.bf16.msra.mxu0 %v3473
        %5257 = vmatprep.subr.bf16.mxu0 0
        %5258 = vmatpush1.bf16.msra.mxu0 %v3478
        %5259 = vmatprep.subr.bf16.mxu0 0
        %5260 = vmatpush1.bf16.msra.mxu0 %v3483
        %5261 = vmatprep.subr.bf16.mxu0 0
        %5262 = vmatpush1.bf16.msra.mxu0 %v3488
        %5263 = vmatprep.subr.bf16.mxu0 0
        %5264 = vmatpush1.bf16.msra.mxu0 %v3493
        %5265 = vmatprep.subr.bf16.mxu0 0
        %5266 = vmatpush1.bf16.msra.mxu0 %v3498
        %5267 = vmatprep.mubr.bf16.mxu0 %v1106
        %5268 = vmatmul.mubr.bf16.gmra.mrb[0].mxu0 %v1105
        %v5269 = vpop.f32.mrb[0].mxu0
        %v5270 = vadd.f32 %v5230, %v5269
        %v5271 = vpop.f32.mrb[0].mxu0
        %v5272 = vpop.f32.mrb[0].mxu0
        %v5273 = vpop.f32.mrb[0].mxu0
        %5274 = vdwg.mxu0
        %5275 = vmatprep.subr.bf16.mxu0 0
        %5276 = vmatpush1.bf16.msra.mxu0 %v3503
        %5277 = vmatprep.subr.bf16.mxu0 0
        %5278 = vmatpush1.bf16.msra.mxu0 %v3508
        %5279 = vmatprep.subr.bf16.mxu0 0
        %5280 = vmatpush1.bf16.msra.mxu0 %v3513
        %5281 = vmatprep.subr.bf16.mxu0 0
        %5282 = vmatpush1.bf16.msra.mxu0 %v3518
        %5283 = vmatprep.subr.bf16.mxu0 0
        %5284 = vmatpush1.bf16.msra.mxu0 %v3523
        %5285 = vmatprep.subr.bf16.mxu0 0
        %5286 = vmatpush1.bf16.msra.mxu0 %v3528
        %5287 = vmatprep.subr.bf16.mxu0 0
        %5288 = vmatpush1.bf16.msra.mxu0 %v3533
        %5289 = vmatprep.subr.bf16.mxu0 0
        %5290 = vmatpush1.bf16.msra.mxu0 %v3538
        %5291 = vmatprep.subr.bf16.mxu0 0
        %5292 = vmatpush1.bf16.msra.mxu0 %v3543
        %5293 = vmatprep.subr.bf16.mxu0 0
        %5294 = vmatpush1.bf16.msra.mxu0 %v3548
        %5295 = vmatprep.subr.bf16.mxu0 0
        %5296 = vmatpush1.bf16.msra.mxu0 %v3553
        %5297 = vmatprep.subr.bf16.mxu0 0
        %5298 = vmatpush1.bf16.msra.mxu0 %v3558
        %5299 = vmatprep.subr.bf16.mxu0 0
        %5300 = vmatpush1.bf16.msra.mxu0 %v3563
        %5301 = vmatprep.subr.bf16.mxu0 0
        %5302 = vmatpush1.bf16.msra.mxu0 %v3568
        %5303 = vmatprep.subr.bf16.mxu0 0
        %5304 = vmatpush1.bf16.msra.mxu0 %v3573
        %5305 = vmatprep.subr.bf16.mxu0 0
        %5306 = vmatpush1.bf16.msra.mxu0 %v3578
        %5307 = vmatprep.mubr.bf16.mxu0 %v1108
        %5308 = vmatmul.mubr.bf16.gmra.mrb[0].mxu0 %v1107
        %v5309 = vpop.f32.mrb[0].mxu0
        %v5310 = vadd.f32 %v5270, %v5309
        %v5311 = vpop.f32.mrb[0].mxu0
        %v5312 = vpop.f32.mrb[0].mxu0
        %v5313 = vpop.f32.mrb[0].mxu0
        %5314 = vdwg.mxu0
        %5315 = vmatprep.subr.bf16.mxu0 0
        %5316 = vmatpush1.bf16.msra.mxu0 %v3583
        %5317 = vmatprep.subr.bf16.mxu0 0
        %5318 = vmatpush1.bf16.msra.mxu0 %v3588
        %5319 = vmatprep.subr.bf16.mxu0 0
        %5320 = vmatpush1.bf16.msra.mxu0 %v3593
        %5321 = vmatprep.subr.bf16.mxu0 0
        %5322 = vmatpush1.bf16.msra.mxu0 %v3598
        %5323 = vmatprep.subr.bf16.mxu0 0
        %5324 = vmatpush1.bf16.msra.mxu0 %v3603
        %5325 = vmatprep.subr.bf16.mxu0 0
        %5326 = vmatpush1.bf16.msra.mxu0 %v3608
        %5327 = vmatprep.subr.bf16.mxu0 0
        %5328 = vmatpush1.bf16.msra.mxu0 %v3613
        %5329 = vmatprep.subr.bf16.mxu0 0
        %5330 = vmatpush1.bf16.msra.mxu0 %v3618
        %5331 = vmatprep.subr.bf16.mxu0 0
        %5332 = vmatpush1.bf16.msra.mxu0 %v3623
        %5333 = vmatprep.subr.bf16.mxu0 0
        %5334 = vmatpush1.bf16.msra.mxu0 %v3628
        %5335 = vmatprep.subr.bf16.mxu0 0
        %5336 = vmatpush1.bf16.msra.mxu0 %v3633
        %5337 = vmatprep.subr.bf16.mxu0 0
        %5338 = vmatpush1.bf16.msra.mxu0 %v3638
        %5339 = vmatprep.subr.bf16.mxu0 0
        %5340 = vmatpush1.bf16.msra.mxu0 %v3643
        %5341 = vmatprep.subr.bf16.mxu0 0
        %5342 = vmatpush1.bf16.msra.mxu0 %v3648
        %5343 = vmatprep.subr.bf16.mxu0 0
        %5344 = vmatpush1.bf16.msra.mxu0 %v3653
        %5345 = vmatprep.subr.bf16.mxu0 0
        %5346 = vmatpush1.bf16.msra.mxu0 %v3658
        %5347 = vmatprep.mubr.bf16.mxu0 %v1110
        %5348 = vmatmul.mubr.bf16.gmra.mrb[0].mxu0 %v1109
        %v5349 = vpop.f32.mrb[0].mxu0
        %v5350 = vadd.f32 %v5310, %v5349
        %v5351 = vpop.f32.mrb[0].mxu0
        %v5352 = vpop.f32.mrb[0].mxu0
        %v5353 = vpop.f32.mrb[0].mxu0
        %5354 = vdwg.mxu0
        %5355 = vmatprep.subr.bf16.mxu0 0
        %5356 = vmatpush1.bf16.msra.mxu0 %v3663
        %5357 = vmatprep.subr.bf16.mxu0 0
        %5358 = vmatpush1.bf16.msra.mxu0 %v3668
        %5359 = vmatprep.subr.bf16.mxu0 0
        %5360 = vmatpush1.bf16.msra.mxu0 %v3673
        %5361 = vmatprep.subr.bf16.mxu0 0
        %5362 = vmatpush1.bf16.msra.mxu0 %v3678
        %5363 = vmatprep.subr.bf16.mxu0 0
        %5364 = vmatpush1.bf16.msra.mxu0 %v3683
        %5365 = vmatprep.subr.bf16.mxu0 0
        %5366 = vmatpush1.bf16.msra.mxu0 %v3688
        %5367 = vmatprep.subr.bf16.mxu0 0
        %5368 = vmatpush1.bf16.msra.mxu0 %v3693
        %5369 = vmatprep.subr.bf16.mxu0 0
        %5370 = vmatpush1.bf16.msra.mxu0 %v3698
        %5371 = vmatprep.subr.bf16.mxu0 0
        %5372 = vmatpush1.bf16.msra.mxu0 %v3703
        %5373 = vmatprep.subr.bf16.mxu0 0
        %5374 = vmatpush1.bf16.msra.mxu0 %v3708
        %5375 = vmatprep.subr.bf16.mxu0 0
        %5376 = vmatpush1.bf16.msra.mxu0 %v3713
        %5377 = vmatprep.subr.bf16.mxu0 0
        %5378 = vmatpush1.bf16.msra.mxu0 %v3718
        %5379 = vmatprep.subr.bf16.mxu0 0
        %5380 = vmatpush1.bf16.msra.mxu0 %v3723
        %5381 = vmatprep.subr.bf16.mxu0 0
        %5382 = vmatpush1.bf16.msra.mxu0 %v3728
        %5383 = vmatprep.subr.bf16.mxu0 0
        %5384 = vmatpush1.bf16.msra.mxu0 %v3733
        %5385 = vmatprep.subr.bf16.mxu0 0
        %5386 = vmatpush1.bf16.msra.mxu0 %v3738
        %5387 = vmatprep.mubr.bf16.mxu0 %v1112
        %5388 = vmatmul.mubr.bf16.gmra.mrb[0].mxu0 %v1111
        %v5389 = vpop.f32.mrb[0].mxu0
        %v5390 = vadd.f32 %v5350, %v5389
        %v5391 = vpop.f32.mrb[0].mxu0
        %v5392 = vpop.f32.mrb[0].mxu0
        %v5393 = vpop.f32.mrb[0].mxu0
        %5394 = vdwg.mxu0
        %5395 = vmatprep.subr.bf16.mxu0 0
        %5396 = vmatpush1.bf16.msra.mxu0 %v3743
        %5397 = vmatprep.subr.bf16.mxu0 0
        %5398 = vmatpush1.bf16.msra.mxu0 %v3748
        %5399 = vmatprep.subr.bf16.mxu0 0
        %5400 = vmatpush1.bf16.msra.mxu0 %v3753
        %5401 = vmatprep.subr.bf16.mxu0 0
        %5402 = vmatpush1.bf16.msra.mxu0 %v3758
        %5403 = vmatprep.subr.bf16.mxu0 0
        %5404 = vmatpush1.bf16.msra.mxu0 %v3763
        %5405 = vmatprep.subr.bf16.mxu0 0
        %5406 = vmatpush1.bf16.msra.mxu0 %v3768
        %5407 = vmatprep.subr.bf16.mxu0 0
        %5408 = vmatpush1.bf16.msra.mxu0 %v3773
        %5409 = vmatprep.subr.bf16.mxu0 0
        %5410 = vmatpush1.bf16.msra.mxu0 %v3778
        %5411 = vmatprep.subr.bf16.mxu0 0
        %5412 = vmatpush1.bf16.msra.mxu0 %v3783
        %5413 = vmatprep.subr.bf16.mxu0 0
        %5414 = vmatpush1.bf16.msra.mxu0 %v3788
        %5415 = vmatprep.subr.bf16.mxu0 0
        %5416 = vmatpush1.bf16.msra.mxu0 %v3793
        %5417 = vmatprep.subr.bf16.mxu0 0
        %5418 = vmatpush1.bf16.msra.mxu0 %v3798
        %5419 = vmatprep.subr.bf16.mxu0 0
        %5420 = vmatpush1.bf16.msra.mxu0 %v3803
        %5421 = vmatprep.subr.bf16.mxu0 0
        %5422 = vmatpush1.bf16.msra.mxu0 %v3808
        %5423 = vmatprep.subr.bf16.mxu0 0
        %5424 = vmatpush1.bf16.msra.mxu0 %v3813
        %5425 = vmatprep.subr.bf16.mxu0 0
        %5426 = vmatpush1.bf16.msra.mxu0 %v3818
        %5427 = vmatprep.mubr.bf16.mxu0 %v1114
        %5428 = vmatmul.mubr.bf16.gmra.mrb[0].mxu0 %v1113
        %v5429 = vpop.f32.mrb[0].mxu0
        %v5430 = vadd.f32 %v5390, %v5429
        %v5431 = vpop.f32.mrb[0].mxu0
        %v5432 = vpop.f32.mrb[0].mxu0
        %v5433 = vpop.f32.mrb[0].mxu0
        %5434 = vdwg.mxu0
        %v5435 = vadd.f32 %v294, %v4781
        %v5436 = vadd.f32 %v295, %v4783
        %v5437 = vadd.f32 %v296, %v5109
        %v5438 = vadd.f32 %v297, %v5111
        %v5439 = vadd.f32 %v298, %v5430
        %5440 = vst [vmem:[#allocation2] sm:$0xff] %v5435
        %5441 = vst [vmem:[#allocation2 + $0x8] sm:$0xff] %v5436
        %5442 = vst [vmem:[#allocation2 + $0x10] sm:$0xff] %v5437
        %5443 = vst [vmem:[#allocation2 + $0x18] sm:$0xff] %v5438
        %5444 = vst [vmem:[#allocation2 + $0x20] sm:$0xff] %v5439
        %p5445 = scmp.eq.s32.totalorder %s28, 1
        // Predicated region
        $region49: #{tpu_custom_call.1} parent=31 // pred_check
          %p5446 = pneg %p5445
        $region50: #{tpu_custom_call.1} parent=31 // pred_check_branch
          %5448 = sbr.rel (%p5446) target = $region52
        $region51: #{tpu_custom_call.1} parent=31 // pred_region
          %v5449 = vld [vmem:[#allocation2] sm:$0xff]
          %v5450 = vld [vmem:[#allocation2 + $0x8] sm:$0xff]
          %v5451 = vld [vmem:[#allocation2 + $0x10] sm:$0xff]
          %v5452 = vld [vmem:[#allocation2 + $0x18] sm:$0xff]
          %v5453 = vld [vmem:[#allocation2 + $0x20] sm:$0xff]
          %v5454 = vld [vmem:[%s246] sm:$0x1f]
          %v5456 = vlaneseq
          %v5457 = vshrl.u32 %v5456, 7
          %v5458 = vsub.s32 0, %v5457
          %v5459 = vrot.slane %v5454, %v5458
          %v5460 = vlaneseq
          %v5461 = vshrl.u32 %v5460, 7
          %v5462 = vsub.s32 1, %v5461
          %v5463 = vrot.slane %v5454, %v5462
          %v5464 = vlaneseq
          %v5465 = vshrl.u32 %v5464, 7
          %v5466 = vsub.s32 2, %v5465
          %v5467 = vrot.slane %v5454, %v5466
          %v5468 = vlaneseq
          %v5469 = vshrl.u32 %v5468, 7
          %v5470 = vsub.s32 3, %v5469
          %v5471 = vrot.slane %v5454, %v5470
          %v5472 = vlaneseq
          %v5473 = vshrl.u32 %v5472, 7
          %v5474 = vsub.s32 4, %v5473
          %v5475 = vrot.slane %v5454, %v5474
          %v5481 = vadd.f32 %v5449, %v5459
          %v5482 = vadd.f32 %v5450, %v5463
          %v5483 = vadd.f32 %v5451, %v5467
          %v5484 = vadd.f32 %v5452, %v5471
          %v5485 = vadd.f32 %v5453, %v5475
          %v5486 = vmax.f32 %v5481, 0.0
          %v5487 = vmax.f32 %v5482, 0.0
          %v5488 = vmax.f32 %v5483, 0.0
          %v5489 = vmax.f32 %v5484, 0.0
          %v5490 = vmax.f32 %v5485, 0.0
          %v5491 = vpack.c.bf16 %v5486, %v5486
          %v5492 = vpack.c.bf16 %v5487, %v5487
          %v5493 = vpack.c.bf16 %v5488, %v5488
          %v5494 = vpack.c.bf16 %v5489, %v5489
          %v5495 = vpack.c.bf16 %v5490, %v5490
          %v5501 = vunpack.c.l.b16 %v5491
          %v5502 = vunpack.c.l.b16 %v5492
          %v5503 = vunpack.c.l.b16 %v5493
          %v5504 = vunpack.c.l.b16 %v5494
          %v5505 = vunpack.c.l.b16 %v5495
          %v5506 = vpack.c.b16 %v5502, %v5501
          %v5507 = vpack.c.b16 %v5504, %v5503
          %v5508 = vpack.c.b16 %v5505, %v5505
          %5512 = vst [vmem:[%s278] sm:$0xff] %v5506
          %5513 = vst [vmem:[%s278 + $0x8] sm:$0xff] %v5507
          %5514 = vst [vmem:[%s278 + $0x10] sm:$0xf] %v5508
        $region52: #{tpu_custom_call.1} parent=31 // pred_fallthru
          _
        %s5515 = sand.u32 %s123, 1
        %s5516 = scalar_lea.sflag [#allocation5], %s5515
        %s5517 = sand.u32 %s123, 1
        %s5518 = smul.addr %s5517, 20
        %s5519 = scalar_lea.vmem [#allocation9], %s5518
        // Predicated region
        $region53: #{tpu_custom_call.1} parent=31 // pred_check
          %p5520 = pneg %p133
        $region54: #{tpu_custom_call.1} parent=31 // pred_check_branch
          %5522 = sbr.rel (%p5520) target = $region56
        $region55: #{tpu_custom_call.1} parent=31 // pred_region
          %s5523 = smul.u32 5, %s27
          %s5525 = ssub.s32 320, 320
          %5526 = vsyncadd %s5516, %s5525
          %s5527 = smul.addr %s5523, 64
          %s5528 = scalar_lea.hbm %s3, %s5527
          %s5530 = sshll.u32 %s5519, 4
          %s5531 = int_to_ptr.vmem [resolvable:$true] %s5530
          %5533 = dma.vmem_to_hbm [thread:$0]  %s5531, 320, %s5528, %s5516
        $region56: #{tpu_custom_call.1} parent=31 // pred_fallthru
          _
      $region32: #{tpu_custom_call.1} parent=5 // pred_fallthru
        _
      %p5534 = scmp.le.s32.totalorder 2, %s18
      // Predicated region
      $region57: #{tpu_custom_call.1} parent=5 // pred_check
        %p5535 = pneg %p5534
      $region58: #{tpu_custom_call.1} parent=5 // pred_check_branch
        %5537 = sbr.rel (%p5535) target = $region60
      $region59: #{tpu_custom_call.1} parent=5 // pred_region
        %s5538 = ssub.s32 %s18, 2
        // Predicated region
        $region61: #{tpu_custom_call.1} parent=59 // pred_check
          %p5539 = pneg %p139
        $region62: #{tpu_custom_call.1} parent=59 // pred_check_branch
          %5541 = sbr.rel (%p5539) target = $region64
        $region63: #{tpu_custom_call.1} parent=59 // pred_region
          %s5542 = sand.u32 %s124, 1
          %s5543 = scalar_lea.sflag [#allocation5], %s5542
          %s5544 = sand.u32 %s124, 1
          %s5545 = smul.addr %s5544, 20
          %s5546 = scalar_lea.vmem [#allocation9], %s5545
          %5547 = dma.done %s5543, 320
        $region64: #{tpu_custom_call.1} parent=59 // pred_fallthru
          _
      $region60: #{tpu_custom_call.1} parent=5 // pred_fallthru
        _
    $region6: #{tpu_custom_call.1} parent=1 // loop_footer
      %s22 = sadd.s32 1, %s18
    $region7: #{tpu_custom_call.1} parent=1 // loop_footer_branch
      %17 = sbr.rel target = $region3
    $region8: #{tpu_custom_call.1} parent=1 // loop_exit
      _
    %5548 = vsyncpa [#allocation4], 1
    %s5549 = scalar_lea.sflag [#allocation4], 1
    %5550 = vsyncpa %s5549, 1
    %5551 = vsyncpa [#allocation7], 1
    %s5552 = scalar_lea.sflag [#allocation7], 1
    %5553 = vsyncpa %s5552, 1
    %5554 = vsyncpa [#allocation5], 1
    %s5555 = scalar_lea.sflag [#allocation5], 1
    %5556 = vsyncpa %s5555, 1

</llo_original>
